<compile_context>
chip_gen: v5e
topology: v5e:2x2
jax: 0.10.0
libtpu: 0.0.40
codegen_flags: <defaults>
</compile_context>

<pallas_src>
import functools

import jax
import jax.numpy as jnp
from jax import lax
from jax.experimental import pallas as pl
from jax.experimental.pallas import tpu as pltpu

# ---------------- model sizes (implied by the PyTorch module) ----------------
HIDDEN = 30          # Parameters.HIDDEN_SIZE == type_embedding_dim
EMB = HIDDEN
LINEAR = 30          # self.linear_size
NUM_CLASSES = 5
GG_LAYERS = 3        # GatedGraphConv(hidden_dim, 3)
BN_EPS = 1e-5


# ----------------------------- fused forward kernel ---------------------------
def fused_net_kernel(idx_ref, adj_ref, w_ref, f_ref, out_ref, *, B, L, P):
    f32, bf16 = jnp.float32, jnp.bfloat16
    H, LIN, NC = HIDDEN, LINEAR, NUM_CLASSES
    LB = L * B
    off_p = ((LB + 7) // 8) * 8          # sublane-aligned offsets in idx buffer
    off_l = off_p + 8

    # ------------- static carve-outs from the coalesced input buffers ---------
    adj = adj_ref[...]                                   # (P, P) bf16, exact 0/1
    emb = f_ref[8:8 + P, 0:H]                            # (P, H) f32
    gru_b = f_ref[0:1, :]                                # (1, 128) gate-packed
    lstm_b = f_ref[1:2, :]                               # (1, 128) gate-packed
    b1 = f_ref[2:3, 0:LIN]
    b2 = f_ref[3:4, 0:LIN]
    co = f_ref[4:5, 0:NC]

    gru_wx, gru_wh = w_ref[3], w_ref[4]                  # (H, 128) bf16 gate-packed
    lstm_wx, lstm_wh = w_ref[5], w_ref[6]                # (H, 128) bf16 gate-packed
    head1 = w_ref[7]                                     # au @ 0:30, ar @ 32:62
    head2 = w_ref[8]                                     # bu @ 0:30, bp @ 32:62, cw @ 64:69

    # ---------------- GatedGraphConv (3 GRU layers) + ReLU --------------------
    # Gate slots (32 lanes each): 0 -> r, 1 -> z, 2 -> n(x-part), 3 -> n(h-part)
    h = emb
    for layer in range(GG_LAYERS):                       # static unroll
        hw = jnp.dot(h.astype(bf16), w_ref[layer][:, 0:H],
                     preferred_element_type=f32)                         # (P, H)
        msg = jnp.dot(adj, hw.astype(bf16), preferred_element_type=f32)  # sum aggr
        g = (jnp.dot(msg.astype(bf16), gru_wx, preferred_element_type=f32)
             + jnp.dot(h.astype(bf16), gru_wh, preferred_element_type=f32)
             + gru_b)                                                    # (P, 128)
        r = jax.nn.sigmoid(g[:, 0:H])
        z = jax.nn.sigmoid(g[:, 32:32 + H])
        n = jnp.tanh(g[:, 64:64 + H] + r * g[:, 96:96 + H])
        h = (1.0 - z) * n + z * h
    h = jnp.maximum(h, 0.0)                              # F.relu; dropout = identity

    # ------------- embedding lookups as bf16 one-hot MXU matmuls --------------
    uidx = idx_ref[0:LB]                                 # (L*B, 1) int32 time-major
    pidx = idx_ref[off_p:off_p + B]                      # (B, 1) int32
    lens = idx_ref[off_l:off_l + B]                      # (B, 1) int32
    h_bf = h.astype(bf16)
    onehot_u = (uidx == lax.broadcasted_iota(jnp.int32, (LB, P), 1)).astype(bf16)
    onehot_p = (pidx == lax.broadcasted_iota(jnp.int32, (B, P), 1)).astype(bf16)
    hist = jnp.dot(onehot_u, h_bf, preferred_element_type=f32)           # (L*B, H)
    region_raw = jnp.dot(onehot_p, h_bf, preferred_element_type=f32)     # (B, H)
    poi_raw = jnp.dot(onehot_p, emb.astype(bf16), preferred_element_type=f32)

    # ------ LSTM: bat_nor_embed folded into weights, input proj hoisted -------
    # gate slots (32 lanes each): i, f, g, o.  One dot for all L*B timesteps.
    gx = jnp.dot(hist.astype(bf16), lstm_wx, preferred_element_type=f32) + lstm_b
    hs = jnp.zeros((B, H), f32)
    cs = jnp.zeros((B, H), f32)
    for t in range(L):                                   # static unroll (L = 8)
        rec = jnp.dot(hs.astype(bf16), lstm_wh, preferred_element_type=f32)
        pre = gx[t * B:(t + 1) * B] + rec                                # (B, 128)
        i_g = jax.nn.sigmoid(pre[:, 0:H])
        f_g = jax.nn.sigmoid(pre[:, 32:32 + H])
        g_g = jnp.tanh(pre[:, 64:64 + H])
        o_g = jax.nn.sigmoid(pre[:, 96:96 + H])
        c_new = f_g * cs + i_g * g_g
        h_new = o_g * jnp.tanh(c_new)
        keep = t < lens                                  # emulate pack_padded_sequence
        hs = jnp.where(keep, h_new, hs)
        cs = jnp.where(keep, c_new, cs)
    # hs == h_n of the packed LSTM (original batch order, enforce_sorted=False).

    # -------- head: all BNs folded, concatenations split into partial dots ----
    y1 = jnp.maximum(
        jnp.dot(hs.astype(bf16), head1[:, 0:H], preferred_element_type=f32)
        + jnp.dot(region_raw.astype(bf16), head1[:, 32:32 + H],
                  preferred_element_type=f32)
        + b1, 0.0)                                                       # (B, 30)
    y2 = jnp.maximum(
        jnp.dot(y1.astype(bf16), head2[:, 0:LIN], preferred_element_type=f32)
        + jnp.dot(poi_raw.astype(bf16), head2[:, 32:32 + H],
                  preferred_element_type=f32)
        + b2, 0.0)                                                       # (B, 30)
    logits = jnp.dot(y2.astype(bf16), head2[:, 64:64 + NC],
                     preferred_element_type=f32) + co                    # (B, 5)

    # log_softmax(dim=1)
    m = jnp.max(logits, axis=-1, keepdims=True)
    s = logits - m
    out_ref[...] = s - jnp.log(jnp.sum(jnp.exp(s), axis=-1, keepdims=True))


# ------------------------------------ wrapper ----------------------------------
def net_forward(fp, user, poi, length):
    B, L = user.shape
    P = fp["adj_bf"].shape[0]
    LB = L * B
    off_p = ((LB + 7) // 8) * 8
    off_l = off_p + 8

    # Coalesce all integer inputs into a single aligned int32 buffer (1 DMA).
    idx = jnp.zeros((off_l + 8, 1), jnp.int32)
    idx = idx.at[0:LB, 0].set(user.T.reshape(LB).astype(jnp.int32))       # time-major
    idx = idx.at[off_p:off_p + B, 0].set(poi.reshape(B).astype(jnp.int32))
    idx = idx.at[off_l:off_l + B, 0].set(length.reshape(B).astype(jnp.int32))

    kernel = functools.partial(fused_net_kernel, B=B, L=L, P=P)
    vmem = pl.BlockSpec(memory_space=pltpu.MemorySpace.VMEM)
    return pl.pallas_call(
        kernel,
        out_shape=jax.ShapeDtypeStruct((B, NUM_CLASSES), jnp.float32),
        in_specs=[vmem] * 4,
        out_specs=vmem,
    )(idx, fp["adj_bf"], fp["wstack_bf"], fp["fbuf"])


# ------------------------- raw (PyTorch-style) parameters -----------------------
def init_params(key, P):
    keys = jax.random.split(key, 16)

    def nrm(k, shape, scale=0.1):
        return (scale * jax.random.normal(k, shape)).astype(jnp.float32)

    emb = nrm(keys[0], (P, EMB))
    emb = emb.at[0].set(0.0)                             # padding_idx=0

    def bn_params(k, c):
        k1, k2, k3, k4 = jax.random.split(k, 4)
        gamma = 1.0 + 0.1 * jax.random.normal(k1, (c,))
        beta = 0.1 * jax.random.normal(k2, (c,))
        mean = 0.1 * jax.random.normal(k3, (c,))
        var = 1.0 + 0.1 * jnp.abs(jax.random.normal(k4, (c,)))
        return jnp.stack([gamma, beta, mean, var]).astype(jnp.float32)   # (4, c)

    kk = jax.random.split(keys[15], 6)
    return dict(
        emb=emb,
        gg_w=nrm(keys[1], (GG_LAYERS, HIDDEN, HIDDEN)),
        gg_wih=nrm(keys[2], (3 * HIDDEN, HIDDEN)),
        gg_whh=nrm(keys[3], (3 * HIDDEN, HIDDEN)),
        gg_bih=nrm(keys[4], (1, 3 * HIDDEN)),
        gg_bhh=nrm(keys[5], (1, 3 * HIDDEN)),
        lstm_wih=nrm(keys[6], (4 * HIDDEN, HIDDEN)),
        lstm_whh=nrm(keys[7], (4 * HIDDEN, HIDDEN)),
        lstm_bih=nrm(keys[8], (1, 4 * HIDDEN)),
        lstm_bhh=nrm(keys[9], (1, 4 * HIDDEN)),
        bn_emb=bn_params(keys[10], HIDDEN),
        fc1_bn_a=bn_params(keys[11], 2 * HIDDEN),
        fc1_bn_b=bn_params(keys[12], LINEAR),
        fc2_bn_a=bn_params(keys[13], 2 * HIDDEN),
        fc2_bn_b=bn_params(keys[14], LINEAR),
        fc1_w=nrm(kk[0], (LINEAR, 2 * HIDDEN)),
        fc1_b=nrm(kk[1], (1, LINEAR)),
        fc2_w=nrm(kk[2], (LINEAR, 2 * HIDDEN)),
        fc2_b=nrm(kk[3], (1, LINEAR)),
        fc2_ow=nrm(kk[4], (NUM_CLASSES, LINEAR)),
        fc2_ob=nrm(kk[5], (1, NUM_CLASSES)),
    )


# -------- one-time host-side folding: BN -> affine, gate-pack, coalesce --------
def fold_params(raw, adj):
    H, LIN, NC = HIDDEN, LINEAR, NUM_CLASSES
    P = adj.shape[0]

    def bn_affine(bn):                  # rows: gamma, beta, mean, var (eval mode)
        g, b, m, v = bn[0], bn[1], bn[2], bn[3]
        s = g * lax.rsqrt(v + BN_EPS)
        return s, b - m * s

    def gate(w, g):
        return w[g * H:(g + 1) * H, :].T                 # (H, H): x @ W

    # --- GatedGraphConv GRUCell: gate-packed into 32-lane slots ---------------
    wih, whh = raw["gg_wih"], raw["gg_whh"]
    bih, bhh = raw["gg_bih"].reshape(-1), raw["gg_bhh"].reshape(-1)
    gru_wx = jnp.zeros((H, 128), jnp.float32)
    gru_wh = jnp.zeros((H, 128), jnp.float32)
    gru_b = jnp.zeros((128,), jnp.float32)
    gru_wx = gru_wx.at[:, 0:H].set(gate(wih, 0))          # r (x)
    gru_wx = gru_wx.at[:, 32:32 + H].set(gate(wih, 1))    # z (x)
    gru_wx = gru_wx.at[:, 64:64 + H].set(gate(wih, 2))    # n (x)
    gru_wh = gru_wh.at[:, 0:H].set(gate(whh, 0))          # r (h)
    gru_wh = gru_wh.at[:, 32:32 + H].set(gate(whh, 1))    # z (h)
    gru_wh = gru_wh.at[:, 96:96 + H].set(gate(whh, 2))    # n (h)
    gru_b = gru_b.at[0:H].set(bih[0:H] + bhh[0:H])                     # r combined
    gru_b = gru_b.at[32:32 + H].set(bih[H:2 * H] + bhh[H:2 * H])       # z combined
    gru_b = gru_b.at[64:64 + H].set(bih[2 * H:3 * H])                  # n: input bias
    gru_b = gru_b.at[96:96 + H].set(bhh[2 * H:3 * H])                  # n: hidden bias

    # --- bat_nor_embed (eval) as an affine map ---------------------------------
    s_e, t_e = bn_affine(raw["bn_emb"])

    # --- LSTM: gate-packed, BN folded into the input projection ----------------
    lwih, lwhh = raw["lstm_wih"], raw["lstm_whh"]
    lbih, lbhh = raw["lstm_bih"].reshape(-1), raw["lstm_bhh"].reshape(-1)
    lstm_wx = jnp.zeros((H, 128), jnp.float32)
    lstm_wh = jnp.zeros((H, 128), jnp.float32)
    lstm_b = jnp.zeros((128,), jnp.float32)
    for g in range(4):                                   # i, f, g, o
        wx, wh = gate(lwih, g), gate(lwhh, g)
        lstm_wx = lstm_wx.at[:, g * 32:g * 32 + H].set(s_e[:, None] * wx)
        lstm_wh = lstm_wh.at[:, g * 32:g * 32 + H].set(wh)
        lstm_b = lstm_b.at[g * 32:g * 32 + H].set(
            lbih[g * H:(g + 1) * H] + lbhh[g * H:(g + 1) * H] + t_e @ wx)

    # --- head: fold every BN into the linear layers, split the concats ---------
    s1, t1 = bn_affine(raw["fc1_bn_a"])                  # (2H,)
    s1b, t1b = bn_affine(raw["fc1_bn_b"])                # (30,)
    s2, t2 = bn_affine(raw["fc2_bn_a"])                  # (2H,)
    s2b, t2b = bn_affine(raw["fc2_bn_b"])                # (30,)

    W1T = raw["fc1_w"].T                                 # (2H, 30)
    W1u, W1r = W1T[:H], W1T[H:]
    head_au = s1[:H, None] * W1u
    head_ar = (s_e * s1[H:])[:, None] * W1r              # region branch is BN(h[poi])
    head_b1 = (raw["fc1_b"].reshape(-1) + t1[:H] @ W1u
               + (t_e * s1[H:] + t1[H:]) @ W1r)

    W2T = raw["fc2_w"].T                                 # (2H, 30): [fc1-out | poi_pref]
    W2u, W2p = W2T[:LIN], W2T[LIN:]
    head_bu = (s1b * s2[:LIN])[:, None] * W2u
    head_bp = (s_e * s2[LIN:])[:, None] * W2p
    head_b2 = (raw["fc2_b"].reshape(-1)
               + (t1b * s2[:LIN] + t2[:LIN]) @ W2u
               + (t_e * s2[LIN:] + t2[LIN:]) @ W2p)

    WoT = raw["fc2_ow"].T                                # (30, 5)
    head_cw = s2b[:, None] * WoT
    head_co = raw["fc2_ob"].reshape(-1) + t2b @ WoT

    # --- coalesce: 1 bf16 weight stack + 1 f32 misc buffer + bf16 adjacency ----
    wstack = jnp.zeros((9, H, 128), jnp.float32)
    for l in range(GG_LAYERS):
        wstack = wstack.at[l, :, 0:H].set(raw["gg_w"][l])            # propagation W
    wstack = wstack.at[3].set(gru_wx)
    wstack = wstack.at[4].set(gru_wh)
    wstack = wstack.at[5].set(lstm_wx)
    wstack = wstack.at[6].set(lstm_wh)
    wstack = wstack.at[7, :, 0:LIN].set(head_au)
    wstack = wstack.at[7, :, 32:32 + LIN].set(head_ar)
    wstack = wstack.at[8, :, 0:LIN].set(head_bu)
    wstack = wstack.at[8, :, 32:32 + LIN].set(head_bp)
    wstack = wstack.at[8, :, 64:64 + NC].set(head_cw)

    fbuf = jnp.zeros((8 + P, 128), jnp.float32)
    fbuf = fbuf.at[0, :].set(gru_b)
    fbuf = fbuf.at[1, :].set(lstm_b)
    fbuf = fbuf.at[2, 0:LIN].set(head_b1)
    fbuf = fbuf.at[3, 0:LIN].set(head_b2)
    fbuf = fbuf.at[4, 0:NC].set(head_co)
    fbuf = fbuf.at[8:8 + P, 0:HIDDEN].set(raw["emb"])

    return dict(adj_bf=adj.astype(jnp.bfloat16),          # 0/1: exact in bf16
                wstack_bf=wstack.astype(jnp.bfloat16),
                fbuf=fbuf)


def make_adjacency(P):
    # struct_topology in the original code is an edge list; build a deterministic
    # dense adjacency A[dst, src] = 1 (sum aggregation, as in GatedGraphConv).
    src = jnp.arange(P, dtype=jnp.int32)
    adj = jnp.zeros((P, P), jnp.float32)
    for off in (1, 3, 7):
        dst = (src + off) % P
        adj = adj.at[dst, src].set(1.0)
    return adj


# ------------------------------------ main -------------------------------------
if __name__ == "__main__":
    P, B, L = 64, 4, 8
    key = jax.random.PRNGKey(0)
    k_p, k_u, k_poi, k_len = jax.random.split(key, 4)

    raw = init_params(k_p, P)
    adj = make_adjacency(P)
    fp = fold_params(raw, adj)                           # one-time host-side prep

    length = jax.random.randint(k_len, (B,), 1, L + 1).astype(jnp.int32)
    user = jax.random.randint(k_u, (B, L), 1, P).astype(jnp.int32)
    user = jnp.where(jnp.arange(L)[None, :] < length[:, None], user, 0)   # pad idx 0
    poi = jax.random.randint(k_poi, (B, 1), 1, P).astype(jnp.int32)

    fwd = jax.jit(net_forward)
    out = fwd(fp, user, poi, length)
    jax.block_until_ready(out)
    assert out.shape == (B, NUM_CLASSES)
    assert bool(jnp.all(jnp.isfinite(out)))
    print("KERNEL_OK")
</pallas_src>

<mosaic_0001>
module attributes {stable_mosaic.version = 11 : i64} {
  func.func @fused_net_kernel(%arg0: memref<48x1xi32, #tpu.memory_space<vmem>>, %arg1: memref<64x64xbf16, #tpu.memory_space<vmem>>, %arg2: memref<9x30x128xbf16, #tpu.memory_space<vmem>>, %arg3: memref<72x128xf32, #tpu.memory_space<vmem>>, %arg4: memref<4x5xf32, #tpu.memory_space<vmem>>) attributes {dimension_semantics = [], scalar_prefetch = 0 : i64, scratch_operands = 0 : i64, tpu.core_type = #tpu.core_type<tc>} {
    %c0 = arith.constant 0 : index
    %c0_0 = arith.constant 0 : index
    %0 = vector.load %arg1[%c0, %c0_0] : memref<64x64xbf16, #tpu.memory_space<vmem>>, vector<64x64xbf16>
    %c8 = arith.constant 8 : index
    %c0_1 = arith.constant 0 : index
    %1 = vector.load %arg3[%c8, %c0_1] : memref<72x128xf32, #tpu.memory_space<vmem>>, vector<64x30xf32>
    %c0_2 = arith.constant 0 : index
    %c0_3 = arith.constant 0 : index
    %2 = vector.load %arg3[%c0_2, %c0_3] : memref<72x128xf32, #tpu.memory_space<vmem>>, vector<1x128xf32>
    %c1 = arith.constant 1 : index
    %c0_4 = arith.constant 0 : index
    %3 = vector.load %arg3[%c1, %c0_4] : memref<72x128xf32, #tpu.memory_space<vmem>>, vector<1x128xf32>
    %c2 = arith.constant 2 : index
    %c0_5 = arith.constant 0 : index
    %4 = vector.load %arg3[%c2, %c0_5] : memref<72x128xf32, #tpu.memory_space<vmem>>, vector<1x30xf32>
    %c3 = arith.constant 3 : index
    %c0_6 = arith.constant 0 : index
    %5 = vector.load %arg3[%c3, %c0_6] : memref<72x128xf32, #tpu.memory_space<vmem>>, vector<1x30xf32>
    %c4 = arith.constant 4 : index
    %c0_7 = arith.constant 0 : index
    %6 = vector.load %arg3[%c4, %c0_7] : memref<72x128xf32, #tpu.memory_space<vmem>>, vector<1x5xf32>
    %c3_8 = arith.constant 3 : index
    %c0_9 = arith.constant 0 : index
    %c0_10 = arith.constant 0 : index
    %7 = vector.load %arg2[%c3_8, %c0_9, %c0_10] : memref<9x30x128xbf16, #tpu.memory_space<vmem>>, vector<1x30x128xbf16>
    %8 = vector.shape_cast %7 : vector<1x30x128xbf16> to vector<30x128xbf16>
    %c4_11 = arith.constant 4 : index
    %c0_12 = arith.constant 0 : index
    %c0_13 = arith.constant 0 : index
    %9 = vector.load %arg2[%c4_11, %c0_12, %c0_13] : memref<9x30x128xbf16, #tpu.memory_space<vmem>>, vector<1x30x128xbf16>
    %10 = vector.shape_cast %9 : vector<1x30x128xbf16> to vector<30x128xbf16>
    %c5 = arith.constant 5 : index
    %c0_14 = arith.constant 0 : index
    %c0_15 = arith.constant 0 : index
    %11 = vector.load %arg2[%c5, %c0_14, %c0_15] : memref<9x30x128xbf16, #tpu.memory_space<vmem>>, vector<1x30x128xbf16>
    %12 = vector.shape_cast %11 : vector<1x30x128xbf16> to vector<30x128xbf16>
    %c6 = arith.constant 6 : index
    %c0_16 = arith.constant 0 : index
    %c0_17 = arith.constant 0 : index
    %13 = vector.load %arg2[%c6, %c0_16, %c0_17] : memref<9x30x128xbf16, #tpu.memory_space<vmem>>, vector<1x30x128xbf16>
    %14 = vector.shape_cast %13 : vector<1x30x128xbf16> to vector<30x128xbf16>
    %c7 = arith.constant 7 : index
    %c0_18 = arith.constant 0 : index
    %c0_19 = arith.constant 0 : index
    %15 = vector.load %arg2[%c7, %c0_18, %c0_19] : memref<9x30x128xbf16, #tpu.memory_space<vmem>>, vector<1x30x128xbf16>
    %16 = vector.shape_cast %15 : vector<1x30x128xbf16> to vector<30x128xbf16>
    %c8_20 = arith.constant 8 : index
    %c0_21 = arith.constant 0 : index
    %c0_22 = arith.constant 0 : index
    %17 = vector.load %arg2[%c8_20, %c0_21, %c0_22] : memref<9x30x128xbf16, #tpu.memory_space<vmem>>, vector<1x30x128xbf16>
    %18 = vector.shape_cast %17 : vector<1x30x128xbf16> to vector<30x128xbf16>
    %19 = arith.truncf %1 : vector<64x30xf32> to vector<64x30xbf16>
    %c0_23 = arith.constant 0 : index
    %c0_24 = arith.constant 0 : index
    %c0_25 = arith.constant 0 : index
    %20 = vector.load %arg2[%c0_23, %c0_24, %c0_25] : memref<9x30x128xbf16, #tpu.memory_space<vmem>>, vector<1x30x128xbf16>
    %21 = vector.shape_cast %20 : vector<1x30x128xbf16> to vector<30x128xbf16>
    %22 = vector.extract_strided_slice %21 {offsets = [0, 0], sizes = [30, 30], strides = [1, 1]} : vector<30x128xbf16> to vector<30x30xbf16>
    %cst = arith.constant dense<0.000000e+00> : vector<64x30xf32>
    %23 = tpu.matmul %19, %22, %cst {dimension_numbers = #tpu.dot_dimension_numbers<[1], [0], [0], [1], [0, 0, 1, 1], [], []>} : vector<64x30xbf16>, vector<30x30xbf16>, vector<64x30xf32> -> vector<64x30xf32>
    %24 = arith.truncf %23 : vector<64x30xf32> to vector<64x30xbf16>
    %cst_26 = arith.constant dense<0.000000e+00> : vector<64x30xf32>
    %25 = tpu.matmul %0, %24, %cst_26 {dimension_numbers = #tpu.dot_dimension_numbers<[1], [0], [0], [1], [0, 0, 1, 1], [], []>} : vector<64x64xbf16>, vector<64x30xbf16>, vector<64x30xf32> -> vector<64x30xf32>
    %26 = arith.truncf %25 : vector<64x30xf32> to vector<64x30xbf16>
    %cst_27 = arith.constant dense<0.000000e+00> : vector<64x128xf32>
    %27 = tpu.matmul %26, %8, %cst_27 {dimension_numbers = #tpu.dot_dimension_numbers<[1], [0], [0], [1], [0, 0, 1, 1], [], []>} : vector<64x30xbf16>, vector<30x128xbf16>, vector<64x128xf32> -> vector<64x128xf32>
    %28 = arith.truncf %1 : vector<64x30xf32> to vector<64x30xbf16>
    %cst_28 = arith.constant dense<0.000000e+00> : vector<64x128xf32>
    %29 = tpu.matmul %28, %10, %cst_28 {dimension_numbers = #tpu.dot_dimension_numbers<[1], [0], [0], [1], [0, 0, 1, 1], [], []>} : vector<64x30xbf16>, vector<30x128xbf16>, vector<64x128xf32> -> vector<64x128xf32>
    %30 = arith.addf %27, %29 : vector<64x128xf32>
    %31 = vector.broadcast %2 : vector<1x128xf32> to vector<64x128xf32>
    %32 = arith.addf %30, %31 : vector<64x128xf32>
    %33 = vector.extract_strided_slice %32 {offsets = [0, 0], sizes = [64, 30], strides = [1, 1]} : vector<64x128xf32> to vector<64x30xf32>
    %34 = arith.negf %33 : vector<64x30xf32>
    %35 = math.exp %34 : vector<64x30xf32>
    %cst_29 = arith.constant 1.000000e+00 : f32
    %36 = vector.broadcast %cst_29 : f32 to vector<64x30xf32>
    %37 = arith.addf %36, %35 : vector<64x30xf32>
    %38 = arith.divf %36, %37 : vector<64x30xf32>
    %39 = vector.extract_strided_slice %32 {offsets = [0, 32], sizes = [64, 30], strides = [1, 1]} : vector<64x128xf32> to vector<64x30xf32>
    %40 = arith.negf %39 : vector<64x30xf32>
    %41 = math.exp %40 : vector<64x30xf32>
    %cst_30 = arith.constant 1.000000e+00 : f32
    %42 = vector.broadcast %cst_30 : f32 to vector<64x30xf32>
    %43 = arith.addf %42, %41 : vector<64x30xf32>
    %44 = arith.divf %42, %43 : vector<64x30xf32>
    %45 = vector.extract_strided_slice %32 {offsets = [0, 64], sizes = [64, 30], strides = [1, 1]} : vector<64x128xf32> to vector<64x30xf32>
    %46 = vector.extract_strided_slice %32 {offsets = [0, 96], sizes = [64, 30], strides = [1, 1]} : vector<64x128xf32> to vector<64x30xf32>
    %47 = arith.mulf %38, %46 : vector<64x30xf32>
    %48 = arith.addf %45, %47 : vector<64x30xf32>
    %49 = math.tanh %48 : vector<64x30xf32>
    %cst_31 = arith.constant 1.000000e+00 : f32
    %50 = vector.broadcast %cst_31 : f32 to vector<64x30xf32>
    %51 = arith.subf %50, %44 : vector<64x30xf32>
    %52 = arith.mulf %51, %49 : vector<64x30xf32>
    %53 = arith.mulf %44, %1 : vector<64x30xf32>
    %54 = arith.addf %52, %53 : vector<64x30xf32>
    %55 = arith.truncf %54 : vector<64x30xf32> to vector<64x30xbf16>
    %c1_32 = arith.constant 1 : index
    %c0_33 = arith.constant 0 : index
    %c0_34 = arith.constant 0 : index
    %56 = vector.load %arg2[%c1_32, %c0_33, %c0_34] : memref<9x30x128xbf16, #tpu.memory_space<vmem>>, vector<1x30x128xbf16>
    %57 = vector.shape_cast %56 : vector<1x30x128xbf16> to vector<30x128xbf16>
    %58 = vector.extract_strided_slice %57 {offsets = [0, 0], sizes = [30, 30], strides = [1, 1]} : vector<30x128xbf16> to vector<30x30xbf16>
    %cst_35 = arith.constant dense<0.000000e+00> : vector<64x30xf32>
    %59 = tpu.matmul %55, %58, %cst_35 {dimension_numbers = #tpu.dot_dimension_numbers<[1], [0], [0], [1], [0, 0, 1, 1], [], []>} : vector<64x30xbf16>, vector<30x30xbf16>, vector<64x30xf32> -> vector<64x30xf32>
    %60 = arith.truncf %59 : vector<64x30xf32> to vector<64x30xbf16>
    %cst_36 = arith.constant dense<0.000000e+00> : vector<64x30xf32>
    %61 = tpu.matmul %0, %60, %cst_36 {dimension_numbers = #tpu.dot_dimension_numbers<[1], [0], [0], [1], [0, 0, 1, 1], [], []>} : vector<64x64xbf16>, vector<64x30xbf16>, vector<64x30xf32> -> vector<64x30xf32>
    %62 = arith.truncf %61 : vector<64x30xf32> to vector<64x30xbf16>
    %cst_37 = arith.constant dense<0.000000e+00> : vector<64x128xf32>
    %63 = tpu.matmul %62, %8, %cst_37 {dimension_numbers = #tpu.dot_dimension_numbers<[1], [0], [0], [1], [0, 0, 1, 1], [], []>} : vector<64x30xbf16>, vector<30x128xbf16>, vector<64x128xf32> -> vector<64x128xf32>
    %64 = arith.truncf %54 : vector<64x30xf32> to vector<64x30xbf16>
    %cst_38 = arith.constant dense<0.000000e+00> : vector<64x128xf32>
    %65 = tpu.matmul %64, %10, %cst_38 {dimension_numbers = #tpu.dot_dimension_numbers<[1], [0], [0], [1], [0, 0, 1, 1], [], []>} : vector<64x30xbf16>, vector<30x128xbf16>, vector<64x128xf32> -> vector<64x128xf32>
    %66 = arith.addf %63, %65 : vector<64x128xf32>
    %67 = vector.broadcast %2 : vector<1x128xf32> to vector<64x128xf32>
    %68 = arith.addf %66, %67 : vector<64x128xf32>
    %69 = vector.extract_strided_slice %68 {offsets = [0, 0], sizes = [64, 30], strides = [1, 1]} : vector<64x128xf32> to vector<64x30xf32>
    %70 = arith.negf %69 : vector<64x30xf32>
    %71 = math.exp %70 : vector<64x30xf32>
    %cst_39 = arith.constant 1.000000e+00 : f32
    %72 = vector.broadcast %cst_39 : f32 to vector<64x30xf32>
    %73 = arith.addf %72, %71 : vector<64x30xf32>
    %74 = arith.divf %72, %73 : vector<64x30xf32>
    %75 = vector.extract_strided_slice %68 {offsets = [0, 32], sizes = [64, 30], strides = [1, 1]} : vector<64x128xf32> to vector<64x30xf32>
    %76 = arith.negf %75 : vector<64x30xf32>
    %77 = math.exp %76 : vector<64x30xf32>
    %cst_40 = arith.constant 1.000000e+00 : f32
    %78 = vector.broadcast %cst_40 : f32 to vector<64x30xf32>
    %79 = arith.addf %78, %77 : vector<64x30xf32>
    %80 = arith.divf %78, %79 : vector<64x30xf32>
    %81 = vector.extract_strided_slice %68 {offsets = [0, 64], sizes = [64, 30], strides = [1, 1]} : vector<64x128xf32> to vector<64x30xf32>
    %82 = vector.extract_strided_slice %68 {offsets = [0, 96], sizes = [64, 30], strides = [1, 1]} : vector<64x128xf32> to vector<64x30xf32>
    %83 = arith.mulf %74, %82 : vector<64x30xf32>
    %84 = arith.addf %81, %83 : vector<64x30xf32>
    %85 = math.tanh %84 : vector<64x30xf32>
    %cst_41 = arith.constant 1.000000e+00 : f32
    %86 = vector.broadcast %cst_41 : f32 to vector<64x30xf32>
    %87 = arith.subf %86, %80 : vector<64x30xf32>
    %88 = arith.mulf %87, %85 : vector<64x30xf32>
    %89 = arith.mulf %80, %54 : vector<64x30xf32>
    %90 = arith.addf %88, %89 : vector<64x30xf32>
    %91 = arith.truncf %90 : vector<64x30xf32> to vector<64x30xbf16>
    %c2_42 = arith.constant 2 : index
    %c0_43 = arith.constant 0 : index
    %c0_44 = arith.constant 0 : index
    %92 = vector.load %arg2[%c2_42, %c0_43, %c0_44] : memref<9x30x128xbf16, #tpu.memory_space<vmem>>, vector<1x30x128xbf16>
    %93 = vector.shape_cast %92 : vector<1x30x128xbf16> to vector<30x128xbf16>
    %94 = vector.extract_strided_slice %93 {offsets = [0, 0], sizes = [30, 30], strides = [1, 1]} : vector<30x128xbf16> to vector<30x30xbf16>
    %cst_45 = arith.constant dense<0.000000e+00> : vector<64x30xf32>
    %95 = tpu.matmul %91, %94, %cst_45 {dimension_numbers = #tpu.dot_dimension_numbers<[1], [0], [0], [1], [0, 0, 1, 1], [], []>} : vector<64x30xbf16>, vector<30x30xbf16>, vector<64x30xf32> -> vector<64x30xf32>
    %96 = arith.truncf %95 : vector<64x30xf32> to vector<64x30xbf16>
    %cst_46 = arith.constant dense<0.000000e+00> : vector<64x30xf32>
    %97 = tpu.matmul %0, %96, %cst_46 {dimension_numbers = #tpu.dot_dimension_numbers<[1], [0], [0], [1], [0, 0, 1, 1], [], []>} : vector<64x64xbf16>, vector<64x30xbf16>, vector<64x30xf32> -> vector<64x30xf32>
    %98 = arith.truncf %97 : vector<64x30xf32> to vector<64x30xbf16>
    %cst_47 = arith.constant dense<0.000000e+00> : vector<64x128xf32>
    %99 = tpu.matmul %98, %8, %cst_47 {dimension_numbers = #tpu.dot_dimension_numbers<[1], [0], [0], [1], [0, 0, 1, 1], [], []>} : vector<64x30xbf16>, vector<30x128xbf16>, vector<64x128xf32> -> vector<64x128xf32>
    %100 = arith.truncf %90 : vector<64x30xf32> to vector<64x30xbf16>
    %cst_48 = arith.constant dense<0.000000e+00> : vector<64x128xf32>
    %101 = tpu.matmul %100, %10, %cst_48 {dimension_numbers = #tpu.dot_dimension_numbers<[1], [0], [0], [1], [0, 0, 1, 1], [], []>} : vector<64x30xbf16>, vector<30x128xbf16>, vector<64x128xf32> -> vector<64x128xf32>
    %102 = arith.addf %99, %101 : vector<64x128xf32>
    %103 = vector.broadcast %2 : vector<1x128xf32> to vector<64x128xf32>
    %104 = arith.addf %102, %103 : vector<64x128xf32>
    %105 = vector.extract_strided_slice %104 {offsets = [0, 0], sizes = [64, 30], strides = [1, 1]} : vector<64x128xf32> to vector<64x30xf32>
    %106 = arith.negf %105 : vector<64x30xf32>
    %107 = math.exp %106 : vector<64x30xf32>
    %cst_49 = arith.constant 1.000000e+00 : f32
    %108 = vector.broadcast %cst_49 : f32 to vector<64x30xf32>
    %109 = arith.addf %108, %107 : vector<64x30xf32>
    %110 = arith.divf %108, %109 : vector<64x30xf32>
    %111 = vector.extract_strided_slice %104 {offsets = [0, 32], sizes = [64, 30], strides = [1, 1]} : vector<64x128xf32> to vector<64x30xf32>
    %112 = arith.negf %111 : vector<64x30xf32>
    %113 = math.exp %112 : vector<64x30xf32>
    %cst_50 = arith.constant 1.000000e+00 : f32
    %114 = vector.broadcast %cst_50 : f32 to vector<64x30xf32>
    %115 = arith.addf %114, %113 : vector<64x30xf32>
    %116 = arith.divf %114, %115 : vector<64x30xf32>
    %117 = vector.extract_strided_slice %104 {offsets = [0, 64], sizes = [64, 30], strides = [1, 1]} : vector<64x128xf32> to vector<64x30xf32>
    %118 = vector.extract_strided_slice %104 {offsets = [0, 96], sizes = [64, 30], strides = [1, 1]} : vector<64x128xf32> to vector<64x30xf32>
    %119 = arith.mulf %110, %118 : vector<64x30xf32>
    %120 = arith.addf %117, %119 : vector<64x30xf32>
    %121 = math.tanh %120 : vector<64x30xf32>
    %cst_51 = arith.constant 1.000000e+00 : f32
    %122 = vector.broadcast %cst_51 : f32 to vector<64x30xf32>
    %123 = arith.subf %122, %116 : vector<64x30xf32>
    %124 = arith.mulf %123, %121 : vector<64x30xf32>
    %125 = arith.mulf %116, %90 : vector<64x30xf32>
    %126 = arith.addf %124, %125 : vector<64x30xf32>
    %cst_52 = arith.constant 0.000000e+00 : f32
    %127 = vector.broadcast %cst_52 : f32 to vector<64x30xf32>
    %128 = arith.maximumf %126, %127 : vector<64x30xf32>
    %c0_53 = arith.constant 0 : index
    %c0_54 = arith.constant 0 : index
    %129 = vector.load %arg0[%c0_53, %c0_54] : memref<48x1xi32, #tpu.memory_space<vmem>>, vector<32x1xi32>
    %c32 = arith.constant 32 : index
    %c0_55 = arith.constant 0 : index
    %130 = vector.load %arg0[%c32, %c0_55] : memref<48x1xi32, #tpu.memory_space<vmem>>, vector<4x1xi32>
    %c40 = arith.constant 40 : index
    %c0_56 = arith.constant 0 : index
    %131 = vector.load %arg0[%c40, %c0_56] : memref<48x1xi32, #tpu.memory_space<vmem>>, vector<4x1xi32>
    %132 = arith.truncf %128 : vector<64x30xf32> to vector<64x30xbf16>
    %133 = tpu.iota {dimensions = array<i32: 1>} : vector<32x64xi32>
    %134 = vector.broadcast %129 : vector<32x1xi32> to vector<32x64xi32>
    %135 = arith.cmpi eq, %134, %133 : vector<32x64xi32>
    %136 = arith.extui %135 : vector<32x64xi1> to vector<32x64xi32>
    %137 = arith.sitofp %136 : vector<32x64xi32> to vector<32x64xf32>
    %138 = arith.truncf %137 : vector<32x64xf32> to vector<32x64xbf16>
    %139 = tpu.iota {dimensions = array<i32: 1>} : vector<4x64xi32>
    %140 = vector.broadcast %130 : vector<4x1xi32> to vector<4x64xi32>
    %141 = arith.cmpi eq, %140, %139 : vector<4x64xi32>
    %142 = arith.extui %141 : vector<4x64xi1> to vector<4x64xi32>
    %143 = arith.sitofp %142 : vector<4x64xi32> to vector<4x64xf32>
    %144 = arith.truncf %143 : vector<4x64xf32> to vector<4x64xbf16>
    %cst_57 = arith.constant dense<0.000000e+00> : vector<32x30xf32>
    %145 = tpu.matmul %138, %132, %cst_57 {dimension_numbers = #tpu.dot_dimension_numbers<[1], [0], [0], [1], [0, 0, 1, 1], [], []>} : vector<32x64xbf16>, vector<64x30xbf16>, vector<32x30xf32> -> vector<32x30xf32>
    %cst_58 = arith.constant dense<0.000000e+00> : vector<4x30xf32>
    %146 = tpu.matmul %144, %132, %cst_58 {dimension_numbers = #tpu.dot_dimension_numbers<[1], [0], [0], [1], [0, 0, 1, 1], [], []>} : vector<4x64xbf16>, vector<64x30xbf16>, vector<4x30xf32> -> vector<4x30xf32>
    %147 = arith.truncf %1 : vector<64x30xf32> to vector<64x30xbf16>
    %cst_59 = arith.constant dense<0.000000e+00> : vector<4x30xf32>
    %148 = tpu.matmul %144, %147, %cst_59 {dimension_numbers = #tpu.dot_dimension_numbers<[1], [0], [0], [1], [0, 0, 1, 1], [], []>} : vector<4x64xbf16>, vector<64x30xbf16>, vector<4x30xf32> -> vector<4x30xf32>
    %149 = arith.truncf %145 : vector<32x30xf32> to vector<32x30xbf16>
    %cst_60 = arith.constant dense<0.000000e+00> : vector<32x128xf32>
    %150 = tpu.matmul %149, %12, %cst_60 {dimension_numbers = #tpu.dot_dimension_numbers<[1], [0], [0], [1], [0, 0, 1, 1], [], []>} : vector<32x30xbf16>, vector<30x128xbf16>, vector<32x128xf32> -> vector<32x128xf32>
    %151 = vector.broadcast %3 : vector<1x128xf32> to vector<32x128xf32>
    %152 = arith.addf %150, %151 : vector<32x128xf32>
    %cst_61 = arith.constant 0.000000e+00 : f32
    %153 = vector.broadcast %cst_61 : f32 to vector<4x30xf32>
    %cst_62 = arith.constant 0.000000e+00 : f32
    %154 = vector.broadcast %cst_62 : f32 to vector<4x30xf32>
    %155 = arith.truncf %153 : vector<4x30xf32> to vector<4x30xbf16>
    %cst_63 = arith.constant dense<0.000000e+00> : vector<4x128xf32>
    %156 = tpu.matmul %155, %14, %cst_63 {dimension_numbers = #tpu.dot_dimension_numbers<[1], [0], [0], [1], [0, 0, 1, 1], [], []>} : vector<4x30xbf16>, vector<30x128xbf16>, vector<4x128xf32> -> vector<4x128xf32>
    %157 = vector.extract_strided_slice %152 {offsets = [0, 0], sizes = [4, 128], strides = [1, 1]} : vector<32x128xf32> to vector<4x128xf32>
    %158 = arith.addf %157, %156 : vector<4x128xf32>
    %159 = vector.extract_strided_slice %158 {offsets = [0, 0], sizes = [4, 30], strides = [1, 1]} : vector<4x128xf32> to vector<4x30xf32>
    %160 = arith.negf %159 : vector<4x30xf32>
    %161 = math.exp %160 : vector<4x30xf32>
    %cst_64 = arith.constant 1.000000e+00 : f32
    %162 = vector.broadcast %cst_64 : f32 to vector<4x30xf32>
    %163 = arith.addf %162, %161 : vector<4x30xf32>
    %164 = arith.divf %162, %163 : vector<4x30xf32>
    %165 = vector.extract_strided_slice %158 {offsets = [0, 32], sizes = [4, 30], strides = [1, 1]} : vector<4x128xf32> to vector<4x30xf32>
    %166 = arith.negf %165 : vector<4x30xf32>
    %167 = math.exp %166 : vector<4x30xf32>
    %cst_65 = arith.constant 1.000000e+00 : f32
    %168 = vector.broadcast %cst_65 : f32 to vector<4x30xf32>
    %169 = arith.addf %168, %167 : vector<4x30xf32>
    %170 = arith.divf %168, %169 : vector<4x30xf32>
    %171 = vector.extract_strided_slice %158 {offsets = [0, 64], sizes = [4, 30], strides = [1, 1]} : vector<4x128xf32> to vector<4x30xf32>
    %172 = math.tanh %171 : vector<4x30xf32>
    %173 = vector.extract_strided_slice %158 {offsets = [0, 96], sizes = [4, 30], strides = [1, 1]} : vector<4x128xf32> to vector<4x30xf32>
    %174 = arith.negf %173 : vector<4x30xf32>
    %175 = math.exp %174 : vector<4x30xf32>
    %cst_66 = arith.constant 1.000000e+00 : f32
    %176 = vector.broadcast %cst_66 : f32 to vector<4x30xf32>
    %177 = arith.addf %176, %175 : vector<4x30xf32>
    %178 = arith.divf %176, %177 : vector<4x30xf32>
    %179 = arith.mulf %170, %154 : vector<4x30xf32>
    %180 = arith.mulf %164, %172 : vector<4x30xf32>
    %181 = arith.addf %179, %180 : vector<4x30xf32>
    %182 = math.tanh %181 : vector<4x30xf32>
    %183 = arith.mulf %178, %182 : vector<4x30xf32>
    %c0_i32 = arith.constant 0 : i32
    %184 = vector.broadcast %c0_i32 : i32 to vector<4x1xi32>
    %185 = arith.cmpi sgt, %131, %184 : vector<4x1xi32>
    %186 = vector.shape_cast %185 : vector<4x1xi1> to vector<4x1xi1>
    %187 = vector.broadcast %186 : vector<4x1xi1> to vector<4x30xi1>
    %188 = arith.select %187, %183, %153 : vector<4x30xi1>, vector<4x30xf32>
    %189 = vector.shape_cast %185 : vector<4x1xi1> to vector<4x1xi1>
    %190 = vector.broadcast %189 : vector<4x1xi1> to vector<4x30xi1>
    %191 = arith.select %190, %181, %154 : vector<4x30xi1>, vector<4x30xf32>
    %192 = arith.truncf %188 : vector<4x30xf32> to vector<4x30xbf16>
    %cst_67 = arith.constant dense<0.000000e+00> : vector<4x128xf32>
    %193 = tpu.matmul %192, %14, %cst_67 {dimension_numbers = #tpu.dot_dimension_numbers<[1], [0], [0], [1], [0, 0, 1, 1], [], []>} : vector<4x30xbf16>, vector<30x128xbf16>, vector<4x128xf32> -> vector<4x128xf32>
    %194 = vector.extract_strided_slice %152 {offsets = [4, 0], sizes = [4, 128], strides = [1, 1]} : vector<32x128xf32> to vector<4x128xf32>
    %195 = arith.addf %194, %193 : vector<4x128xf32>
    %196 = vector.extract_strided_slice %195 {offsets = [0, 0], sizes = [4, 30], strides = [1, 1]} : vector<4x128xf32> to vector<4x30xf32>
    %197 = arith.negf %196 : vector<4x30xf32>
    %198 = math.exp %197 : vector<4x30xf32>
    %cst_68 = arith.constant 1.000000e+00 : f32
    %199 = vector.broadcast %cst_68 : f32 to vector<4x30xf32>
    %200 = arith.addf %199, %198 : vector<4x30xf32>
    %201 = arith.divf %199, %200 : vector<4x30xf32>
    %202 = vector.extract_strided_slice %195 {offsets = [0, 32], sizes = [4, 30], strides = [1, 1]} : vector<4x128xf32> to vector<4x30xf32>
    %203 = arith.negf %202 : vector<4x30xf32>
    %204 = math.exp %203 : vector<4x30xf32>
    %cst_69 = arith.constant 1.000000e+00 : f32
    %205 = vector.broadcast %cst_69 : f32 to vector<4x30xf32>
    %206 = arith.addf %205, %204 : vector<4x30xf32>
    %207 = arith.divf %205, %206 : vector<4x30xf32>
    %208 = vector.extract_strided_slice %195 {offsets = [0, 64], sizes = [4, 30], strides = [1, 1]} : vector<4x128xf32> to vector<4x30xf32>
    %209 = math.tanh %208 : vector<4x30xf32>
    %210 = vector.extract_strided_slice %195 {offsets = [0, 96], sizes = [4, 30], strides = [1, 1]} : vector<4x128xf32> to vector<4x30xf32>
    %211 = arith.negf %210 : vector<4x30xf32>
    %212 = math.exp %211 : vector<4x30xf32>
    %cst_70 = arith.constant 1.000000e+00 : f32
    %213 = vector.broadcast %cst_70 : f32 to vector<4x30xf32>
    %214 = arith.addf %213, %212 : vector<4x30xf32>
    %215 = arith.divf %213, %214 : vector<4x30xf32>
    %216 = arith.mulf %207, %191 : vector<4x30xf32>
    %217 = arith.mulf %201, %209 : vector<4x30xf32>
    %218 = arith.addf %216, %217 : vector<4x30xf32>
    %219 = math.tanh %218 : vector<4x30xf32>
    %220 = arith.mulf %215, %219 : vector<4x30xf32>
    %c1_i32 = arith.constant 1 : i32
    %221 = vector.broadcast %c1_i32 : i32 to vector<4x1xi32>
    %222 = arith.cmpi sgt, %131, %221 : vector<4x1xi32>
    %223 = vector.shape_cast %222 : vector<4x1xi1> to vector<4x1xi1>
    %224 = vector.broadcast %223 : vector<4x1xi1> to vector<4x30xi1>
    %225 = arith.select %224, %220, %188 : vector<4x30xi1>, vector<4x30xf32>
    %226 = vector.shape_cast %222 : vector<4x1xi1> to vector<4x1xi1>
    %227 = vector.broadcast %226 : vector<4x1xi1> to vector<4x30xi1>
    %228 = arith.select %227, %218, %191 : vector<4x30xi1>, vector<4x30xf32>
    %229 = arith.truncf %225 : vector<4x30xf32> to vector<4x30xbf16>
    %cst_71 = arith.constant dense<0.000000e+00> : vector<4x128xf32>
    %230 = tpu.matmul %229, %14, %cst_71 {dimension_numbers = #tpu.dot_dimension_numbers<[1], [0], [0], [1], [0, 0, 1, 1], [], []>} : vector<4x30xbf16>, vector<30x128xbf16>, vector<4x128xf32> -> vector<4x128xf32>
    %231 = vector.extract_strided_slice %152 {offsets = [8, 0], sizes = [4, 128], strides = [1, 1]} : vector<32x128xf32> to vector<4x128xf32>
    %232 = arith.addf %231, %230 : vector<4x128xf32>
    %233 = vector.extract_strided_slice %232 {offsets = [0, 0], sizes = [4, 30], strides = [1, 1]} : vector<4x128xf32> to vector<4x30xf32>
    %234 = arith.negf %233 : vector<4x30xf32>
    %235 = math.exp %234 : vector<4x30xf32>
    %cst_72 = arith.constant 1.000000e+00 : f32
    %236 = vector.broadcast %cst_72 : f32 to vector<4x30xf32>
    %237 = arith.addf %236, %235 : vector<4x30xf32>
    %238 = arith.divf %236, %237 : vector<4x30xf32>
    %239 = vector.extract_strided_slice %232 {offsets = [0, 32], sizes = [4, 30], strides = [1, 1]} : vector<4x128xf32> to vector<4x30xf32>
    %240 = arith.negf %239 : vector<4x30xf32>
    %241 = math.exp %240 : vector<4x30xf32>
    %cst_73 = arith.constant 1.000000e+00 : f32
    %242 = vector.broadcast %cst_73 : f32 to vector<4x30xf32>
    %243 = arith.addf %242, %241 : vector<4x30xf32>
    %244 = arith.divf %242, %243 : vector<4x30xf32>
    %245 = vector.extract_strided_slice %232 {offsets = [0, 64], sizes = [4, 30], strides = [1, 1]} : vector<4x128xf32> to vector<4x30xf32>
    %246 = math.tanh %245 : vector<4x30xf32>
    %247 = vector.extract_strided_slice %232 {offsets = [0, 96], sizes = [4, 30], strides = [1, 1]} : vector<4x128xf32> to vector<4x30xf32>
    %248 = arith.negf %247 : vector<4x30xf32>
    %249 = math.exp %248 : vector<4x30xf32>
    %cst_74 = arith.constant 1.000000e+00 : f32
    %250 = vector.broadcast %cst_74 : f32 to vector<4x30xf32>
    %251 = arith.addf %250, %249 : vector<4x30xf32>
    %252 = arith.divf %250, %251 : vector<4x30xf32>
    %253 = arith.mulf %244, %228 : vector<4x30xf32>
    %254 = arith.mulf %238, %246 : vector<4x30xf32>
    %255 = arith.addf %253, %254 : vector<4x30xf32>
    %256 = math.tanh %255 : vector<4x30xf32>
    %257 = arith.mulf %252, %256 : vector<4x30xf32>
    %c2_i32 = arith.constant 2 : i32
    %258 = vector.broadcast %c2_i32 : i32 to vector<4x1xi32>
    %259 = arith.cmpi sgt, %131, %258 : vector<4x1xi32>
    %260 = vector.shape_cast %259 : vector<4x1xi1> to vector<4x1xi1>
    %261 = vector.broadcast %260 : vector<4x1xi1> to vector<4x30xi1>
    %262 = arith.select %261, %257, %225 : vector<4x30xi1>, vector<4x30xf32>
    %263 = vector.shape_cast %259 : vector<4x1xi1> to vector<4x1xi1>
    %264 = vector.broadcast %263 : vector<4x1xi1> to vector<4x30xi1>
    %265 = arith.select %264, %255, %228 : vector<4x30xi1>, vector<4x30xf32>
    %266 = arith.truncf %262 : vector<4x30xf32> to vector<4x30xbf16>
    %cst_75 = arith.constant dense<0.000000e+00> : vector<4x128xf32>
    %267 = tpu.matmul %266, %14, %cst_75 {dimension_numbers = #tpu.dot_dimension_numbers<[1], [0], [0], [1], [0, 0, 1, 1], [], []>} : vector<4x30xbf16>, vector<30x128xbf16>, vector<4x128xf32> -> vector<4x128xf32>
    %268 = vector.extract_strided_slice %152 {offsets = [12, 0], sizes = [4, 128], strides = [1, 1]} : vector<32x128xf32> to vector<4x128xf32>
    %269 = arith.addf %268, %267 : vector<4x128xf32>
    %270 = vector.extract_strided_slice %269 {offsets = [0, 0], sizes = [4, 30], strides = [1, 1]} : vector<4x128xf32> to vector<4x30xf32>
    %271 = arith.negf %270 : vector<4x30xf32>
    %272 = math.exp %271 : vector<4x30xf32>
    %cst_76 = arith.constant 1.000000e+00 : f32
    %273 = vector.broadcast %cst_76 : f32 to vector<4x30xf32>
    %274 = arith.addf %273, %272 : vector<4x30xf32>
    %275 = arith.divf %273, %274 : vector<4x30xf32>
    %276 = vector.extract_strided_slice %269 {offsets = [0, 32], sizes = [4, 30], strides = [1, 1]} : vector<4x128xf32> to vector<4x30xf32>
    %277 = arith.negf %276 : vector<4x30xf32>
    %278 = math.exp %277 : vector<4x30xf32>
    %cst_77 = arith.constant 1.000000e+00 : f32
    %279 = vector.broadcast %cst_77 : f32 to vector<4x30xf32>
    %280 = arith.addf %279, %278 : vector<4x30xf32>
    %281 = arith.divf %279, %280 : vector<4x30xf32>
    %282 = vector.extract_strided_slice %269 {offsets = [0, 64], sizes = [4, 30], strides = [1, 1]} : vector<4x128xf32> to vector<4x30xf32>
    %283 = math.tanh %282 : vector<4x30xf32>
    %284 = vector.extract_strided_slice %269 {offsets = [0, 96], sizes = [4, 30], strides = [1, 1]} : vector<4x128xf32> to vector<4x30xf32>
    %285 = arith.negf %284 : vector<4x30xf32>
    %286 = math.exp %285 : vector<4x30xf32>
    %cst_78 = arith.constant 1.000000e+00 : f32
    %287 = vector.broadcast %cst_78 : f32 to vector<4x30xf32>
    %288 = arith.addf %287, %286 : vector<4x30xf32>
    %289 = arith.divf %287, %288 : vector<4x30xf32>
    %290 = arith.mulf %281, %265 : vector<4x30xf32>
    %291 = arith.mulf %275, %283 : vector<4x30xf32>
    %292 = arith.addf %290, %291 : vector<4x30xf32>
    %293 = math.tanh %292 : vector<4x30xf32>
    %294 = arith.mulf %289, %293 : vector<4x30xf32>
    %c3_i32 = arith.constant 3 : i32
    %295 = vector.broadcast %c3_i32 : i32 to vector<4x1xi32>
    %296 = arith.cmpi sgt, %131, %295 : vector<4x1xi32>
    %297 = vector.shape_cast %296 : vector<4x1xi1> to vector<4x1xi1>
    %298 = vector.broadcast %297 : vector<4x1xi1> to vector<4x30xi1>
    %299 = arith.select %298, %294, %262 : vector<4x30xi1>, vector<4x30xf32>
    %300 = vector.shape_cast %296 : vector<4x1xi1> to vector<4x1xi1>
    %301 = vector.broadcast %300 : vector<4x1xi1> to vector<4x30xi1>
    %302 = arith.select %301, %292, %265 : vector<4x30xi1>, vector<4x30xf32>
    %303 = arith.truncf %299 : vector<4x30xf32> to vector<4x30xbf16>
    %cst_79 = arith.constant dense<0.000000e+00> : vector<4x128xf32>
    %304 = tpu.matmul %303, %14, %cst_79 {dimension_numbers = #tpu.dot_dimension_numbers<[1], [0], [0], [1], [0, 0, 1, 1], [], []>} : vector<4x30xbf16>, vector<30x128xbf16>, vector<4x128xf32> -> vector<4x128xf32>
    %305 = vector.extract_strided_slice %152 {offsets = [16, 0], sizes = [4, 128], strides = [1, 1]} : vector<32x128xf32> to vector<4x128xf32>
    %306 = arith.addf %305, %304 : vector<4x128xf32>
    %307 = vector.extract_strided_slice %306 {offsets = [0, 0], sizes = [4, 30], strides = [1, 1]} : vector<4x128xf32> to vector<4x30xf32>
    %308 = arith.negf %307 : vector<4x30xf32>
    %309 = math.exp %308 : vector<4x30xf32>
    %cst_80 = arith.constant 1.000000e+00 : f32
    %310 = vector.broadcast %cst_80 : f32 to vector<4x30xf32>
    %311 = arith.addf %310, %309 : vector<4x30xf32>
    %312 = arith.divf %310, %311 : vector<4x30xf32>
    %313 = vector.extract_strided_slice %306 {offsets = [0, 32], sizes = [4, 30], strides = [1, 1]} : vector<4x128xf32> to vector<4x30xf32>
    %314 = arith.negf %313 : vector<4x30xf32>
    %315 = math.exp %314 : vector<4x30xf32>
    %cst_81 = arith.constant 1.000000e+00 : f32
    %316 = vector.broadcast %cst_81 : f32 to vector<4x30xf32>
    %317 = arith.addf %316, %315 : vector<4x30xf32>
    %318 = arith.divf %316, %317 : vector<4x30xf32>
    %319 = vector.extract_strided_slice %306 {offsets = [0, 64], sizes = [4, 30], strides = [1, 1]} : vector<4x128xf32> to vector<4x30xf32>
    %320 = math.tanh %319 : vector<4x30xf32>
    %321 = vector.extract_strided_slice %306 {offsets = [0, 96], sizes = [4, 30], strides = [1, 1]} : vector<4x128xf32> to vector<4x30xf32>
    %322 = arith.negf %321 : vector<4x30xf32>
    %323 = math.exp %322 : vector<4x30xf32>
    %cst_82 = arith.constant 1.000000e+00 : f32
    %324 = vector.broadcast %cst_82 : f32 to vector<4x30xf32>
    %325 = arith.addf %324, %323 : vector<4x30xf32>
    %326 = arith.divf %324, %325 : vector<4x30xf32>
    %327 = arith.mulf %318, %302 : vector<4x30xf32>
    %328 = arith.mulf %312, %320 : vector<4x30xf32>
    %329 = arith.addf %327, %328 : vector<4x30xf32>
    %330 = math.tanh %329 : vector<4x30xf32>
    %331 = arith.mulf %326, %330 : vector<4x30xf32>
    %c4_i32 = arith.constant 4 : i32
    %332 = vector.broadcast %c4_i32 : i32 to vector<4x1xi32>
    %333 = arith.cmpi sgt, %131, %332 : vector<4x1xi32>
    %334 = vector.shape_cast %333 : vector<4x1xi1> to vector<4x1xi1>
    %335 = vector.broadcast %334 : vector<4x1xi1> to vector<4x30xi1>
    %336 = arith.select %335, %331, %299 : vector<4x30xi1>, vector<4x30xf32>
    %337 = vector.shape_cast %333 : vector<4x1xi1> to vector<4x1xi1>
    %338 = vector.broadcast %337 : vector<4x1xi1> to vector<4x30xi1>
    %339 = arith.select %338, %329, %302 : vector<4x30xi1>, vector<4x30xf32>
    %340 = arith.truncf %336 : vector<4x30xf32> to vector<4x30xbf16>
    %cst_83 = arith.constant dense<0.000000e+00> : vector<4x128xf32>
    %341 = tpu.matmul %340, %14, %cst_83 {dimension_numbers = #tpu.dot_dimension_numbers<[1], [0], [0], [1], [0, 0, 1, 1], [], []>} : vector<4x30xbf16>, vector<30x128xbf16>, vector<4x128xf32> -> vector<4x128xf32>
    %342 = vector.extract_strided_slice %152 {offsets = [20, 0], sizes = [4, 128], strides = [1, 1]} : vector<32x128xf32> to vector<4x128xf32>
    %343 = arith.addf %342, %341 : vector<4x128xf32>
    %344 = vector.extract_strided_slice %343 {offsets = [0, 0], sizes = [4, 30], strides = [1, 1]} : vector<4x128xf32> to vector<4x30xf32>
    %345 = arith.negf %344 : vector<4x30xf32>
    %346 = math.exp %345 : vector<4x30xf32>
    %cst_84 = arith.constant 1.000000e+00 : f32
    %347 = vector.broadcast %cst_84 : f32 to vector<4x30xf32>
    %348 = arith.addf %347, %346 : vector<4x30xf32>
    %349 = arith.divf %347, %348 : vector<4x30xf32>
    %350 = vector.extract_strided_slice %343 {offsets = [0, 32], sizes = [4, 30], strides = [1, 1]} : vector<4x128xf32> to vector<4x30xf32>
    %351 = arith.negf %350 : vector<4x30xf32>
    %352 = math.exp %351 : vector<4x30xf32>
    %cst_85 = arith.constant 1.000000e+00 : f32
    %353 = vector.broadcast %cst_85 : f32 to vector<4x30xf32>
    %354 = arith.addf %353, %352 : vector<4x30xf32>
    %355 = arith.divf %353, %354 : vector<4x30xf32>
    %356 = vector.extract_strided_slice %343 {offsets = [0, 64], sizes = [4, 30], strides = [1, 1]} : vector<4x128xf32> to vector<4x30xf32>
    %357 = math.tanh %356 : vector<4x30xf32>
    %358 = vector.extract_strided_slice %343 {offsets = [0, 96], sizes = [4, 30], strides = [1, 1]} : vector<4x128xf32> to vector<4x30xf32>
    %359 = arith.negf %358 : vector<4x30xf32>
    %360 = math.exp %359 : vector<4x30xf32>
    %cst_86 = arith.constant 1.000000e+00 : f32
    %361 = vector.broadcast %cst_86 : f32 to vector<4x30xf32>
    %362 = arith.addf %361, %360 : vector<4x30xf32>
    %363 = arith.divf %361, %362 : vector<4x30xf32>
    %364 = arith.mulf %355, %339 : vector<4x30xf32>
    %365 = arith.mulf %349, %357 : vector<4x30xf32>
    %366 = arith.addf %364, %365 : vector<4x30xf32>
    %367 = math.tanh %366 : vector<4x30xf32>
    %368 = arith.mulf %363, %367 : vector<4x30xf32>
    %c5_i32 = arith.constant 5 : i32
    %369 = vector.broadcast %c5_i32 : i32 to vector<4x1xi32>
    %370 = arith.cmpi sgt, %131, %369 : vector<4x1xi32>
    %371 = vector.shape_cast %370 : vector<4x1xi1> to vector<4x1xi1>
    %372 = vector.broadcast %371 : vector<4x1xi1> to vector<4x30xi1>
    %373 = arith.select %372, %368, %336 : vector<4x30xi1>, vector<4x30xf32>
    %374 = vector.shape_cast %370 : vector<4x1xi1> to vector<4x1xi1>
    %375 = vector.broadcast %374 : vector<4x1xi1> to vector<4x30xi1>
    %376 = arith.select %375, %366, %339 : vector<4x30xi1>, vector<4x30xf32>
    %377 = arith.truncf %373 : vector<4x30xf32> to vector<4x30xbf16>
    %cst_87 = arith.constant dense<0.000000e+00> : vector<4x128xf32>
    %378 = tpu.matmul %377, %14, %cst_87 {dimension_numbers = #tpu.dot_dimension_numbers<[1], [0], [0], [1], [0, 0, 1, 1], [], []>} : vector<4x30xbf16>, vector<30x128xbf16>, vector<4x128xf32> -> vector<4x128xf32>
    %379 = vector.extract_strided_slice %152 {offsets = [24, 0], sizes = [4, 128], strides = [1, 1]} : vector<32x128xf32> to vector<4x128xf32>
    %380 = arith.addf %379, %378 : vector<4x128xf32>
    %381 = vector.extract_strided_slice %380 {offsets = [0, 0], sizes = [4, 30], strides = [1, 1]} : vector<4x128xf32> to vector<4x30xf32>
    %382 = arith.negf %381 : vector<4x30xf32>
    %383 = math.exp %382 : vector<4x30xf32>
    %cst_88 = arith.constant 1.000000e+00 : f32
    %384 = vector.broadcast %cst_88 : f32 to vector<4x30xf32>
    %385 = arith.addf %384, %383 : vector<4x30xf32>
    %386 = arith.divf %384, %385 : vector<4x30xf32>
    %387 = vector.extract_strided_slice %380 {offsets = [0, 32], sizes = [4, 30], strides = [1, 1]} : vector<4x128xf32> to vector<4x30xf32>
    %388 = arith.negf %387 : vector<4x30xf32>
    %389 = math.exp %388 : vector<4x30xf32>
    %cst_89 = arith.constant 1.000000e+00 : f32
    %390 = vector.broadcast %cst_89 : f32 to vector<4x30xf32>
    %391 = arith.addf %390, %389 : vector<4x30xf32>
    %392 = arith.divf %390, %391 : vector<4x30xf32>
    %393 = vector.extract_strided_slice %380 {offsets = [0, 64], sizes = [4, 30], strides = [1, 1]} : vector<4x128xf32> to vector<4x30xf32>
    %394 = math.tanh %393 : vector<4x30xf32>
    %395 = vector.extract_strided_slice %380 {offsets = [0, 96], sizes = [4, 30], strides = [1, 1]} : vector<4x128xf32> to vector<4x30xf32>
    %396 = arith.negf %395 : vector<4x30xf32>
    %397 = math.exp %396 : vector<4x30xf32>
    %cst_90 = arith.constant 1.000000e+00 : f32
    %398 = vector.broadcast %cst_90 : f32 to vector<4x30xf32>
    %399 = arith.addf %398, %397 : vector<4x30xf32>
    %400 = arith.divf %398, %399 : vector<4x30xf32>
    %401 = arith.mulf %392, %376 : vector<4x30xf32>
    %402 = arith.mulf %386, %394 : vector<4x30xf32>
    %403 = arith.addf %401, %402 : vector<4x30xf32>
    %404 = math.tanh %403 : vector<4x30xf32>
    %405 = arith.mulf %400, %404 : vector<4x30xf32>
    %c6_i32 = arith.constant 6 : i32
    %406 = vector.broadcast %c6_i32 : i32 to vector<4x1xi32>
    %407 = arith.cmpi sgt, %131, %406 : vector<4x1xi32>
    %408 = vector.shape_cast %407 : vector<4x1xi1> to vector<4x1xi1>
    %409 = vector.broadcast %408 : vector<4x1xi1> to vector<4x30xi1>
    %410 = arith.select %409, %405, %373 : vector<4x30xi1>, vector<4x30xf32>
    %411 = vector.shape_cast %407 : vector<4x1xi1> to vector<4x1xi1>
    %412 = vector.broadcast %411 : vector<4x1xi1> to vector<4x30xi1>
    %413 = arith.select %412, %403, %376 : vector<4x30xi1>, vector<4x30xf32>
    %414 = arith.truncf %410 : vector<4x30xf32> to vector<4x30xbf16>
    %cst_91 = arith.constant dense<0.000000e+00> : vector<4x128xf32>
    %415 = tpu.matmul %414, %14, %cst_91 {dimension_numbers = #tpu.dot_dimension_numbers<[1], [0], [0], [1], [0, 0, 1, 1], [], []>} : vector<4x30xbf16>, vector<30x128xbf16>, vector<4x128xf32> -> vector<4x128xf32>
    %416 = vector.extract_strided_slice %152 {offsets = [28, 0], sizes = [4, 128], strides = [1, 1]} : vector<32x128xf32> to vector<4x128xf32>
    %417 = arith.addf %416, %415 : vector<4x128xf32>
    %418 = vector.extract_strided_slice %417 {offsets = [0, 0], sizes = [4, 30], strides = [1, 1]} : vector<4x128xf32> to vector<4x30xf32>
    %419 = arith.negf %418 : vector<4x30xf32>
    %420 = math.exp %419 : vector<4x30xf32>
    %cst_92 = arith.constant 1.000000e+00 : f32
    %421 = vector.broadcast %cst_92 : f32 to vector<4x30xf32>
    %422 = arith.addf %421, %420 : vector<4x30xf32>
    %423 = arith.divf %421, %422 : vector<4x30xf32>
    %424 = vector.extract_strided_slice %417 {offsets = [0, 32], sizes = [4, 30], strides = [1, 1]} : vector<4x128xf32> to vector<4x30xf32>
    %425 = arith.negf %424 : vector<4x30xf32>
    %426 = math.exp %425 : vector<4x30xf32>
    %cst_93 = arith.constant 1.000000e+00 : f32
    %427 = vector.broadcast %cst_93 : f32 to vector<4x30xf32>
    %428 = arith.addf %427, %426 : vector<4x30xf32>
    %429 = arith.divf %427, %428 : vector<4x30xf32>
    %430 = vector.extract_strided_slice %417 {offsets = [0, 64], sizes = [4, 30], strides = [1, 1]} : vector<4x128xf32> to vector<4x30xf32>
    %431 = math.tanh %430 : vector<4x30xf32>
    %432 = vector.extract_strided_slice %417 {offsets = [0, 96], sizes = [4, 30], strides = [1, 1]} : vector<4x128xf32> to vector<4x30xf32>
    %433 = arith.negf %432 : vector<4x30xf32>
    %434 = math.exp %433 : vector<4x30xf32>
    %cst_94 = arith.constant 1.000000e+00 : f32
    %435 = vector.broadcast %cst_94 : f32 to vector<4x30xf32>
    %436 = arith.addf %435, %434 : vector<4x30xf32>
    %437 = arith.divf %435, %436 : vector<4x30xf32>
    %438 = arith.mulf %429, %413 : vector<4x30xf32>
    %439 = arith.mulf %423, %431 : vector<4x30xf32>
    %440 = arith.addf %438, %439 : vector<4x30xf32>
    %441 = math.tanh %440 : vector<4x30xf32>
    %442 = arith.mulf %437, %441 : vector<4x30xf32>
    %c7_i32 = arith.constant 7 : i32
    %443 = vector.broadcast %c7_i32 : i32 to vector<4x1xi32>
    %444 = arith.cmpi sgt, %131, %443 : vector<4x1xi32>
    %445 = vector.shape_cast %444 : vector<4x1xi1> to vector<4x1xi1>
    %446 = vector.broadcast %445 : vector<4x1xi1> to vector<4x30xi1>
    %447 = arith.select %446, %442, %410 : vector<4x30xi1>, vector<4x30xf32>
    %448 = arith.truncf %447 : vector<4x30xf32> to vector<4x30xbf16>
    %449 = vector.extract_strided_slice %16 {offsets = [0, 0], sizes = [30, 30], strides = [1, 1]} : vector<30x128xbf16> to vector<30x30xbf16>
    %cst_95 = arith.constant dense<0.000000e+00> : vector<4x30xf32>
    %450 = tpu.matmul %448, %449, %cst_95 {dimension_numbers = #tpu.dot_dimension_numbers<[1], [0], [0], [1], [0, 0, 1, 1], [], []>} : vector<4x30xbf16>, vector<30x30xbf16>, vector<4x30xf32> -> vector<4x30xf32>
    %451 = arith.truncf %146 : vector<4x30xf32> to vector<4x30xbf16>
    %452 = vector.extract_strided_slice %16 {offsets = [0, 32], sizes = [30, 30], strides = [1, 1]} : vector<30x128xbf16> to vector<30x30xbf16>
    %cst_96 = arith.constant dense<0.000000e+00> : vector<4x30xf32>
    %453 = tpu.matmul %451, %452, %cst_96 {dimension_numbers = #tpu.dot_dimension_numbers<[1], [0], [0], [1], [0, 0, 1, 1], [], []>} : vector<4x30xbf16>, vector<30x30xbf16>, vector<4x30xf32> -> vector<4x30xf32>
    %454 = arith.addf %450, %453 : vector<4x30xf32>
    %455 = vector.broadcast %4 : vector<1x30xf32> to vector<4x30xf32>
    %456 = arith.addf %454, %455 : vector<4x30xf32>
    %cst_97 = arith.constant 0.000000e+00 : f32
    %457 = vector.broadcast %cst_97 : f32 to vector<4x30xf32>
    %458 = arith.maximumf %456, %457 : vector<4x30xf32>
    %459 = arith.truncf %458 : vector<4x30xf32> to vector<4x30xbf16>
    %460 = vector.extract_strided_slice %18 {offsets = [0, 0], sizes = [30, 30], strides = [1, 1]} : vector<30x128xbf16> to vector<30x30xbf16>
    %cst_98 = arith.constant dense<0.000000e+00> : vector<4x30xf32>
    %461 = tpu.matmul %459, %460, %cst_98 {dimension_numbers = #tpu.dot_dimension_numbers<[1], [0], [0], [1], [0, 0, 1, 1], [], []>} : vector<4x30xbf16>, vector<30x30xbf16>, vector<4x30xf32> -> vector<4x30xf32>
    %462 = arith.truncf %148 : vector<4x30xf32> to vector<4x30xbf16>
    %463 = vector.extract_strided_slice %18 {offsets = [0, 32], sizes = [30, 30], strides = [1, 1]} : vector<30x128xbf16> to vector<30x30xbf16>
    %cst_99 = arith.constant dense<0.000000e+00> : vector<4x30xf32>
    %464 = tpu.matmul %462, %463, %cst_99 {dimension_numbers = #tpu.dot_dimension_numbers<[1], [0], [0], [1], [0, 0, 1, 1], [], []>} : vector<4x30xbf16>, vector<30x30xbf16>, vector<4x30xf32> -> vector<4x30xf32>
    %465 = arith.addf %461, %464 : vector<4x30xf32>
    %466 = vector.broadcast %5 : vector<1x30xf32> to vector<4x30xf32>
    %467 = arith.addf %465, %466 : vector<4x30xf32>
    %cst_100 = arith.constant 0.000000e+00 : f32
    %468 = vector.broadcast %cst_100 : f32 to vector<4x30xf32>
    %469 = arith.maximumf %467, %468 : vector<4x30xf32>
    %470 = arith.truncf %469 : vector<4x30xf32> to vector<4x30xbf16>
    %471 = vector.extract_strided_slice %18 {offsets = [0, 64], sizes = [30, 5], strides = [1, 1]} : vector<30x128xbf16> to vector<30x5xbf16>
    %cst_101 = arith.constant dense<0.000000e+00> : vector<4x5xf32>
    %472 = tpu.matmul %470, %471, %cst_101 {dimension_numbers = #tpu.dot_dimension_numbers<[1], [0], [0], [1], [0, 0, 1, 1], [], []>} : vector<4x30xbf16>, vector<30x5xbf16>, vector<4x5xf32> -> vector<4x5xf32>
    %473 = vector.broadcast %6 : vector<1x5xf32> to vector<4x5xf32>
    %474 = arith.addf %472, %473 : vector<4x5xf32>
    %cst_102 = arith.constant dense<0xFF800000> : vector<4xf32>
    %475 = vector.multi_reduction <maximumf>, %474, %cst_102 [1] : vector<4x5xf32> to vector<4xf32>
    %476 = vector.shape_cast %475 : vector<4xf32> to vector<4x1xf32>
    %477 = vector.broadcast %476 : vector<4x1xf32> to vector<4x5xf32>
    %478 = arith.subf %474, %477 : vector<4x5xf32>
    %479 = math.exp %478 : vector<4x5xf32>
    %cst_103 = arith.constant dense<0.000000e+00> : vector<4xf32>
    %480 = vector.multi_reduction <add>, %479, %cst_103 [1] : vector<4x5xf32> to vector<4xf32>
    %481 = vector.shape_cast %480 : vector<4xf32> to vector<4x1xf32>
    %482 = math.log %481 : vector<4x1xf32>
    %483 = vector.broadcast %482 : vector<4x1xf32> to vector<4x5xf32>
    %484 = arith.subf %478, %483 : vector<4x5xf32>
    %c0_104 = arith.constant 0 : index
    %c0_105 = arith.constant 0 : index
    %485 = vector.load %arg4[%c0_104, %c0_105] : memref<4x5xf32, #tpu.memory_space<vmem>>, vector<4x5xf32>
    tpu.vector_store %arg4[%c0_104, %c0_105], %484 {strides = array<i32>} : memref<4x5xf32, #tpu.memory_space<vmem>>, vector<4x5xf32>,
    return
  }
}

</mosaic_0001>

<llo_original>
// kernel: net_forward.1
$region0: #{net_forward.1}
  #allocation0 [shape = 'u32[]', space=smem, size = 0x4, offset = 0x4, fixed_abs, tag = 'smem constant byte address 0x4 - core index']
  #allocation1 [shape = 'u32[72,128]{1,0:T(1,128)}', space=vmem, size = 0x9000, scoped, tag = 'internal scratch']
  %s0 = inlined_call_operand.vmem [shape: s32[48,1], index: 0, kind: input, shape index: {}]
  %s1 = inlined_call_operand.vmem [shape: bf16[64,64], index: 1, kind: input, shape index: {}]
  %s2 = inlined_call_operand.hbm [shape: bf16[9,30,128], index: 2, kind: input, shape index: {}]
  %s3 = inlined_call_operand.vmem [shape: f32[72,128], index: 3, kind: input, shape index: {}]
  %s4 = inlined_call_operand.hbm [shape: f32[4,5], index: 4, kind: output, shape index: {}]
  %s5 = sld [smem:[#allocation0]]
  $region30: #{net_forward.1} parent=0
    _
  %s7 = ssub.s32 1, %s5
  %s8 = scalar_select 0, %s7, %s5
  $region1: #{net_forward.1} parent=0
    #allocation2 [shape = 'u8[73728]{0}', space=vmem, size = 0x12000, scoped, tag = 'input window, operand 2, single buffered']
    #allocation3 [shape = 's32[1]{0}', space=sflag, size = 0x4, scoped, tag = 'scoped memory for net_forward.1']
    #allocation4 [shape = 's32[1]{0}', space=sflag, size = 0x4, scoped, tag = 'scoped memory for net_forward.1']
    #allocation5 [shape = 'u8[2048]{0}', space=vmem, size = 0x800, scoped, tag = 'output window, operand 0, single buffered']
    %9 = vsyncpa [#allocation3], 0
    %10 = vsyncpa [#allocation4], 0
    // Predicated region
    $region2: #{net_forward.1} parent=1 // pred_check
      _
    $region3: #{net_forward.1} parent=1 // pred_check_branch
      %12 = sbr.rel (0) target = $region5
    $region4: #{net_forward.1} parent=1 // pred_region
      _
    $region5: #{net_forward.1} parent=1 // pred_fallthru
      _
    // Predicated region
    $region6: #{net_forward.1} parent=1 // pred_check
      _
    $region7: #{net_forward.1} parent=1 // pred_check_branch
      %14 = sbr.rel (0) target = $region9
    $region8: #{net_forward.1} parent=1 // pred_region
      _
    $region9: #{net_forward.1} parent=1 // pred_fallthru
      _
    // Predicated region
    $region10: #{net_forward.1} parent=1 // pred_check
      _
    $region11: #{net_forward.1} parent=1 // pred_check_branch
      %16 = sbr.rel (0) target = $region13
    $region12: #{net_forward.1} parent=1 // pred_region
      %18 = vsyncadd [#allocation3], 0
      %s19 = sshll.u32 %s2, 4
      %s20 = int_to_ptr.hbm [resolvable:$true] %s19
      %s21 = sshll.u32 [#allocation2], 4
      %s22 = int_to_ptr.vmem [resolvable:$true] %s21
      %27 = dma.hbm_to_vmem [thread:$0]  %s20, 2304, %s22, [#allocation3], 64, 64, 4
    $region13: #{net_forward.1} parent=1 // pred_fallthru
      _
    // Predicated region
    $region14: #{net_forward.1} parent=1 // pred_check
      _
    $region15: #{net_forward.1} parent=1 // pred_check_branch
      %29 = sbr.rel (0) target = $region17
    $region16: #{net_forward.1} parent=1 // pred_region
      _
    $region17: #{net_forward.1} parent=1 // pred_fallthru
      _
    // Predicated region
    $region18: #{net_forward.1} parent=1 // pred_check
      _
    $region19: #{net_forward.1} parent=1 // pred_check_branch
      %31 = sbr.rel (0) target = $region21
    $region20: #{net_forward.1} parent=1 // pred_region
      %33 = dma.done [#allocation3], 2304
    $region21: #{net_forward.1} parent=1 // pred_fallthru
      _
    %v35 = vld [vmem:[%s1] sm:$0xf]
    %v36 = vld [vmem:[%s1 + $0x4] sm:$0xf]
    %v37 = vld [vmem:[%s1 + $0x8] sm:$0xf]
    %v38 = vld [vmem:[%s1 + $0xc] sm:$0xf]
    %v39 = vld [vmem:[%s1 + $0x10] sm:$0xf]
    %v40 = vld [vmem:[%s1 + $0x14] sm:$0xf]
    %v41 = vld [vmem:[%s1 + $0x18] sm:$0xf]
    %v42 = vld [vmem:[%s1 + $0x1c] sm:$0xf]
    %v43 = vld [vmem:[%s3 + $0x8] sm:$0xff]
    %v44 = vld [vmem:[%s3 + $0x10] sm:$0xff]
    %v45 = vld [vmem:[%s3 + $0x18] sm:$0xff]
    %v46 = vld [vmem:[%s3 + $0x20] sm:$0xff]
    %v47 = vld [vmem:[%s3 + $0x28] sm:$0xff]
    %v48 = vld [vmem:[%s3 + $0x30] sm:$0xff]
    %v49 = vld [vmem:[%s3 + $0x38] sm:$0xff]
    %v50 = vld [vmem:[%s3 + $0x40] sm:$0xff]
    %v51 = vld [vmem:[%s3] sm:$0x1]
    %v52 = vld [vmem:[%s3 + $0x1] sm:$0x1]
    %v53 = vld [vmem:[%s3 + $0x2] sm:$0x1]
    %v54 = vld [vmem:[%s3 + $0x3] sm:$0x1]
    %v55 = vld [vmem:[%s3 + $0x4] sm:$0x1]
    %s56 = scalar_lea.vmem [#allocation2], 48
    %v57 = vld [vmem:[%s56] sm:$0xf]
    %v58 = vld [vmem:[%s56 + $0x4] sm:$0xf]
    %v59 = vld [vmem:[%s56 + $0x8] sm:$0xf]
    %v60 = vld [vmem:[%s56 + $0xc] sm:$0x7]
    %s61 = scalar_lea.vmem [#allocation2], 64
    %v62 = vld [vmem:[%s61] sm:$0xf]
    %v63 = vld [vmem:[%s61 + $0x4] sm:$0xf]
    %v64 = vld [vmem:[%s61 + $0x8] sm:$0xf]
    %v65 = vld [vmem:[%s61 + $0xc] sm:$0x7]
    %s66 = scalar_lea.vmem [#allocation2], 80
    %v67 = vld [vmem:[%s66] sm:$0xf]
    %v68 = vld [vmem:[%s66 + $0x4] sm:$0xf]
    %v69 = vld [vmem:[%s66 + $0x8] sm:$0xf]
    %v70 = vld [vmem:[%s66 + $0xc] sm:$0x7]
    %s71 = scalar_lea.vmem [#allocation2], 96
    %v72 = vld [vmem:[%s71] sm:$0xf]
    %v73 = vld [vmem:[%s71 + $0x4] sm:$0xf]
    %v74 = vld [vmem:[%s71 + $0x8] sm:$0xf]
    %v75 = vld [vmem:[%s71 + $0xc] sm:$0x7]
    %s76 = scalar_lea.vmem [#allocation2], 112
    %v77 = vld [vmem:[%s76] sm:$0xf]
    %v78 = vld [vmem:[%s76 + $0x4] sm:$0xf]
    %v79 = vld [vmem:[%s76 + $0x8] sm:$0xf]
    %v80 = vld [vmem:[%s76 + $0xc] sm:$0x7]
    %s81 = scalar_lea.vmem [#allocation2], 128
    %v82 = vld [vmem:[%s81] sm:$0xf]
    %v83 = vld [vmem:[%s81 + $0x4] sm:$0xf]
    %v84 = vld [vmem:[%s81 + $0x8] sm:$0xf]
    %v85 = vld [vmem:[%s81 + $0xc] sm:$0x7]
    %v86 = vpack.c.bf16 %v44, %v43
    %v87 = vpack.c.bf16 %v46, %v45
    %v88 = vpack.c.bf16 %v48, %v47
    %v89 = vpack.c.bf16 %v50, %v49
    %v90 = vld [vmem:[#allocation2] sm:$0xf]
    %v91 = vld [vmem:[#allocation2 + $0x4] sm:$0xf]
    %v92 = vld [vmem:[#allocation2 + $0x8] sm:$0xf]
    %v93 = vld [vmem:[#allocation2 + $0xc] sm:$0x7]
    %v98 = vunpack.c.l.b16 %v90
    %v99 = vunpack.c.l.b16 %v91
    %v100 = vunpack.c.l.b16 %v92
    %v101 = vunpack.c.l.b16 %v93
    %v102 = vpack.c.b16 %v99, %v98
    %v103 = vpack.c.b16 %v101, %v100
    %vm105 = vcmask 244736
    %v107 = vsel %vm105, %v86, 0
    %v110 = vsel %vm105, %v87, 0
    %v113 = vsel %vm105, %v88, 0
    %v116 = vsel %vm105, %v89, 0
    %vm118 = vcmask 1046528
    %v120 = vsel %vm118, %v103, 0
    %122 = vmatpush.bf16.msra.mxu0 0
    %123 = vmatpush.bf16.msra.mxu0 0
    %124 = vmatpush.bf16.msra.mxu0 0
    %125 = vmatpush.bf16.msra.mxu0 0
    %126 = vmatpush.bf16.msra.mxu0 0
    %127 = vmatpush.bf16.msra.mxu0 0
    %128 = vmatpush.bf16.msra.mxu0 %v120
    %129 = vmatpush.bf16.msra.mxu0 %v102
    %130 = vmatmul.bf16.gmra.mxu0 %v107
    %v131 = vpop.f32.mrf.mxu0
    %v132 = vadd.f32 0.0, %v131
    %v133 = vpop.f32.mrf.mxu0
    %v134 = vadd.f32 0.0, %v133
    %135 = vmatmul.bf16.gmra.mxu0 %v110
    %v136 = vpop.f32.mrf.mxu0
    %v137 = vadd.f32 0.0, %v136
    %v138 = vpop.f32.mrf.mxu0
    %v139 = vadd.f32 0.0, %v138
    %140 = vmatmul.bf16.gmra.mxu0 %v113
    %v141 = vpop.f32.mrf.mxu0
    %v142 = vadd.f32 0.0, %v141
    %v143 = vpop.f32.mrf.mxu0
    %v144 = vadd.f32 0.0, %v143
    %145 = vmatmul.bf16.gmra.mxu0 %v116
    %v146 = vpop.f32.mrf.mxu0
    %v147 = vadd.f32 0.0, %v146
    %v148 = vpop.f32.mrf.mxu0
    %v149 = vadd.f32 0.0, %v148
    %150 = vdwg.mxu0
    %v151 = vpack.c.bf16 %v134, %v132
    %v152 = vpack.c.bf16 %v139, %v137
    %v153 = vpack.c.bf16 %v144, %v142
    %v154 = vpack.c.bf16 %v149, %v147
    %v163 = vunpack.c.l.b16 %v35
    %v164 = vunpack.c.l.b16 %v36
    %v165 = vunpack.c.l.b16 %v37
    %v166 = vunpack.c.l.b16 %v38
    %v167 = vunpack.c.l.b16 %v39
    %v168 = vunpack.c.l.b16 %v40
    %v169 = vunpack.c.l.b16 %v41
    %v170 = vunpack.c.l.b16 %v42
    %v171 = vpack.c.b16 %v164, %v163
    %v172 = vpack.c.b16 %v166, %v165
    %v173 = vpack.c.b16 %v168, %v167
    %v174 = vpack.c.b16 %v170, %v169
    %vm175 = vcmask 523264
    %v177 = vsel %vm175, %v171, 0
    %v180 = vsel %vm175, %v172, 0
    %v183 = vsel %vm175, %v173, 0
    %v186 = vsel %vm175, %v174, 0
    %188 = vmatpush.bf16.msra.mxu0 0
    %189 = vmatpush.bf16.msra.mxu0 0
    %190 = vmatpush.bf16.msra.mxu0 0
    %191 = vmatpush.bf16.msra.mxu0 0
    %192 = vmatpush.bf16.msra.mxu0 %v154
    %193 = vmatpush.bf16.msra.mxu0 %v153
    %194 = vmatpush.bf16.msra.mxu0 %v152
    %195 = vmatpush.bf16.msra.mxu0 %v151
    %196 = vmatmul.bf16.gmra.mxu0 %v177
    %v197 = vpop.f32.mrf.mxu0
    %v198 = vadd.f32 0.0, %v197
    %v199 = vpop.f32.mrf.mxu0
    %v200 = vadd.f32 0.0, %v199
    %201 = vmatmul.bf16.gmra.mxu0 %v180
    %v202 = vpop.f32.mrf.mxu0
    %v203 = vadd.f32 0.0, %v202
    %v204 = vpop.f32.mrf.mxu0
    %v205 = vadd.f32 0.0, %v204
    %206 = vmatmul.bf16.gmra.mxu0 %v183
    %v207 = vpop.f32.mrf.mxu0
    %v208 = vadd.f32 0.0, %v207
    %v209 = vpop.f32.mrf.mxu0
    %v210 = vadd.f32 0.0, %v209
    %211 = vmatmul.bf16.gmra.mxu0 %v186
    %v212 = vpop.f32.mrf.mxu0
    %v213 = vadd.f32 0.0, %v212
    %v214 = vpop.f32.mrf.mxu0
    %v215 = vadd.f32 0.0, %v214
    %216 = vdwg.mxu0
    %v217 = vpack.c.bf16 %v200, %v198
    %v218 = vpack.c.bf16 %v205, %v203
    %v219 = vpack.c.bf16 %v210, %v208
    %v220 = vpack.c.bf16 %v215, %v213
    %v225 = vunpack.c.l.b16 %v62
    %v226 = vunpack.c.l.b16 %v63
    %v227 = vunpack.c.l.b16 %v64
    %v228 = vunpack.c.l.b16 %v65
    %v229 = vpack.c.b16 %v226, %v225
    %v230 = vpack.c.b16 %v228, %v227
    %v233 = vsel %vm118, %v230, 0
    %235 = vmatpush.bf16.msra.mxu0 0
    %236 = vmatpush.bf16.msra.mxu0 0
    %237 = vmatpush.bf16.msra.mxu0 0
    %238 = vmatpush.bf16.msra.mxu0 0
    %239 = vmatpush.bf16.msra.mxu0 0
    %240 = vmatpush.bf16.msra.mxu0 0
    %241 = vmatpush.bf16.msra.mxu0 %v233
    %242 = vmatpush.bf16.msra.mxu0 %v229
    %243 = vmatmul.bf16.gmra.mxu0 %v107
    %v244 = vpop.f32.mrf.mxu0
    %v245 = vadd.f32 0.0, %v244
    %v246 = vpop.f32.mrf.mxu0
    %v247 = vadd.f32 0.0, %v246
    %248 = vmatmul.bf16.gmra.mxu0 %v110
    %v249 = vpop.f32.mrf.mxu0
    %v250 = vadd.f32 0.0, %v249
    %v251 = vpop.f32.mrf.mxu0
    %v252 = vadd.f32 0.0, %v251
    %253 = vmatmul.bf16.gmra.mxu0 %v113
    %v254 = vpop.f32.mrf.mxu0
    %v255 = vadd.f32 0.0, %v254
    %v256 = vpop.f32.mrf.mxu0
    %v257 = vadd.f32 0.0, %v256
    %258 = vmatmul.bf16.gmra.mxu0 %v116
    %v259 = vpop.f32.mrf.mxu0
    %v260 = vadd.f32 0.0, %v259
    %v261 = vpop.f32.mrf.mxu0
    %v262 = vadd.f32 0.0, %v261
    %263 = vdwg.mxu0
    %v268 = vunpack.c.l.b16 %v57
    %v269 = vunpack.c.l.b16 %v58
    %v270 = vunpack.c.l.b16 %v59
    %v271 = vunpack.c.l.b16 %v60
    %v272 = vpack.c.b16 %v269, %v268
    %v273 = vpack.c.b16 %v271, %v270
    %v276 = vsel %vm105, %v217, 0
    %v279 = vsel %vm105, %v218, 0
    %v282 = vsel %vm105, %v219, 0
    %v285 = vsel %vm105, %v220, 0
    %v288 = vsel %vm118, %v273, 0
    %290 = vmatpush.bf16.msra.mxu0 0
    %291 = vmatpush.bf16.msra.mxu0 0
    %292 = vmatpush.bf16.msra.mxu0 0
    %293 = vmatpush.bf16.msra.mxu0 0
    %294 = vmatpush.bf16.msra.mxu0 0
    %295 = vmatpush.bf16.msra.mxu0 0
    %296 = vmatpush.bf16.msra.mxu0 %v288
    %297 = vmatpush.bf16.msra.mxu0 %v272
    %298 = vmatmul.bf16.gmra.mxu0 %v276
    %v299 = vpop.f32.mrf.mxu0
    %v300 = vadd.f32 %v245, %v299
    %v301 = vpop.f32.mrf.mxu0
    %v302 = vadd.f32 %v247, %v301
    %303 = vmatmul.bf16.gmra.mxu0 %v279
    %v304 = vpop.f32.mrf.mxu0
    %v305 = vadd.f32 %v250, %v304
    %v306 = vpop.f32.mrf.mxu0
    %v307 = vadd.f32 %v252, %v306
    %308 = vmatmul.bf16.gmra.mxu0 %v282
    %v309 = vpop.f32.mrf.mxu0
    %v310 = vadd.f32 %v255, %v309
    %v311 = vpop.f32.mrf.mxu0
    %v312 = vadd.f32 %v257, %v311
    %313 = vmatmul.bf16.gmra.mxu0 %v285
    %v314 = vpop.f32.mrf.mxu0
    %v315 = vadd.f32 %v260, %v314
    %v316 = vpop.f32.mrf.mxu0
    %v317 = vadd.f32 %v262, %v316
    %318 = vdwg.mxu0
    %v319 = vperm.slane %v51, 0
    %v320 = vadd.f32 %v300, %v319
    %v321 = vadd.f32 %v302, %v319
    %v322 = vadd.f32 %v305, %v319
    %v323 = vadd.f32 %v307, %v319
    %v324 = vadd.f32 %v310, %v319
    %v325 = vadd.f32 %v312, %v319
    %v326 = vadd.f32 %v315, %v319
    %v327 = vadd.f32 %v317, %v319
    %v328 = vxor.u32 %v320, 2147483648
    %v329 = vxor.u32 %v321, 2147483648
    %v330 = vxor.u32 %v322, 2147483648
    %v331 = vxor.u32 %v323, 2147483648
    %v332 = vxor.u32 %v324, 2147483648
    %v333 = vxor.u32 %v325, 2147483648
    %v334 = vxor.u32 %v326, 2147483648
    %v335 = vxor.u32 %v327, 2147483648
    %v336 = vmul.f32 %v328, 1.442695
    %v337 = vpow.pop %v336
    %v338 = vmul.f32 %v329, 1.442695
    %v339 = vpow.pop %v338
    %v340 = vmul.f32 %v330, 1.442695
    %v341 = vpow.pop %v340
    %v342 = vmul.f32 %v331, 1.442695
    %v343 = vpow.pop %v342
    %v344 = vmul.f32 %v332, 1.442695
    %v345 = vpow.pop %v344
    %v346 = vmul.f32 %v333, 1.442695
    %v347 = vpow.pop %v346
    %v348 = vmul.f32 %v334, 1.442695
    %v349 = vpow.pop %v348
    %v350 = vmul.f32 %v335, 1.442695
    %v351 = vpow.pop %v350
    %v352 = vadd.f32 %v337, 1.0
    %v353 = vadd.f32 %v339, 1.0
    %v354 = vadd.f32 %v341, 1.0
    %v355 = vadd.f32 %v343, 1.0
    %v356 = vadd.f32 %v345, 1.0
    %v357 = vadd.f32 %v347, 1.0
    %v358 = vadd.f32 %v349, 1.0
    %v359 = vadd.f32 %v351, 1.0
    %v360 = vrcp.pop %v352
    %v361 = vmul.f32 %v352, %v360
    %v362 = vsub.f32 1.0, %v361
    %v363 = vmul.f32 %v360, %v362
    %v364 = vadd.f32 %v360, %v363
    %vm365 = vweird.f32 %v352
    %vm366 = vweird.f32 %v360
    %vm367 = vmor %vm365, %vm366
    %v368 = vsel %vm367, %v360, %v364
    %v369 = vand.u32 2147483647, %v352
    %vm370 = vcmp.eq.f32.partialorder %v369, 8.507059e+37
    %v371 = vand.u32 %v352, 2147483648
    %v372 = vor.u32 1.1754944e-38, %v371
    %v373 = vsel %vm370, %v372, %v368
    %v374 = vmul.f32 1.0, %v373
    %v375 = vrcp.pop %v353
    %v376 = vmul.f32 %v353, %v375
    %v377 = vsub.f32 1.0, %v376
    %v378 = vmul.f32 %v375, %v377
    %v379 = vadd.f32 %v375, %v378
    %vm380 = vweird.f32 %v353
    %vm381 = vweird.f32 %v375
    %vm382 = vmor %vm380, %vm381
    %v383 = vsel %vm382, %v375, %v379
    %v384 = vand.u32 2147483647, %v353
    %vm385 = vcmp.eq.f32.partialorder %v384, 8.507059e+37
    %v386 = vand.u32 %v353, 2147483648
    %v387 = vor.u32 1.1754944e-38, %v386
    %v388 = vsel %vm385, %v387, %v383
    %v389 = vmul.f32 1.0, %v388
    %v390 = vrcp.pop %v354
    %v391 = vmul.f32 %v354, %v390
    %v392 = vsub.f32 1.0, %v391
    %v393 = vmul.f32 %v390, %v392
    %v394 = vadd.f32 %v390, %v393
    %vm395 = vweird.f32 %v354
    %vm396 = vweird.f32 %v390
    %vm397 = vmor %vm395, %vm396
    %v398 = vsel %vm397, %v390, %v394
    %v399 = vand.u32 2147483647, %v354
    %vm400 = vcmp.eq.f32.partialorder %v399, 8.507059e+37
    %v401 = vand.u32 %v354, 2147483648
    %v402 = vor.u32 1.1754944e-38, %v401
    %v403 = vsel %vm400, %v402, %v398
    %v404 = vmul.f32 1.0, %v403
    %v405 = vrcp.pop %v355
    %v406 = vmul.f32 %v355, %v405
    %v407 = vsub.f32 1.0, %v406
    %v408 = vmul.f32 %v405, %v407
    %v409 = vadd.f32 %v405, %v408
    %vm410 = vweird.f32 %v355
    %vm411 = vweird.f32 %v405
    %vm412 = vmor %vm410, %vm411
    %v413 = vsel %vm412, %v405, %v409
    %v414 = vand.u32 2147483647, %v355
    %vm415 = vcmp.eq.f32.partialorder %v414, 8.507059e+37
    %v416 = vand.u32 %v355, 2147483648
    %v417 = vor.u32 1.1754944e-38, %v416
    %v418 = vsel %vm415, %v417, %v413
    %v419 = vmul.f32 1.0, %v418
    %v420 = vrcp.pop %v356
    %v421 = vmul.f32 %v356, %v420
    %v422 = vsub.f32 1.0, %v421
    %v423 = vmul.f32 %v420, %v422
    %v424 = vadd.f32 %v420, %v423
    %vm425 = vweird.f32 %v356
    %vm426 = vweird.f32 %v420
    %vm427 = vmor %vm425, %vm426
    %v428 = vsel %vm427, %v420, %v424
    %v429 = vand.u32 2147483647, %v356
    %vm430 = vcmp.eq.f32.partialorder %v429, 8.507059e+37
    %v431 = vand.u32 %v356, 2147483648
    %v432 = vor.u32 1.1754944e-38, %v431
    %v433 = vsel %vm430, %v432, %v428
    %v434 = vmul.f32 1.0, %v433
    %v435 = vrcp.pop %v357
    %v436 = vmul.f32 %v357, %v435
    %v437 = vsub.f32 1.0, %v436
    %v438 = vmul.f32 %v435, %v437
    %v439 = vadd.f32 %v435, %v438
    %vm440 = vweird.f32 %v357
    %vm441 = vweird.f32 %v435
    %vm442 = vmor %vm440, %vm441
    %v443 = vsel %vm442, %v435, %v439
    %v444 = vand.u32 2147483647, %v357
    %vm445 = vcmp.eq.f32.partialorder %v444, 8.507059e+37
    %v446 = vand.u32 %v357, 2147483648
    %v447 = vor.u32 1.1754944e-38, %v446
    %v448 = vsel %vm445, %v447, %v443
    %v449 = vmul.f32 1.0, %v448
    %v450 = vrcp.pop %v358
    %v451 = vmul.f32 %v358, %v450
    %v452 = vsub.f32 1.0, %v451
    %v453 = vmul.f32 %v450, %v452
    %v454 = vadd.f32 %v450, %v453
    %vm455 = vweird.f32 %v358
    %vm456 = vweird.f32 %v450
    %vm457 = vmor %vm455, %vm456
    %v458 = vsel %vm457, %v450, %v454
    %v459 = vand.u32 2147483647, %v358
    %vm460 = vcmp.eq.f32.partialorder %v459, 8.507059e+37
    %v461 = vand.u32 %v358, 2147483648
    %v462 = vor.u32 1.1754944e-38, %v461
    %v463 = vsel %vm460, %v462, %v458
    %v464 = vmul.f32 1.0, %v463
    %v465 = vrcp.pop %v359
    %v466 = vmul.f32 %v359, %v465
    %v467 = vsub.f32 1.0, %v466
    %v468 = vmul.f32 %v465, %v467
    %v469 = vadd.f32 %v465, %v468
    %vm470 = vweird.f32 %v359
    %vm471 = vweird.f32 %v465
    %vm472 = vmor %vm470, %vm471
    %v473 = vsel %vm472, %v465, %v469
    %v474 = vand.u32 2147483647, %v359
    %vm475 = vcmp.eq.f32.partialorder %v474, 8.507059e+37
    %v476 = vand.u32 %v359, 2147483648
    %v477 = vor.u32 1.1754944e-38, %v476
    %v478 = vsel %vm475, %v477, %v473
    %v479 = vmul.f32 1.0, %v478
    %488 = vrot.lane.b32.xlu0 %v320, 32
    %v489 = vpop.permute.xlu0 %488
    %490 = vrot.lane.b32.xlu0 %v321, 32
    %v491 = vpop.permute.xlu0 %490
    %492 = vrot.lane.b32.xlu0 %v322, 32
    %v493 = vpop.permute.xlu0 %492
    %494 = vrot.lane.b32.xlu0 %v323, 32
    %v495 = vpop.permute.xlu0 %494
    %496 = vrot.lane.b32.xlu0 %v324, 32
    %v497 = vpop.permute.xlu0 %496
    %498 = vrot.lane.b32.xlu0 %v325, 32
    %v499 = vpop.permute.xlu0 %498
    %500 = vrot.lane.b32.xlu0 %v326, 32
    %v501 = vpop.permute.xlu0 %500
    %502 = vrot.lane.b32.xlu0 %v327, 32
    %v503 = vpop.permute.xlu0 %502
    %v512 = vmul.f32 %v374, %v489
    %v513 = vmul.f32 %v389, %v491
    %v514 = vmul.f32 %v404, %v493
    %v515 = vmul.f32 %v419, %v495
    %v516 = vmul.f32 %v434, %v497
    %v517 = vmul.f32 %v449, %v499
    %v518 = vmul.f32 %v464, %v501
    %v519 = vmul.f32 %v479, %v503
    %528 = vrot.lane.b32.xlu0 %v512, 64
    %v529 = vpop.permute.xlu0 %528
    %530 = vrot.lane.b32.xlu0 %v513, 64
    %v531 = vpop.permute.xlu0 %530
    %532 = vrot.lane.b32.xlu0 %v514, 64
    %v533 = vpop.permute.xlu0 %532
    %534 = vrot.lane.b32.xlu0 %v515, 64
    %v535 = vpop.permute.xlu0 %534
    %536 = vrot.lane.b32.xlu0 %v516, 64
    %v537 = vpop.permute.xlu0 %536
    %538 = vrot.lane.b32.xlu0 %v517, 64
    %v539 = vpop.permute.xlu0 %538
    %540 = vrot.lane.b32.xlu0 %v518, 64
    %v541 = vpop.permute.xlu0 %540
    %542 = vrot.lane.b32.xlu0 %v519, 64
    %v543 = vpop.permute.xlu0 %542
    %v552 = vadd.f32 %v320, %v529
    %v553 = vadd.f32 %v321, %v531
    %v554 = vadd.f32 %v322, %v533
    %v555 = vadd.f32 %v323, %v535
    %v556 = vadd.f32 %v324, %v537
    %v557 = vadd.f32 %v325, %v539
    %v558 = vadd.f32 %v326, %v541
    %v559 = vadd.f32 %v327, %v543
    %v560 = vtanh.pop %v552
    %v561 = vtanh.pop %v553
    %v562 = vtanh.pop %v554
    %v563 = vtanh.pop %v555
    %v564 = vtanh.pop %v556
    %v565 = vtanh.pop %v557
    %v566 = vtanh.pop %v558
    %v567 = vtanh.pop %v559
    %v568 = vsub.f32 1.0, %v374
    %v569 = vsub.f32 1.0, %v389
    %v570 = vsub.f32 1.0, %v404
    %v571 = vsub.f32 1.0, %v419
    %v572 = vsub.f32 1.0, %v434
    %v573 = vsub.f32 1.0, %v449
    %v574 = vsub.f32 1.0, %v464
    %v575 = vsub.f32 1.0, %v479
    %584 = vrot.lane.b32.xlu0 %v560, 96
    %v585 = vpop.permute.xlu0 %584
    %586 = vrot.lane.b32.xlu0 %v561, 96
    %v587 = vpop.permute.xlu0 %586
    %588 = vrot.lane.b32.xlu0 %v562, 96
    %v589 = vpop.permute.xlu0 %588
    %590 = vrot.lane.b32.xlu0 %v563, 96
    %v591 = vpop.permute.xlu0 %590
    %592 = vrot.lane.b32.xlu0 %v564, 96
    %v593 = vpop.permute.xlu0 %592
    %594 = vrot.lane.b32.xlu0 %v565, 96
    %v595 = vpop.permute.xlu0 %594
    %596 = vrot.lane.b32.xlu0 %v566, 96
    %v597 = vpop.permute.xlu0 %596
    %598 = vrot.lane.b32.xlu0 %v567, 96
    %v599 = vpop.permute.xlu0 %598
    %v608 = vmul.f32 %v568, %v585
    %v609 = vmul.f32 %v569, %v587
    %v610 = vmul.f32 %v570, %v589
    %v611 = vmul.f32 %v571, %v591
    %v612 = vmul.f32 %v572, %v593
    %v613 = vmul.f32 %v573, %v595
    %v614 = vmul.f32 %v574, %v597
    %v615 = vmul.f32 %v575, %v599
    %624 = vrot.lane.b32.xlu0 %v43, 32
    %v625 = vpop.permute.xlu0 %624
    %626 = vrot.lane.b32.xlu0 %v44, 32
    %v627 = vpop.permute.xlu0 %626
    %628 = vrot.lane.b32.xlu0 %v45, 32
    %v629 = vpop.permute.xlu0 %628
    %630 = vrot.lane.b32.xlu0 %v46, 32
    %v631 = vpop.permute.xlu0 %630
    %632 = vrot.lane.b32.xlu0 %v47, 32
    %v633 = vpop.permute.xlu0 %632
    %634 = vrot.lane.b32.xlu0 %v48, 32
    %v635 = vpop.permute.xlu0 %634
    %636 = vrot.lane.b32.xlu0 %v49, 32
    %v637 = vpop.permute.xlu0 %636
    %638 = vrot.lane.b32.xlu0 %v50, 32
    %v639 = vpop.permute.xlu0 %638
    %v648 = vmul.f32 %v374, %v625
    %v649 = vmul.f32 %v389, %v627
    %v650 = vmul.f32 %v404, %v629
    %v651 = vmul.f32 %v419, %v631
    %v652 = vmul.f32 %v434, %v633
    %v653 = vmul.f32 %v449, %v635
    %v654 = vmul.f32 %v464, %v637
    %v655 = vmul.f32 %v479, %v639
    %v656 = vadd.f32 %v608, %v648
    %v657 = vadd.f32 %v609, %v649
    %v658 = vadd.f32 %v610, %v650
    %v659 = vadd.f32 %v611, %v651
    %v660 = vadd.f32 %v612, %v652
    %v661 = vadd.f32 %v613, %v653
    %v662 = vadd.f32 %v614, %v654
    %v663 = vadd.f32 %v615, %v655
    %v664 = vpack.c.bf16 %v657, %v656
    %v665 = vpack.c.bf16 %v659, %v658
    %v666 = vpack.c.bf16 %v661, %v660
    %v667 = vpack.c.bf16 %v663, %v662
    %s668 = scalar_lea.vmem [#allocation2], 16
    %v669 = vld [vmem:[%s668] sm:$0xf]
    %v670 = vld [vmem:[%s668 + $0x4] sm:$0xf]
    %v671 = vld [vmem:[%s668 + $0x8] sm:$0xf]
    %v672 = vld [vmem:[%s668 + $0xc] sm:$0x7]
    %677 = vrot.lane.b32.xlu0 %v664, 96
    %v678 = vpop.permute.xlu0 %677
    %679 = vrot.lane.b32.xlu0 %v665, 96
    %v680 = vpop.permute.xlu0 %679
    %681 = vrot.lane.b32.xlu0 %v666, 96
    %v682 = vpop.permute.xlu0 %681
    %683 = vrot.lane.b32.xlu0 %v667, 96
    %v684 = vpop.permute.xlu0 %683
    %v689 = vunpack.c.l.b16 %v669
    %v690 = vunpack.c.l.b16 %v670
    %v691 = vunpack.c.l.b16 %v671
    %v692 = vunpack.c.l.b16 %v672
    %v693 = vpack.c.b16 %v690, %v689
    %v694 = vpack.c.b16 %v692, %v691
    %v697 = vsel %vm105, %v678, 0
    %v700 = vsel %vm105, %v680, 0
    %v703 = vsel %vm105, %v682, 0
    %v706 = vsel %vm105, %v684, 0
    %v709 = vsel %vm118, %v694, 0
    %711 = vmatpush.bf16.msra.mxu0 0
    %712 = vmatpush.bf16.msra.mxu0 0
    %713 = vmatpush.bf16.msra.mxu0 0
    %714 = vmatpush.bf16.msra.mxu0 0
    %715 = vmatpush.bf16.msra.mxu0 0
    %716 = vmatpush.bf16.msra.mxu0 0
    %717 = vmatpush.bf16.msra.mxu0 %v709
    %718 = vmatpush.bf16.msra.mxu0 %v693
    %719 = vmatmul.bf16.gmra.mxu0 %v697
    %v720 = vpop.f32.mrf.mxu0
    %v721 = vadd.f32 0.0, %v720
    %v722 = vpop.f32.mrf.mxu0
    %v723 = vadd.f32 0.0, %v722
    %724 = vmatmul.bf16.gmra.mxu0 %v700
    %v725 = vpop.f32.mrf.mxu0
    %v726 = vadd.f32 0.0, %v725
    %v727 = vpop.f32.mrf.mxu0
    %v728 = vadd.f32 0.0, %v727
    %729 = vmatmul.bf16.gmra.mxu0 %v703
    %v730 = vpop.f32.mrf.mxu0
    %v731 = vadd.f32 0.0, %v730
    %v732 = vpop.f32.mrf.mxu0
    %v733 = vadd.f32 0.0, %v732
    %734 = vmatmul.bf16.gmra.mxu0 %v706
    %v735 = vpop.f32.mrf.mxu0
    %v736 = vadd.f32 0.0, %v735
    %v737 = vpop.f32.mrf.mxu0
    %v738 = vadd.f32 0.0, %v737
    %739 = vdwg.mxu0
    %v740 = vpack.c.bf16 %v723, %v721
    %v741 = vpack.c.bf16 %v728, %v726
    %v742 = vpack.c.bf16 %v733, %v731
    %v743 = vpack.c.bf16 %v738, %v736
    %744 = vmatpush.bf16.msra.mxu0 0
    %745 = vmatpush.bf16.msra.mxu0 0
    %746 = vmatpush.bf16.msra.mxu0 0
    %747 = vmatpush.bf16.msra.mxu0 0
    %748 = vmatpush.bf16.msra.mxu0 %v743
    %749 = vmatpush.bf16.msra.mxu0 %v742
    %750 = vmatpush.bf16.msra.mxu0 %v741
    %751 = vmatpush.bf16.msra.mxu0 %v740
    %752 = vmatmul.bf16.gmra.mxu0 %v177
    %v753 = vpop.f32.mrf.mxu0
    %v754 = vadd.f32 0.0, %v753
    %v755 = vpop.f32.mrf.mxu0
    %v756 = vadd.f32 0.0, %v755
    %757 = vmatmul.bf16.gmra.mxu0 %v180
    %v758 = vpop.f32.mrf.mxu0
    %v759 = vadd.f32 0.0, %v758
    %v760 = vpop.f32.mrf.mxu0
    %v761 = vadd.f32 0.0, %v760
    %762 = vmatmul.bf16.gmra.mxu0 %v183
    %v763 = vpop.f32.mrf.mxu0
    %v764 = vadd.f32 0.0, %v763
    %v765 = vpop.f32.mrf.mxu0
    %v766 = vadd.f32 0.0, %v765
    %767 = vmatmul.bf16.gmra.mxu0 %v186
    %v768 = vpop.f32.mrf.mxu0
    %v769 = vadd.f32 0.0, %v768
    %v770 = vpop.f32.mrf.mxu0
    %v771 = vadd.f32 0.0, %v770
    %772 = vdwg.mxu0
    %v773 = vpack.c.bf16 %v756, %v754
    %v774 = vpack.c.bf16 %v761, %v759
    %v775 = vpack.c.bf16 %v766, %v764
    %v776 = vpack.c.bf16 %v771, %v769
    %777 = vmatpush.bf16.msra.mxu0 0
    %778 = vmatpush.bf16.msra.mxu0 0
    %779 = vmatpush.bf16.msra.mxu0 0
    %780 = vmatpush.bf16.msra.mxu0 0
    %781 = vmatpush.bf16.msra.mxu0 0
    %782 = vmatpush.bf16.msra.mxu0 0
    %783 = vmatpush.bf16.msra.mxu0 %v233
    %784 = vmatpush.bf16.msra.mxu0 %v229
    %785 = vmatmul.bf16.gmra.mxu0 %v697
    %v786 = vpop.f32.mrf.mxu0
    %v787 = vadd.f32 0.0, %v786
    %v788 = vpop.f32.mrf.mxu0
    %v789 = vadd.f32 0.0, %v788
    %790 = vmatmul.bf16.gmra.mxu0 %v700
    %v791 = vpop.f32.mrf.mxu0
    %v792 = vadd.f32 0.0, %v791
    %v793 = vpop.f32.mrf.mxu0
    %v794 = vadd.f32 0.0, %v793
    %795 = vmatmul.bf16.gmra.mxu0 %v703
    %v796 = vpop.f32.mrf.mxu0
    %v797 = vadd.f32 0.0, %v796
    %v798 = vpop.f32.mrf.mxu0
    %v799 = vadd.f32 0.0, %v798
    %800 = vmatmul.bf16.gmra.mxu0 %v706
    %v801 = vpop.f32.mrf.mxu0
    %v802 = vadd.f32 0.0, %v801
    %v803 = vpop.f32.mrf.mxu0
    %v804 = vadd.f32 0.0, %v803
    %805 = vdwg.mxu0
    %v807 = vsel %vm105, %v773, 0
    %v810 = vsel %vm105, %v774, 0
    %v813 = vsel %vm105, %v775, 0
    %v816 = vsel %vm105, %v776, 0
    %818 = vmatpush.bf16.msra.mxu0 0
    %819 = vmatpush.bf16.msra.mxu0 0
    %820 = vmatpush.bf16.msra.mxu0 0
    %821 = vmatpush.bf16.msra.mxu0 0
    %822 = vmatpush.bf16.msra.mxu0 0
    %823 = vmatpush.bf16.msra.mxu0 0
    %824 = vmatpush.bf16.msra.mxu0 %v288
    %825 = vmatpush.bf16.msra.mxu0 %v272
    %826 = vmatmul.bf16.gmra.mxu0 %v807
    %v827 = vpop.f32.mrf.mxu0
    %v828 = vadd.f32 %v787, %v827
    %v829 = vpop.f32.mrf.mxu0
    %v830 = vadd.f32 %v789, %v829
    %831 = vmatmul.bf16.gmra.mxu0 %v810
    %v832 = vpop.f32.mrf.mxu0
    %v833 = vadd.f32 %v792, %v832
    %v834 = vpop.f32.mrf.mxu0
    %v835 = vadd.f32 %v794, %v834
    %836 = vmatmul.bf16.gmra.mxu0 %v813
    %v837 = vpop.f32.mrf.mxu0
    %v838 = vadd.f32 %v797, %v837
    %v839 = vpop.f32.mrf.mxu0
    %v840 = vadd.f32 %v799, %v839
    %841 = vmatmul.bf16.gmra.mxu0 %v816
    %v842 = vpop.f32.mrf.mxu0
    %v843 = vadd.f32 %v802, %v842
    %v844 = vpop.f32.mrf.mxu0
    %v845 = vadd.f32 %v804, %v844
    %846 = vdwg.mxu0
    %v847 = vadd.f32 %v828, %v319
    %v848 = vadd.f32 %v830, %v319
    %v849 = vadd.f32 %v833, %v319
    %v850 = vadd.f32 %v835, %v319
    %v851 = vadd.f32 %v838, %v319
    %v852 = vadd.f32 %v840, %v319
    %v853 = vadd.f32 %v843, %v319
    %v854 = vadd.f32 %v845, %v319
    %v855 = vxor.u32 %v847, 2147483648
    %v856 = vxor.u32 %v848, 2147483648
    %v857 = vxor.u32 %v849, 2147483648
    %v858 = vxor.u32 %v850, 2147483648
    %v859 = vxor.u32 %v851, 2147483648
    %v860 = vxor.u32 %v852, 2147483648
    %v861 = vxor.u32 %v853, 2147483648
    %v862 = vxor.u32 %v854, 2147483648
    %v863 = vmul.f32 %v855, 1.442695
    %v864 = vpow.pop %v863
    %v865 = vmul.f32 %v856, 1.442695
    %v866 = vpow.pop %v865
    %v867 = vmul.f32 %v857, 1.442695
    %v868 = vpow.pop %v867
    %v869 = vmul.f32 %v858, 1.442695
    %v870 = vpow.pop %v869
    %v871 = vmul.f32 %v859, 1.442695
    %v872 = vpow.pop %v871
    %v873 = vmul.f32 %v860, 1.442695
    %v874 = vpow.pop %v873
    %v875 = vmul.f32 %v861, 1.442695
    %v876 = vpow.pop %v875
    %v877 = vmul.f32 %v862, 1.442695
    %v878 = vpow.pop %v877
    %v879 = vadd.f32 %v864, 1.0
    %v880 = vadd.f32 %v866, 1.0
    %v881 = vadd.f32 %v868, 1.0
    %v882 = vadd.f32 %v870, 1.0
    %v883 = vadd.f32 %v872, 1.0
    %v884 = vadd.f32 %v874, 1.0
    %v885 = vadd.f32 %v876, 1.0
    %v886 = vadd.f32 %v878, 1.0
    %v887 = vrcp.pop %v879
    %v888 = vmul.f32 %v879, %v887
    %v889 = vsub.f32 1.0, %v888
    %v890 = vmul.f32 %v887, %v889
    %v891 = vadd.f32 %v887, %v890
    %vm892 = vweird.f32 %v879
    %vm893 = vweird.f32 %v887
    %vm894 = vmor %vm892, %vm893
    %v895 = vsel %vm894, %v887, %v891
    %v896 = vand.u32 2147483647, %v879
    %vm897 = vcmp.eq.f32.partialorder %v896, 8.507059e+37
    %v898 = vand.u32 %v879, 2147483648
    %v899 = vor.u32 1.1754944e-38, %v898
    %v900 = vsel %vm897, %v899, %v895
    %v901 = vmul.f32 1.0, %v900
    %v902 = vrcp.pop %v880
    %v903 = vmul.f32 %v880, %v902
    %v904 = vsub.f32 1.0, %v903
    %v905 = vmul.f32 %v902, %v904
    %v906 = vadd.f32 %v902, %v905
    %vm907 = vweird.f32 %v880
    %vm908 = vweird.f32 %v902
    %vm909 = vmor %vm907, %vm908
    %v910 = vsel %vm909, %v902, %v906
    %v911 = vand.u32 2147483647, %v880
    %vm912 = vcmp.eq.f32.partialorder %v911, 8.507059e+37
    %v913 = vand.u32 %v880, 2147483648
    %v914 = vor.u32 1.1754944e-38, %v913
    %v915 = vsel %vm912, %v914, %v910
    %v916 = vmul.f32 1.0, %v915
    %v917 = vrcp.pop %v881
    %v918 = vmul.f32 %v881, %v917
    %v919 = vsub.f32 1.0, %v918
    %v920 = vmul.f32 %v917, %v919
    %v921 = vadd.f32 %v917, %v920
    %vm922 = vweird.f32 %v881
    %vm923 = vweird.f32 %v917
    %vm924 = vmor %vm922, %vm923
    %v925 = vsel %vm924, %v917, %v921
    %v926 = vand.u32 2147483647, %v881
    %vm927 = vcmp.eq.f32.partialorder %v926, 8.507059e+37
    %v928 = vand.u32 %v881, 2147483648
    %v929 = vor.u32 1.1754944e-38, %v928
    %v930 = vsel %vm927, %v929, %v925
    %v931 = vmul.f32 1.0, %v930
    %v932 = vrcp.pop %v882
    %v933 = vmul.f32 %v882, %v932
    %v934 = vsub.f32 1.0, %v933
    %v935 = vmul.f32 %v932, %v934
    %v936 = vadd.f32 %v932, %v935
    %vm937 = vweird.f32 %v882
    %vm938 = vweird.f32 %v932
    %vm939 = vmor %vm937, %vm938
    %v940 = vsel %vm939, %v932, %v936
    %v941 = vand.u32 2147483647, %v882
    %vm942 = vcmp.eq.f32.partialorder %v941, 8.507059e+37
    %v943 = vand.u32 %v882, 2147483648
    %v944 = vor.u32 1.1754944e-38, %v943
    %v945 = vsel %vm942, %v944, %v940
    %v946 = vmul.f32 1.0, %v945
    %v947 = vrcp.pop %v883
    %v948 = vmul.f32 %v883, %v947
    %v949 = vsub.f32 1.0, %v948
    %v950 = vmul.f32 %v947, %v949
    %v951 = vadd.f32 %v947, %v950
    %vm952 = vweird.f32 %v883
    %vm953 = vweird.f32 %v947
    %vm954 = vmor %vm952, %vm953
    %v955 = vsel %vm954, %v947, %v951
    %v956 = vand.u32 2147483647, %v883
    %vm957 = vcmp.eq.f32.partialorder %v956, 8.507059e+37
    %v958 = vand.u32 %v883, 2147483648
    %v959 = vor.u32 1.1754944e-38, %v958
    %v960 = vsel %vm957, %v959, %v955
    %v961 = vmul.f32 1.0, %v960
    %v962 = vrcp.pop %v884
    %v963 = vmul.f32 %v884, %v962
    %v964 = vsub.f32 1.0, %v963
    %v965 = vmul.f32 %v962, %v964
    %v966 = vadd.f32 %v962, %v965
    %vm967 = vweird.f32 %v884
    %vm968 = vweird.f32 %v962
    %vm969 = vmor %vm967, %vm968
    %v970 = vsel %vm969, %v962, %v966
    %v971 = vand.u32 2147483647, %v884
    %vm972 = vcmp.eq.f32.partialorder %v971, 8.507059e+37
    %v973 = vand.u32 %v884, 2147483648
    %v974 = vor.u32 1.1754944e-38, %v973
    %v975 = vsel %vm972, %v974, %v970
    %v976 = vmul.f32 1.0, %v975
    %v977 = vrcp.pop %v885
    %v978 = vmul.f32 %v885, %v977
    %v979 = vsub.f32 1.0, %v978
    %v980 = vmul.f32 %v977, %v979
    %v981 = vadd.f32 %v977, %v980
    %vm982 = vweird.f32 %v885
    %vm983 = vweird.f32 %v977
    %vm984 = vmor %vm982, %vm983
    %v985 = vsel %vm984, %v977, %v981
    %v986 = vand.u32 2147483647, %v885
    %vm987 = vcmp.eq.f32.partialorder %v986, 8.507059e+37
    %v988 = vand.u32 %v885, 2147483648
    %v989 = vor.u32 1.1754944e-38, %v988
    %v990 = vsel %vm987, %v989, %v985
    %v991 = vmul.f32 1.0, %v990
    %v992 = vrcp.pop %v886
    %v993 = vmul.f32 %v886, %v992
    %v994 = vsub.f32 1.0, %v993
    %v995 = vmul.f32 %v992, %v994
    %v996 = vadd.f32 %v992, %v995
    %vm997 = vweird.f32 %v886
    %vm998 = vweird.f32 %v992
    %vm999 = vmor %vm997, %vm998
    %v1000 = vsel %vm999, %v992, %v996
    %v1001 = vand.u32 2147483647, %v886
    %vm1002 = vcmp.eq.f32.partialorder %v1001, 8.507059e+37
    %v1003 = vand.u32 %v886, 2147483648
    %v1004 = vor.u32 1.1754944e-38, %v1003
    %v1005 = vsel %vm1002, %v1004, %v1000
    %v1006 = vmul.f32 1.0, %v1005
    %1015 = vrot.lane.b32.xlu0 %v847, 32
    %v1016 = vpop.permute.xlu0 %1015
    %1017 = vrot.lane.b32.xlu0 %v848, 32
    %v1018 = vpop.permute.xlu0 %1017
    %1019 = vrot.lane.b32.xlu0 %v849, 32
    %v1020 = vpop.permute.xlu0 %1019
    %1021 = vrot.lane.b32.xlu0 %v850, 32
    %v1022 = vpop.permute.xlu0 %1021
    %1023 = vrot.lane.b32.xlu0 %v851, 32
    %v1024 = vpop.permute.xlu0 %1023
    %1025 = vrot.lane.b32.xlu0 %v852, 32
    %v1026 = vpop.permute.xlu0 %1025
    %1027 = vrot.lane.b32.xlu0 %v853, 32
    %v1028 = vpop.permute.xlu0 %1027
    %1029 = vrot.lane.b32.xlu0 %v854, 32
    %v1030 = vpop.permute.xlu0 %1029
    %v1039 = vmul.f32 %v901, %v1016
    %v1040 = vmul.f32 %v916, %v1018
    %v1041 = vmul.f32 %v931, %v1020
    %v1042 = vmul.f32 %v946, %v1022
    %v1043 = vmul.f32 %v961, %v1024
    %v1044 = vmul.f32 %v976, %v1026
    %v1045 = vmul.f32 %v991, %v1028
    %v1046 = vmul.f32 %v1006, %v1030
    %1055 = vrot.lane.b32.xlu0 %v1039, 64
    %v1056 = vpop.permute.xlu0 %1055
    %1057 = vrot.lane.b32.xlu0 %v1040, 64
    %v1058 = vpop.permute.xlu0 %1057
    %1059 = vrot.lane.b32.xlu0 %v1041, 64
    %v1060 = vpop.permute.xlu0 %1059
    %1061 = vrot.lane.b32.xlu0 %v1042, 64
    %v1062 = vpop.permute.xlu0 %1061
    %1063 = vrot.lane.b32.xlu0 %v1043, 64
    %v1064 = vpop.permute.xlu0 %1063
    %1065 = vrot.lane.b32.xlu0 %v1044, 64
    %v1066 = vpop.permute.xlu0 %1065
    %1067 = vrot.lane.b32.xlu0 %v1045, 64
    %v1068 = vpop.permute.xlu0 %1067
    %1069 = vrot.lane.b32.xlu0 %v1046, 64
    %v1070 = vpop.permute.xlu0 %1069
    %v1079 = vadd.f32 %v847, %v1056
    %v1080 = vadd.f32 %v848, %v1058
    %v1081 = vadd.f32 %v849, %v1060
    %v1082 = vadd.f32 %v850, %v1062
    %v1083 = vadd.f32 %v851, %v1064
    %v1084 = vadd.f32 %v852, %v1066
    %v1085 = vadd.f32 %v853, %v1068
    %v1086 = vadd.f32 %v854, %v1070
    %v1087 = vtanh.pop %v1079
    %v1088 = vtanh.pop %v1080
    %v1089 = vtanh.pop %v1081
    %v1090 = vtanh.pop %v1082
    %v1091 = vtanh.pop %v1083
    %v1092 = vtanh.pop %v1084
    %v1093 = vtanh.pop %v1085
    %v1094 = vtanh.pop %v1086
    %v1095 = vsub.f32 1.0, %v901
    %v1096 = vsub.f32 1.0, %v916
    %v1097 = vsub.f32 1.0, %v931
    %v1098 = vsub.f32 1.0, %v946
    %v1099 = vsub.f32 1.0, %v961
    %v1100 = vsub.f32 1.0, %v976
    %v1101 = vsub.f32 1.0, %v991
    %v1102 = vsub.f32 1.0, %v1006
    %1111 = vrot.lane.b32.xlu0 %v1087, 96
    %v1112 = vpop.permute.xlu0 %1111
    %1113 = vrot.lane.b32.xlu0 %v1088, 96
    %v1114 = vpop.permute.xlu0 %1113
    %1115 = vrot.lane.b32.xlu0 %v1089, 96
    %v1116 = vpop.permute.xlu0 %1115
    %1117 = vrot.lane.b32.xlu0 %v1090, 96
    %v1118 = vpop.permute.xlu0 %1117
    %1119 = vrot.lane.b32.xlu0 %v1091, 96
    %v1120 = vpop.permute.xlu0 %1119
    %1121 = vrot.lane.b32.xlu0 %v1092, 96
    %v1122 = vpop.permute.xlu0 %1121
    %1123 = vrot.lane.b32.xlu0 %v1093, 96
    %v1124 = vpop.permute.xlu0 %1123
    %1125 = vrot.lane.b32.xlu0 %v1094, 96
    %v1126 = vpop.permute.xlu0 %1125
    %v1135 = vmul.f32 %v1095, %v1112
    %v1136 = vmul.f32 %v1096, %v1114
    %v1137 = vmul.f32 %v1097, %v1116
    %v1138 = vmul.f32 %v1098, %v1118
    %v1139 = vmul.f32 %v1099, %v1120
    %v1140 = vmul.f32 %v1100, %v1122
    %v1141 = vmul.f32 %v1101, %v1124
    %v1142 = vmul.f32 %v1102, %v1126
    %v1143 = vmul.f32 %v901, %v656
    %v1144 = vmul.f32 %v916, %v657
    %v1145 = vmul.f32 %v931, %v658
    %v1146 = vmul.f32 %v946, %v659
    %v1147 = vmul.f32 %v961, %v660
    %v1148 = vmul.f32 %v976, %v661
    %v1149 = vmul.f32 %v991, %v662
    %v1150 = vmul.f32 %v1006, %v663
    %v1151 = vadd.f32 %v1135, %v1143
    %v1152 = vadd.f32 %v1136, %v1144
    %v1153 = vadd.f32 %v1137, %v1145
    %v1154 = vadd.f32 %v1138, %v1146
    %v1155 = vadd.f32 %v1139, %v1147
    %v1156 = vadd.f32 %v1140, %v1148
    %v1157 = vadd.f32 %v1141, %v1149
    %v1158 = vadd.f32 %v1142, %v1150
    %v1159 = vpack.c.bf16 %v1152, %v1151
    %v1160 = vpack.c.bf16 %v1154, %v1153
    %v1161 = vpack.c.bf16 %v1156, %v1155
    %v1162 = vpack.c.bf16 %v1158, %v1157
    %s1163 = scalar_lea.vmem [#allocation2], 32
    %v1164 = vld [vmem:[%s1163] sm:$0xf]
    %v1165 = vld [vmem:[%s1163 + $0x4] sm:$0xf]
    %v1166 = vld [vmem:[%s1163 + $0x8] sm:$0xf]
    %v1167 = vld [vmem:[%s1163 + $0xc] sm:$0x7]
    %1172 = vrot.lane.b32.xlu0 %v1159, 96
    %v1173 = vpop.permute.xlu0 %1172
    %1174 = vrot.lane.b32.xlu0 %v1160, 96
    %v1175 = vpop.permute.xlu0 %1174
    %1176 = vrot.lane.b32.xlu0 %v1161, 96
    %v1177 = vpop.permute.xlu0 %1176
    %1178 = vrot.lane.b32.xlu0 %v1162, 96
    %v1179 = vpop.permute.xlu0 %1178
    %v1184 = vunpack.c.l.b16 %v1164
    %v1185 = vunpack.c.l.b16 %v1165
    %v1186 = vunpack.c.l.b16 %v1166
    %v1187 = vunpack.c.l.b16 %v1167
    %v1188 = vpack.c.b16 %v1185, %v1184
    %v1189 = vpack.c.b16 %v1187, %v1186
    %v1192 = vsel %vm105, %v1173, 0
    %v1195 = vsel %vm105, %v1175, 0
    %v1198 = vsel %vm105, %v1177, 0
    %v1201 = vsel %vm105, %v1179, 0
    %v1204 = vsel %vm118, %v1189, 0
    %1206 = vmatpush.bf16.msra.mxu0 0
    %1207 = vmatpush.bf16.msra.mxu0 0
    %1208 = vmatpush.bf16.msra.mxu0 0
    %1209 = vmatpush.bf16.msra.mxu0 0
    %1210 = vmatpush.bf16.msra.mxu0 0
    %1211 = vmatpush.bf16.msra.mxu0 0
    %1212 = vmatpush.bf16.msra.mxu0 %v1204
    %1213 = vmatpush.bf16.msra.mxu0 %v1188
    %1214 = vmatmul.bf16.gmra.mxu0 %v1192
    %v1215 = vpop.f32.mrf.mxu0
    %v1216 = vadd.f32 0.0, %v1215
    %v1217 = vpop.f32.mrf.mxu0
    %v1218 = vadd.f32 0.0, %v1217
    %1219 = vmatmul.bf16.gmra.mxu0 %v1195
    %v1220 = vpop.f32.mrf.mxu0
    %v1221 = vadd.f32 0.0, %v1220
    %v1222 = vpop.f32.mrf.mxu0
    %v1223 = vadd.f32 0.0, %v1222
    %1224 = vmatmul.bf16.gmra.mxu0 %v1198
    %v1225 = vpop.f32.mrf.mxu0
    %v1226 = vadd.f32 0.0, %v1225
    %v1227 = vpop.f32.mrf.mxu0
    %v1228 = vadd.f32 0.0, %v1227
    %1229 = vmatmul.bf16.gmra.mxu0 %v1201
    %v1230 = vpop.f32.mrf.mxu0
    %v1231 = vadd.f32 0.0, %v1230
    %v1232 = vpop.f32.mrf.mxu0
    %v1233 = vadd.f32 0.0, %v1232
    %1234 = vdwg.mxu0
    %v1235 = vpack.c.bf16 %v1218, %v1216
    %v1236 = vpack.c.bf16 %v1223, %v1221
    %v1237 = vpack.c.bf16 %v1228, %v1226
    %v1238 = vpack.c.bf16 %v1233, %v1231
    %1239 = vmatpush.bf16.msra.mxu0 0
    %1240 = vmatpush.bf16.msra.mxu0 0
    %1241 = vmatpush.bf16.msra.mxu0 0
    %1242 = vmatpush.bf16.msra.mxu0 0
    %1243 = vmatpush.bf16.msra.mxu0 %v1238
    %1244 = vmatpush.bf16.msra.mxu0 %v1237
    %1245 = vmatpush.bf16.msra.mxu0 %v1236
    %1246 = vmatpush.bf16.msra.mxu0 %v1235
    %1247 = vmatmul.bf16.gmra.mxu0 %v177
    %v1248 = vpop.f32.mrf.mxu0
    %v1249 = vadd.f32 0.0, %v1248
    %v1250 = vpop.f32.mrf.mxu0
    %v1251 = vadd.f32 0.0, %v1250
    %1252 = vmatmul.bf16.gmra.mxu0 %v180
    %v1253 = vpop.f32.mrf.mxu0
    %v1254 = vadd.f32 0.0, %v1253
    %v1255 = vpop.f32.mrf.mxu0
    %v1256 = vadd.f32 0.0, %v1255
    %1257 = vmatmul.bf16.gmra.mxu0 %v183
    %v1258 = vpop.f32.mrf.mxu0
    %v1259 = vadd.f32 0.0, %v1258
    %v1260 = vpop.f32.mrf.mxu0
    %v1261 = vadd.f32 0.0, %v1260
    %1262 = vmatmul.bf16.gmra.mxu0 %v186
    %v1263 = vpop.f32.mrf.mxu0
    %v1264 = vadd.f32 0.0, %v1263
    %v1265 = vpop.f32.mrf.mxu0
    %v1266 = vadd.f32 0.0, %v1265
    %1267 = vdwg.mxu0
    %v1268 = vpack.c.bf16 %v1251, %v1249
    %v1269 = vpack.c.bf16 %v1256, %v1254
    %v1270 = vpack.c.bf16 %v1261, %v1259
    %v1271 = vpack.c.bf16 %v1266, %v1264
    %1272 = vmatpush.bf16.msra.mxu0 0
    %1273 = vmatpush.bf16.msra.mxu0 0
    %1274 = vmatpush.bf16.msra.mxu0 0
    %1275 = vmatpush.bf16.msra.mxu0 0
    %1276 = vmatpush.bf16.msra.mxu0 0
    %1277 = vmatpush.bf16.msra.mxu0 0
    %1278 = vmatpush.bf16.msra.mxu0 %v233
    %1279 = vmatpush.bf16.msra.mxu0 %v229
    %1280 = vmatmul.bf16.gmra.mxu0 %v1192
    %v1281 = vpop.f32.mrf.mxu0
    %v1282 = vadd.f32 0.0, %v1281
    %v1283 = vpop.f32.mrf.mxu0
    %v1284 = vadd.f32 0.0, %v1283
    %1285 = vmatmul.bf16.gmra.mxu0 %v1195
    %v1286 = vpop.f32.mrf.mxu0
    %v1287 = vadd.f32 0.0, %v1286
    %v1288 = vpop.f32.mrf.mxu0
    %v1289 = vadd.f32 0.0, %v1288
    %1290 = vmatmul.bf16.gmra.mxu0 %v1198
    %v1291 = vpop.f32.mrf.mxu0
    %v1292 = vadd.f32 0.0, %v1291
    %v1293 = vpop.f32.mrf.mxu0
    %v1294 = vadd.f32 0.0, %v1293
    %1295 = vmatmul.bf16.gmra.mxu0 %v1201
    %v1296 = vpop.f32.mrf.mxu0
    %v1297 = vadd.f32 0.0, %v1296
    %v1298 = vpop.f32.mrf.mxu0
    %v1299 = vadd.f32 0.0, %v1298
    %1300 = vdwg.mxu0
    %v1302 = vsel %vm105, %v1268, 0
    %v1305 = vsel %vm105, %v1269, 0
    %v1308 = vsel %vm105, %v1270, 0
    %v1311 = vsel %vm105, %v1271, 0
    %1313 = vmatpush.bf16.msra.mxu0 0
    %1314 = vmatpush.bf16.msra.mxu0 0
    %1315 = vmatpush.bf16.msra.mxu0 0
    %1316 = vmatpush.bf16.msra.mxu0 0
    %1317 = vmatpush.bf16.msra.mxu0 0
    %1318 = vmatpush.bf16.msra.mxu0 0
    %1319 = vmatpush.bf16.msra.mxu0 %v288
    %1320 = vmatpush.bf16.msra.mxu0 %v272
    %1321 = vmatmul.bf16.gmra.mxu0 %v1302
    %v1322 = vpop.f32.mrf.mxu0
    %v1323 = vadd.f32 %v1282, %v1322
    %v1324 = vpop.f32.mrf.mxu0
    %v1325 = vadd.f32 %v1284, %v1324
    %1326 = vmatmul.bf16.gmra.mxu0 %v1305
    %v1327 = vpop.f32.mrf.mxu0
    %v1328 = vadd.f32 %v1287, %v1327
    %v1329 = vpop.f32.mrf.mxu0
    %v1330 = vadd.f32 %v1289, %v1329
    %1331 = vmatmul.bf16.gmra.mxu0 %v1308
    %v1332 = vpop.f32.mrf.mxu0
    %v1333 = vadd.f32 %v1292, %v1332
    %v1334 = vpop.f32.mrf.mxu0
    %v1335 = vadd.f32 %v1294, %v1334
    %1336 = vmatmul.bf16.gmra.mxu0 %v1311
    %v1337 = vpop.f32.mrf.mxu0
    %v1338 = vadd.f32 %v1297, %v1337
    %v1339 = vpop.f32.mrf.mxu0
    %v1340 = vadd.f32 %v1299, %v1339
    %1341 = vdwg.mxu0
    %v1342 = vadd.f32 %v1323, %v319
    %v1343 = vadd.f32 %v1325, %v319
    %v1344 = vadd.f32 %v1328, %v319
    %v1345 = vadd.f32 %v1330, %v319
    %v1346 = vadd.f32 %v1333, %v319
    %v1347 = vadd.f32 %v1335, %v319
    %v1348 = vadd.f32 %v1338, %v319
    %v1349 = vadd.f32 %v1340, %v319
    %v1350 = vxor.u32 %v1342, 2147483648
    %v1351 = vxor.u32 %v1343, 2147483648
    %v1352 = vxor.u32 %v1344, 2147483648
    %v1353 = vxor.u32 %v1345, 2147483648
    %v1354 = vxor.u32 %v1346, 2147483648
    %v1355 = vxor.u32 %v1347, 2147483648
    %v1356 = vxor.u32 %v1348, 2147483648
    %v1357 = vxor.u32 %v1349, 2147483648
    %v1358 = vmul.f32 %v1350, 1.442695
    %v1359 = vpow.pop %v1358
    %v1360 = vmul.f32 %v1351, 1.442695
    %v1361 = vpow.pop %v1360
    %v1362 = vmul.f32 %v1352, 1.442695
    %v1363 = vpow.pop %v1362
    %v1364 = vmul.f32 %v1353, 1.442695
    %v1365 = vpow.pop %v1364
    %v1366 = vmul.f32 %v1354, 1.442695
    %v1367 = vpow.pop %v1366
    %v1368 = vmul.f32 %v1355, 1.442695
    %v1369 = vpow.pop %v1368
    %v1370 = vmul.f32 %v1356, 1.442695
    %v1371 = vpow.pop %v1370
    %v1372 = vmul.f32 %v1357, 1.442695
    %v1373 = vpow.pop %v1372
    %v1374 = vadd.f32 %v1359, 1.0
    %v1375 = vadd.f32 %v1361, 1.0
    %v1376 = vadd.f32 %v1363, 1.0
    %v1377 = vadd.f32 %v1365, 1.0
    %v1378 = vadd.f32 %v1367, 1.0
    %v1379 = vadd.f32 %v1369, 1.0
    %v1380 = vadd.f32 %v1371, 1.0
    %v1381 = vadd.f32 %v1373, 1.0
    %v1382 = vrcp.pop %v1374
    %v1383 = vmul.f32 %v1374, %v1382
    %v1384 = vsub.f32 1.0, %v1383
    %v1385 = vmul.f32 %v1382, %v1384
    %v1386 = vadd.f32 %v1382, %v1385
    %vm1387 = vweird.f32 %v1374
    %vm1388 = vweird.f32 %v1382
    %vm1389 = vmor %vm1387, %vm1388
    %v1390 = vsel %vm1389, %v1382, %v1386
    %v1391 = vand.u32 2147483647, %v1374
    %vm1392 = vcmp.eq.f32.partialorder %v1391, 8.507059e+37
    %v1393 = vand.u32 %v1374, 2147483648
    %v1394 = vor.u32 1.1754944e-38, %v1393
    %v1395 = vsel %vm1392, %v1394, %v1390
    %v1396 = vmul.f32 1.0, %v1395
    %v1397 = vrcp.pop %v1375
    %v1398 = vmul.f32 %v1375, %v1397
    %v1399 = vsub.f32 1.0, %v1398
    %v1400 = vmul.f32 %v1397, %v1399
    %v1401 = vadd.f32 %v1397, %v1400
    %vm1402 = vweird.f32 %v1375
    %vm1403 = vweird.f32 %v1397
    %vm1404 = vmor %vm1402, %vm1403
    %v1405 = vsel %vm1404, %v1397, %v1401
    %v1406 = vand.u32 2147483647, %v1375
    %vm1407 = vcmp.eq.f32.partialorder %v1406, 8.507059e+37
    %v1408 = vand.u32 %v1375, 2147483648
    %v1409 = vor.u32 1.1754944e-38, %v1408
    %v1410 = vsel %vm1407, %v1409, %v1405
    %v1411 = vmul.f32 1.0, %v1410
    %v1412 = vrcp.pop %v1376
    %v1413 = vmul.f32 %v1376, %v1412
    %v1414 = vsub.f32 1.0, %v1413
    %v1415 = vmul.f32 %v1412, %v1414
    %v1416 = vadd.f32 %v1412, %v1415
    %vm1417 = vweird.f32 %v1376
    %vm1418 = vweird.f32 %v1412
    %vm1419 = vmor %vm1417, %vm1418
    %v1420 = vsel %vm1419, %v1412, %v1416
    %v1421 = vand.u32 2147483647, %v1376
    %vm1422 = vcmp.eq.f32.partialorder %v1421, 8.507059e+37
    %v1423 = vand.u32 %v1376, 2147483648
    %v1424 = vor.u32 1.1754944e-38, %v1423
    %v1425 = vsel %vm1422, %v1424, %v1420
    %v1426 = vmul.f32 1.0, %v1425
    %v1427 = vrcp.pop %v1377
    %v1428 = vmul.f32 %v1377, %v1427
    %v1429 = vsub.f32 1.0, %v1428
    %v1430 = vmul.f32 %v1427, %v1429
    %v1431 = vadd.f32 %v1427, %v1430
    %vm1432 = vweird.f32 %v1377
    %vm1433 = vweird.f32 %v1427
    %vm1434 = vmor %vm1432, %vm1433
    %v1435 = vsel %vm1434, %v1427, %v1431
    %v1436 = vand.u32 2147483647, %v1377
    %vm1437 = vcmp.eq.f32.partialorder %v1436, 8.507059e+37
    %v1438 = vand.u32 %v1377, 2147483648
    %v1439 = vor.u32 1.1754944e-38, %v1438
    %v1440 = vsel %vm1437, %v1439, %v1435
    %v1441 = vmul.f32 1.0, %v1440
    %v1442 = vrcp.pop %v1378
    %v1443 = vmul.f32 %v1378, %v1442
    %v1444 = vsub.f32 1.0, %v1443
    %v1445 = vmul.f32 %v1442, %v1444
    %v1446 = vadd.f32 %v1442, %v1445
    %vm1447 = vweird.f32 %v1378
    %vm1448 = vweird.f32 %v1442
    %vm1449 = vmor %vm1447, %vm1448
    %v1450 = vsel %vm1449, %v1442, %v1446
    %v1451 = vand.u32 2147483647, %v1378
    %vm1452 = vcmp.eq.f32.partialorder %v1451, 8.507059e+37
    %v1453 = vand.u32 %v1378, 2147483648
    %v1454 = vor.u32 1.1754944e-38, %v1453
    %v1455 = vsel %vm1452, %v1454, %v1450
    %v1456 = vmul.f32 1.0, %v1455
    %v1457 = vrcp.pop %v1379
    %v1458 = vmul.f32 %v1379, %v1457
    %v1459 = vsub.f32 1.0, %v1458
    %v1460 = vmul.f32 %v1457, %v1459
    %v1461 = vadd.f32 %v1457, %v1460
    %vm1462 = vweird.f32 %v1379
    %vm1463 = vweird.f32 %v1457
    %vm1464 = vmor %vm1462, %vm1463
    %v1465 = vsel %vm1464, %v1457, %v1461
    %v1466 = vand.u32 2147483647, %v1379
    %vm1467 = vcmp.eq.f32.partialorder %v1466, 8.507059e+37
    %v1468 = vand.u32 %v1379, 2147483648
    %v1469 = vor.u32 1.1754944e-38, %v1468
    %v1470 = vsel %vm1467, %v1469, %v1465
    %v1471 = vmul.f32 1.0, %v1470
    %v1472 = vrcp.pop %v1380
    %v1473 = vmul.f32 %v1380, %v1472
    %v1474 = vsub.f32 1.0, %v1473
    %v1475 = vmul.f32 %v1472, %v1474
    %v1476 = vadd.f32 %v1472, %v1475
    %vm1477 = vweird.f32 %v1380
    %vm1478 = vweird.f32 %v1472
    %vm1479 = vmor %vm1477, %vm1478
    %v1480 = vsel %vm1479, %v1472, %v1476
    %v1481 = vand.u32 2147483647, %v1380
    %vm1482 = vcmp.eq.f32.partialorder %v1481, 8.507059e+37
    %v1483 = vand.u32 %v1380, 2147483648
    %v1484 = vor.u32 1.1754944e-38, %v1483
    %v1485 = vsel %vm1482, %v1484, %v1480
    %v1486 = vmul.f32 1.0, %v1485
    %v1487 = vrcp.pop %v1381
    %v1488 = vmul.f32 %v1381, %v1487
    %v1489 = vsub.f32 1.0, %v1488
    %v1490 = vmul.f32 %v1487, %v1489
    %v1491 = vadd.f32 %v1487, %v1490
    %vm1492 = vweird.f32 %v1381
    %vm1493 = vweird.f32 %v1487
    %vm1494 = vmor %vm1492, %vm1493
    %v1495 = vsel %vm1494, %v1487, %v1491
    %v1496 = vand.u32 2147483647, %v1381
    %vm1497 = vcmp.eq.f32.partialorder %v1496, 8.507059e+37
    %v1498 = vand.u32 %v1381, 2147483648
    %v1499 = vor.u32 1.1754944e-38, %v1498
    %v1500 = vsel %vm1497, %v1499, %v1495
    %v1501 = vmul.f32 1.0, %v1500
    %1510 = vrot.lane.b32.xlu0 %v1342, 32
    %v1511 = vpop.permute.xlu0 %1510
    %1512 = vrot.lane.b32.xlu0 %v1343, 32
    %v1513 = vpop.permute.xlu0 %1512
    %1514 = vrot.lane.b32.xlu0 %v1344, 32
    %v1515 = vpop.permute.xlu0 %1514
    %1516 = vrot.lane.b32.xlu0 %v1345, 32
    %v1517 = vpop.permute.xlu0 %1516
    %1518 = vrot.lane.b32.xlu0 %v1346, 32
    %v1519 = vpop.permute.xlu0 %1518
    %1520 = vrot.lane.b32.xlu0 %v1347, 32
    %v1521 = vpop.permute.xlu0 %1520
    %1522 = vrot.lane.b32.xlu0 %v1348, 32
    %v1523 = vpop.permute.xlu0 %1522
    %1524 = vrot.lane.b32.xlu0 %v1349, 32
    %v1525 = vpop.permute.xlu0 %1524
    %v1534 = vmul.f32 %v1396, %v1511
    %v1535 = vmul.f32 %v1411, %v1513
    %v1536 = vmul.f32 %v1426, %v1515
    %v1537 = vmul.f32 %v1441, %v1517
    %v1538 = vmul.f32 %v1456, %v1519
    %v1539 = vmul.f32 %v1471, %v1521
    %v1540 = vmul.f32 %v1486, %v1523
    %v1541 = vmul.f32 %v1501, %v1525
    %1550 = vrot.lane.b32.xlu0 %v1534, 64
    %v1551 = vpop.permute.xlu0 %1550
    %1552 = vrot.lane.b32.xlu0 %v1535, 64
    %v1553 = vpop.permute.xlu0 %1552
    %1554 = vrot.lane.b32.xlu0 %v1536, 64
    %v1555 = vpop.permute.xlu0 %1554
    %1556 = vrot.lane.b32.xlu0 %v1537, 64
    %v1557 = vpop.permute.xlu0 %1556
    %1558 = vrot.lane.b32.xlu0 %v1538, 64
    %v1559 = vpop.permute.xlu0 %1558
    %1560 = vrot.lane.b32.xlu0 %v1539, 64
    %v1561 = vpop.permute.xlu0 %1560
    %1562 = vrot.lane.b32.xlu0 %v1540, 64
    %v1563 = vpop.permute.xlu0 %1562
    %1564 = vrot.lane.b32.xlu0 %v1541, 64
    %v1565 = vpop.permute.xlu0 %1564
    %v1574 = vadd.f32 %v1342, %v1551
    %v1575 = vadd.f32 %v1343, %v1553
    %v1576 = vadd.f32 %v1344, %v1555
    %v1577 = vadd.f32 %v1345, %v1557
    %v1578 = vadd.f32 %v1346, %v1559
    %v1579 = vadd.f32 %v1347, %v1561
    %v1580 = vadd.f32 %v1348, %v1563
    %v1581 = vadd.f32 %v1349, %v1565
    %v1582 = vtanh.pop %v1574
    %v1583 = vtanh.pop %v1575
    %v1584 = vtanh.pop %v1576
    %v1585 = vtanh.pop %v1577
    %v1586 = vtanh.pop %v1578
    %v1587 = vtanh.pop %v1579
    %v1588 = vtanh.pop %v1580
    %v1589 = vtanh.pop %v1581
    %v1590 = vsub.f32 1.0, %v1396
    %v1591 = vsub.f32 1.0, %v1411
    %v1592 = vsub.f32 1.0, %v1426
    %v1593 = vsub.f32 1.0, %v1441
    %v1594 = vsub.f32 1.0, %v1456
    %v1595 = vsub.f32 1.0, %v1471
    %v1596 = vsub.f32 1.0, %v1486
    %v1597 = vsub.f32 1.0, %v1501
    %1606 = vrot.lane.b32.xlu0 %v1582, 96
    %v1607 = vpop.permute.xlu0 %1606
    %1608 = vrot.lane.b32.xlu0 %v1583, 96
    %v1609 = vpop.permute.xlu0 %1608
    %1610 = vrot.lane.b32.xlu0 %v1584, 96
    %v1611 = vpop.permute.xlu0 %1610
    %1612 = vrot.lane.b32.xlu0 %v1585, 96
    %v1613 = vpop.permute.xlu0 %1612
    %1614 = vrot.lane.b32.xlu0 %v1586, 96
    %v1615 = vpop.permute.xlu0 %1614
    %1616 = vrot.lane.b32.xlu0 %v1587, 96
    %v1617 = vpop.permute.xlu0 %1616
    %1618 = vrot.lane.b32.xlu0 %v1588, 96
    %v1619 = vpop.permute.xlu0 %1618
    %1620 = vrot.lane.b32.xlu0 %v1589, 96
    %v1621 = vpop.permute.xlu0 %1620
    %v1630 = vmul.f32 %v1590, %v1607
    %v1631 = vmul.f32 %v1591, %v1609
    %v1632 = vmul.f32 %v1592, %v1611
    %v1633 = vmul.f32 %v1593, %v1613
    %v1634 = vmul.f32 %v1594, %v1615
    %v1635 = vmul.f32 %v1595, %v1617
    %v1636 = vmul.f32 %v1596, %v1619
    %v1637 = vmul.f32 %v1597, %v1621
    %v1638 = vmul.f32 %v1396, %v1151
    %v1639 = vmul.f32 %v1411, %v1152
    %v1640 = vmul.f32 %v1426, %v1153
    %v1641 = vmul.f32 %v1441, %v1154
    %v1642 = vmul.f32 %v1456, %v1155
    %v1643 = vmul.f32 %v1471, %v1156
    %v1644 = vmul.f32 %v1486, %v1157
    %v1645 = vmul.f32 %v1501, %v1158
    %v1646 = vadd.f32 %v1630, %v1638
    %v1647 = vadd.f32 %v1631, %v1639
    %v1648 = vadd.f32 %v1632, %v1640
    %v1649 = vadd.f32 %v1633, %v1641
    %v1650 = vadd.f32 %v1634, %v1642
    %v1651 = vadd.f32 %v1635, %v1643
    %v1652 = vadd.f32 %v1636, %v1644
    %v1653 = vadd.f32 %v1637, %v1645
    %v1654 = vmax.f32 %v1646, 0.0
    %v1655 = vmax.f32 %v1647, 0.0
    %v1656 = vmax.f32 %v1648, 0.0
    %v1657 = vmax.f32 %v1649, 0.0
    %v1658 = vmax.f32 %v1650, 0.0
    %v1659 = vmax.f32 %v1651, 0.0
    %v1660 = vmax.f32 %v1652, 0.0
    %v1661 = vmax.f32 %v1653, 0.0
    %v1662 = vld [vmem:[%s0] sm:$0xff]
    %v1663 = vld [vmem:[%s0 + $0x8] sm:$0xff]
    %v1664 = vld [vmem:[%s0 + $0x10] sm:$0xff]
    %v1665 = vld [vmem:[%s0 + $0x18] sm:$0xff]
    %v1666 = vld [vmem:[%s0 + $0x20] sm:$0xf]
    %v1667 = vld [vmem:[%s0 + $0x28] sm:$0xf]
    %v1668 = vpack.c.bf16 %v1655, %v1654
    %v1669 = vpack.c.bf16 %v1657, %v1656
    %v1670 = vpack.c.bf16 %v1659, %v1658
    %v1671 = vpack.c.bf16 %v1661, %v1660
    %v1672 = vlaneseq
    %v1673 = vand.u32 %v1672, 127
    %1674 = vset.pattern.permute.xlu0 0
    %1675 = vperm.xlu0 %1674, %v1662
    %v1676 = vpop.permute.xlu0 %1675
    %1677 = vset.pattern.permute.xlu0 0
    %1678 = vperm.xlu0 %1677, %v1663
    %v1679 = vpop.permute.xlu0 %1678
    %1680 = vset.pattern.permute.xlu0 0
    %1681 = vperm.xlu0 %1680, %v1664
    %v1682 = vpop.permute.xlu0 %1681
    %1683 = vset.pattern.permute.xlu0 0
    %1684 = vperm.xlu0 %1683, %v1665
    %v1685 = vpop.permute.xlu0 %1684
    %vm1686 = vcmp.eq.s32.totalorder %v1676, %v1673
    %vm1687 = vcmp.eq.s32.totalorder %v1679, %v1673
    %vm1688 = vcmp.eq.s32.totalorder %v1682, %v1673
    %vm1689 = vcmp.eq.s32.totalorder %v1685, %v1673
    %v1690 = vsel %vm1686, 1, 0
    %v1691 = vsel %vm1687, 1, 0
    %v1692 = vsel %vm1688, 1, 0
    %v1693 = vsel %vm1689, 1, 0
    %v1694 = vcvt.s32.f32 %v1690
    %v1695 = vcvt.s32.f32 %v1691
    %v1696 = vcvt.s32.f32 %v1692
    %v1697 = vcvt.s32.f32 %v1693
    %v1698 = vpack.c.bf16 %v1695, %v1694
    %v1699 = vpack.c.bf16 %v1697, %v1696
    %1700 = vset.pattern.permute.xlu0 0
    %1701 = vperm.xlu0 %1700, %v1666
    %v1702 = vpop.permute.xlu0 %1701
    %vm1703 = vcmp.eq.s32.totalorder %v1702, %v1673
    %v1704 = vsel %vm1703, 1, 0
    %v1705 = vcvt.s32.f32 %v1704
    %v1706 = vpack.c.bf16 %v1705, %v1705
    %1711 = vrot.lane.b32.xlu0 %v1668, 96
    %v1712 = vpop.permute.xlu0 %1711
    %1713 = vrot.lane.b32.xlu0 %v1669, 96
    %v1714 = vpop.permute.xlu0 %1713
    %1715 = vrot.lane.b32.xlu0 %v1670, 96
    %v1716 = vpop.permute.xlu0 %1715
    %1717 = vrot.lane.b32.xlu0 %v1671, 96
    %v1718 = vpop.permute.xlu0 %1717
    %v1724 = vsel %vm175, %v1698, 0
    %v1727 = vsel %vm175, %v1699, 0
    %1729 = vmatpush.bf16.msra.mxu0 0
    %1730 = vmatpush.bf16.msra.mxu0 0
    %1731 = vmatpush.bf16.msra.mxu0 0
    %1732 = vmatpush.bf16.msra.mxu0 0
    %1733 = vmatpush.bf16.msra.mxu0 %v1718
    %1734 = vmatpush.bf16.msra.mxu0 %v1716
    %1735 = vmatpush.bf16.msra.mxu0 %v1714
    %1736 = vmatpush.bf16.msra.mxu0 %v1712
    %1737 = vmatmul.bf16.gmra.mxu0 %v1724
    %v1738 = vpop.f32.mrf.mxu0
    %v1739 = vadd.f32 0.0, %v1738
    %v1740 = vpop.f32.mrf.mxu0
    %v1741 = vadd.f32 0.0, %v1740
    %1742 = vmatmul.bf16.gmra.mxu0 %v1727
    %v1743 = vpop.f32.mrf.mxu0
    %v1744 = vadd.f32 0.0, %v1743
    %v1745 = vpop.f32.mrf.mxu0
    %v1746 = vadd.f32 0.0, %v1745
    %1747 = vdwg.mxu0
    %v1749 = vsel %vm175, %v1706, 0
    %1751 = vmatpush.bf16.msra.mxu0 0
    %1752 = vmatpush.bf16.msra.mxu0 0
    %1753 = vmatpush.bf16.msra.mxu0 0
    %1754 = vmatpush.bf16.msra.mxu0 0
    %1755 = vmatpush.bf16.msra.mxu0 %v1718
    %1756 = vmatpush.bf16.msra.mxu0 %v1716
    %1757 = vmatpush.bf16.msra.mxu0 %v1714
    %1758 = vmatpush.bf16.msra.mxu0 %v1712
    %1759 = vmatmul.bf16.gmra.mxu0 %v1749
    %v1760 = vpop.f32.mrf.mxu0
    %v1761 = vadd.f32 0.0, %v1760
    %v1762 = vpop.f32.mrf.mxu0
    %1763 = vdwg.mxu0
    %1764 = vmatpush.bf16.msra.mxu0 0
    %1765 = vmatpush.bf16.msra.mxu0 0
    %1766 = vmatpush.bf16.msra.mxu0 0
    %1767 = vmatpush.bf16.msra.mxu0 0
    %1768 = vmatpush.bf16.msra.mxu0 %v89
    %1769 = vmatpush.bf16.msra.mxu0 %v88
    %1770 = vmatpush.bf16.msra.mxu0 %v87
    %1771 = vmatpush.bf16.msra.mxu0 %v86
    %1772 = vmatmul.bf16.gmra.mxu0 %v1749
    %v1773 = vpop.f32.mrf.mxu0
    %v1774 = vadd.f32 0.0, %v1773
    %v1775 = vpop.f32.mrf.mxu0
    %1776 = vdwg.mxu0
    %v1777 = vpack.c.bf16 %v1741, %v1739
    %v1778 = vpack.c.bf16 %v1746, %v1744
    %v1779 = vperm.slane %v52, 0
    %v1784 = vunpack.c.l.b16 %v67
    %v1785 = vunpack.c.l.b16 %v68
    %v1786 = vunpack.c.l.b16 %v69
    %v1787 = vunpack.c.l.b16 %v70
    %v1788 = vpack.c.b16 %v1785, %v1784
    %v1789 = vpack.c.b16 %v1787, %v1786
    %v1792 = vsel %vm105, %v1777, 0
    %v1795 = vsel %vm105, %v1778, 0
    %v1798 = vsel %vm118, %v1789, 0
    %1800 = vmatpush.bf16.msra.mxu0 0
    %1801 = vmatpush.bf16.msra.mxu0 0
    %1802 = vmatpush.bf16.msra.mxu0 0
    %1803 = vmatpush.bf16.msra.mxu0 0
    %1804 = vmatpush.bf16.msra.mxu0 0
    %1805 = vmatpush.bf16.msra.mxu0 0
    %1806 = vmatpush.bf16.msra.mxu0 %v1798
    %1807 = vmatpush.bf16.msra.mxu0 %v1788
    %1808 = vmatmul.bf16.gmra.mxu0 %v1792
    %v1809 = vpop.f32.mrf.mxu0
    %v1810 = vadd.f32 %v1779, %v1809
    %v1811 = vpop.f32.mrf.mxu0
    %v1812 = vadd.f32 %v1779, %v1811
    %1813 = vmatmul.bf16.gmra.mxu0 %v1795
    %v1814 = vpop.f32.mrf.mxu0
    %v1815 = vadd.f32 %v1779, %v1814
    %v1816 = vpop.f32.mrf.mxu0
    %v1817 = vadd.f32 %v1779, %v1816
    %1818 = vdwg.mxu0
    %v1823 = vunpack.c.l.b16 %v72
    %v1824 = vunpack.c.l.b16 %v73
    %v1825 = vunpack.c.l.b16 %v74
    %v1826 = vunpack.c.l.b16 %v75
    %v1827 = vpack.c.b16 %v1824, %v1823
    %v1828 = vpack.c.b16 %v1826, %v1825
    %v1831 = vsel %vm105, 0, 0
    %v1834 = vsel %vm118, %v1828, 0
    %1836 = vmatpush.bf16.msra.mxu0 0
    %1837 = vmatpush.bf16.msra.mxu0 0
    %1838 = vmatpush.bf16.msra.mxu0 0
    %1839 = vmatpush.bf16.msra.mxu0 0
    %1840 = vmatpush.bf16.msra.mxu0 0
    %1841 = vmatpush.bf16.msra.mxu0 0
    %1842 = vmatpush.bf16.msra.mxu0 %v1834
    %1843 = vmatpush.bf16.msra.mxu0 %v1827
    %1844 = vmatmul.bf16.gmra.mxu0 %v1831
    %v1845 = vpop.f32.mrf.mxu0
    %v1846 = vadd.f32 0.0, %v1845
    %v1847 = vpop.f32.mrf.mxu0
    %1848 = vdwg.mxu0
    %v1849 = vadd.f32 %v1810, %v1846
    %v1850 = vxor.u32 %v1849, 2147483648
    %v1851 = vmul.f32 %v1850, 1.442695
    %v1852 = vpow.pop %v1851
    %v1853 = vadd.f32 %v1852, 1.0
    %v1854 = vrcp.pop %v1853
    %v1855 = vmul.f32 %v1853, %v1854
    %v1856 = vsub.f32 1.0, %v1855
    %v1857 = vmul.f32 %v1854, %v1856
    %v1858 = vadd.f32 %v1854, %v1857
    %vm1859 = vweird.f32 %v1853
    %vm1860 = vweird.f32 %v1854
    %vm1861 = vmor %vm1859, %vm1860
    %v1862 = vsel %vm1861, %v1854, %v1858
    %v1863 = vand.u32 2147483647, %v1853
    %vm1864 = vcmp.eq.f32.partialorder %v1863, 8.507059e+37
    %v1865 = vand.u32 %v1853, 2147483648
    %v1866 = vor.u32 1.1754944e-38, %v1865
    %v1867 = vsel %vm1864, %v1866, %v1862
    %v1868 = vmul.f32 1.0, %v1867
    %v1869 = vtanh.pop %v1849
    %v1870 = vmul.f32 %v1868, 0.0
    %1872 = vrot.lane.b32.xlu0 %v1869, 64
    %v1873 = vpop.permute.xlu0 %1872
    %v1875 = vmul.f32 %v1868, %v1873
    %1877 = vrot.lane.b32.xlu0 %v1875, 32
    %v1878 = vpop.permute.xlu0 %1877
    %v1880 = vadd.f32 %v1870, %v1878
    %v1881 = vtanh.pop %v1880
    %1883 = vrot.lane.b32.xlu0 %v1881, 64
    %v1884 = vpop.permute.xlu0 %1883
    %v1886 = vmul.f32 %v1868, %v1884
    %vm1887 = vcmp.gt.s32.totalorder %v1667, 0
    %v1888 = vsel %vm1887, 1, 0
    %1889 = vset.pattern.permute.xlu0 0
    %1890 = vperm.xlu0 %1889, %v1888
    %v1891 = vpop.permute.xlu0 %1890
    %vm1892 = vcmp.eq.s32.totalorder %v1891, 1
    %v1893 = vsel %vm1892, %v1886, 0.0
    %v1894 = vsel %vm1892, %v1880, 0.0
    %v1895 = vpack.c.bf16 %v1893, %v1893
    %1897 = vrot.lane.b32.xlu0 %v1895, 32
    %v1898 = vpop.permute.xlu0 %1897
    %v1900 = vsel %vm105, %v1898, 0
    %1902 = vmatpush.bf16.msra.mxu0 0
    %1903 = vmatpush.bf16.msra.mxu0 0
    %1904 = vmatpush.bf16.msra.mxu0 0
    %1905 = vmatpush.bf16.msra.mxu0 0
    %1906 = vmatpush.bf16.msra.mxu0 0
    %1907 = vmatpush.bf16.msra.mxu0 0
    %1908 = vmatpush.bf16.msra.mxu0 %v1834
    %1909 = vmatpush.bf16.msra.mxu0 %v1827
    %1910 = vmatmul.bf16.gmra.mxu0 %v1900
    %v1911 = vpop.f32.mrf.mxu0
    %v1912 = vadd.f32 0.0, %v1911
    %v1913 = vpop.f32.mrf.mxu0
    %1914 = vdwg.mxu0
    %v1916 = vrot.slane %v1912, 4
    %v1918 = vadd.f32 %v1810, %v1916
    %v1919 = vxor.u32 %v1918, 2147483648
    %v1920 = vmul.f32 %v1919, 1.442695
    %v1921 = vpow.pop %v1920
    %v1922 = vadd.f32 %v1921, 1.0
    %v1923 = vrcp.pop %v1922
    %v1924 = vmul.f32 %v1922, %v1923
    %v1925 = vsub.f32 1.0, %v1924
    %v1926 = vmul.f32 %v1923, %v1925
    %v1927 = vadd.f32 %v1923, %v1926
    %vm1928 = vweird.f32 %v1922
    %vm1929 = vweird.f32 %v1923
    %vm1930 = vmor %vm1928, %vm1929
    %v1931 = vsel %vm1930, %v1923, %v1927
    %v1932 = vand.u32 2147483647, %v1922
    %vm1933 = vcmp.eq.f32.partialorder %v1932, 8.507059e+37
    %v1934 = vand.u32 %v1922, 2147483648
    %v1935 = vor.u32 1.1754944e-38, %v1934
    %v1936 = vsel %vm1933, %v1935, %v1931
    %v1937 = vmul.f32 1.0, %v1936
    %v1938 = vtanh.pop %v1918
    %v1940 = vrot.slane %v1894, 4
    %v1942 = vmul.f32 %v1937, %v1940
    %1944 = vrot.lane.b32.xlu0 %v1938, 64
    %v1945 = vpop.permute.xlu0 %1944
    %v1947 = vmul.f32 %v1937, %v1945
    %1949 = vrot.lane.b32.xlu0 %v1947, 32
    %v1950 = vpop.permute.xlu0 %1949
    %v1952 = vadd.f32 %v1942, %v1950
    %v1953 = vtanh.pop %v1952
    %1955 = vrot.lane.b32.xlu0 %v1953, 64
    %v1956 = vpop.permute.xlu0 %1955
    %v1958 = vmul.f32 %v1937, %v1956
    %vm1959 = vcmp.gt.s32.totalorder %v1667, 1
    %v1960 = vsel %vm1959, 1, 0
    %1961 = vset.pattern.permute.xlu0 0
    %1962 = vperm.xlu0 %1961, %v1960
    %v1963 = vpop.permute.xlu0 %1962
    %vm1964 = vcmp.eq.s32.totalorder %v1963, 1
    %v1966 = vrot.slane %v1958, 4
    %1967 = vrot.lane.b32.xlu0 %v1966, 32
    %v1968 = vpop.permute.xlu0 %1967
    %1971 = vrot.lane.b32.xlu0 %v1893, 32
    %v1972 = vpop.permute.xlu0 %1971
    %v1974 = vsel %vm1964, %v1968, %v1972
    %v1976 = vrot.slane %v1952, 4
    %1977 = vrot.lane.b32.xlu0 %v1976, 96
    %v1978 = vpop.permute.xlu0 %1977
    %1980 = vrot.lane.b32.xlu0 %v1894, 96
    %v1981 = vpop.permute.xlu0 %1980
    %v1983 = vsel %vm1964, %v1978, %v1981
    %v1984 = vpack.c.bf16 %v1974, %v1974
    %v1986 = vsel %vm105, %v1984, 0
    %1988 = vmatpush.bf16.msra.mxu0 0
    %1989 = vmatpush.bf16.msra.mxu0 0
    %1990 = vmatpush.bf16.msra.mxu0 0
    %1991 = vmatpush.bf16.msra.mxu0 0
    %1992 = vmatpush.bf16.msra.mxu0 0
    %1993 = vmatpush.bf16.msra.mxu0 0
    %1994 = vmatpush.bf16.msra.mxu0 %v1834
    %1995 = vmatpush.bf16.msra.mxu0 %v1827
    %1996 = vmatmul.bf16.gmra.mxu0 %v1986
    %v1997 = vpop.f32.mrf.mxu0
    %v1998 = vadd.f32 0.0, %v1997
    %v1999 = vpop.f32.mrf.mxu0
    %2000 = vdwg.mxu0
    %v2001 = vadd.f32 %v1812, %v1998
    %v2002 = vxor.u32 %v2001, 2147483648
    %v2003 = vmul.f32 %v2002, 1.442695
    %v2004 = vpow.pop %v2003
    %v2005 = vadd.f32 %v2004, 1.0
    %v2006 = vrcp.pop %v2005
    %v2007 = vmul.f32 %v2005, %v2006
    %v2008 = vsub.f32 1.0, %v2007
    %v2009 = vmul.f32 %v2006, %v2008
    %v2010 = vadd.f32 %v2006, %v2009
    %vm2011 = vweird.f32 %v2005
    %vm2012 = vweird.f32 %v2006
    %vm2013 = vmor %vm2011, %vm2012
    %v2014 = vsel %vm2013, %v2006, %v2010
    %v2015 = vand.u32 2147483647, %v2005
    %vm2016 = vcmp.eq.f32.partialorder %v2015, 8.507059e+37
    %v2017 = vand.u32 %v2005, 2147483648
    %v2018 = vor.u32 1.1754944e-38, %v2017
    %v2019 = vsel %vm2016, %v2018, %v2014
    %v2020 = vmul.f32 1.0, %v2019
    %v2021 = vtanh.pop %v2001
    %2023 = vrot.lane.b32.xlu0 %v1983, 32
    %v2024 = vpop.permute.xlu0 %2023
    %v2026 = vmul.f32 %v2020, %v2024
    %2028 = vrot.lane.b32.xlu0 %v2021, 64
    %v2029 = vpop.permute.xlu0 %2028
    %v2031 = vmul.f32 %v2020, %v2029
    %2033 = vrot.lane.b32.xlu0 %v2031, 32
    %v2034 = vpop.permute.xlu0 %2033
    %v2036 = vadd.f32 %v2026, %v2034
    %v2037 = vtanh.pop %v2036
    %2039 = vrot.lane.b32.xlu0 %v2037, 64
    %v2040 = vpop.permute.xlu0 %2039
    %v2042 = vmul.f32 %v2020, %v2040
    %vm2043 = vcmp.gt.s32.totalorder %v1667, 2
    %v2044 = vsel %vm2043, 1, 0
    %2045 = vset.pattern.permute.xlu0 0
    %2046 = vperm.xlu0 %2045, %v2044
    %v2047 = vpop.permute.xlu0 %2046
    %vm2048 = vcmp.eq.s32.totalorder %v2047, 1
    %2050 = vrot.lane.b32.xlu0 %v1974, 96
    %v2051 = vpop.permute.xlu0 %2050
    %v2053 = vsel %vm2048, %v2042, %v2051
    %v2054 = vsel %vm2048, %v2036, %v2024
    %v2055 = vpack.c.bf16 %v2053, %v2053
    %2057 = vrot.lane.b32.xlu0 %v2055, 32
    %v2058 = vpop.permute.xlu0 %2057
    %v2060 = vsel %vm105, %v2058, 0
    %2062 = vmatpush.bf16.msra.mxu0 0
    %2063 = vmatpush.bf16.msra.mxu0 0
    %2064 = vmatpush.bf16.msra.mxu0 0
    %2065 = vmatpush.bf16.msra.mxu0 0
    %2066 = vmatpush.bf16.msra.mxu0 0
    %2067 = vmatpush.bf16.msra.mxu0 0
    %2068 = vmatpush.bf16.msra.mxu0 %v1834
    %2069 = vmatpush.bf16.msra.mxu0 %v1827
    %2070 = vmatmul.bf16.gmra.mxu0 %v2060
    %v2071 = vpop.f32.mrf.mxu0
    %v2072 = vadd.f32 0.0, %v2071
    %v2073 = vpop.f32.mrf.mxu0
    %2074 = vdwg.mxu0
    %v2076 = vrot.slane %v2072, 4
    %v2078 = vadd.f32 %v1812, %v2076
    %v2079 = vxor.u32 %v2078, 2147483648
    %v2080 = vmul.f32 %v2079, 1.442695
    %v2081 = vpow.pop %v2080
    %v2082 = vadd.f32 %v2081, 1.0
    %v2083 = vrcp.pop %v2082
    %v2084 = vmul.f32 %v2082, %v2083
    %v2085 = vsub.f32 1.0, %v2084
    %v2086 = vmul.f32 %v2083, %v2085
    %v2087 = vadd.f32 %v2083, %v2086
    %vm2088 = vweird.f32 %v2082
    %vm2089 = vweird.f32 %v2083
    %vm2090 = vmor %vm2088, %vm2089
    %v2091 = vsel %vm2090, %v2083, %v2087
    %v2092 = vand.u32 2147483647, %v2082
    %vm2093 = vcmp.eq.f32.partialorder %v2092, 8.507059e+37
    %v2094 = vand.u32 %v2082, 2147483648
    %v2095 = vor.u32 1.1754944e-38, %v2094
    %v2096 = vsel %vm2093, %v2095, %v2091
    %v2097 = vmul.f32 1.0, %v2096
    %v2098 = vtanh.pop %v2078
    %v2100 = vrot.slane %v2054, 4
    %v2102 = vmul.f32 %v2097, %v2100
    %2104 = vrot.lane.b32.xlu0 %v2098, 64
    %v2105 = vpop.permute.xlu0 %2104
    %v2107 = vmul.f32 %v2097, %v2105
    %2109 = vrot.lane.b32.xlu0 %v2107, 32
    %v2110 = vpop.permute.xlu0 %2109
    %v2112 = vadd.f32 %v2102, %v2110
    %v2113 = vtanh.pop %v2112
    %2115 = vrot.lane.b32.xlu0 %v2113, 64
    %v2116 = vpop.permute.xlu0 %2115
    %v2118 = vmul.f32 %v2097, %v2116
    %vm2119 = vcmp.gt.s32.totalorder %v1667, 3
    %v2120 = vsel %vm2119, 1, 0
    %2121 = vset.pattern.permute.xlu0 0
    %2122 = vperm.xlu0 %2121, %v2120
    %v2123 = vpop.permute.xlu0 %2122
    %vm2124 = vcmp.eq.s32.totalorder %v2123, 1
    %v2126 = vrot.slane %v2118, 4
    %2127 = vrot.lane.b32.xlu0 %v2126, 32
    %v2128 = vpop.permute.xlu0 %2127
    %2131 = vrot.lane.b32.xlu0 %v2053, 32
    %v2132 = vpop.permute.xlu0 %2131
    %v2134 = vsel %vm2124, %v2128, %v2132
    %v2136 = vrot.slane %v2112, 4
    %2137 = vrot.lane.b32.xlu0 %v2136, 96
    %v2138 = vpop.permute.xlu0 %2137
    %2140 = vrot.lane.b32.xlu0 %v2054, 96
    %v2141 = vpop.permute.xlu0 %2140
    %v2143 = vsel %vm2124, %v2138, %v2141
    %v2144 = vpack.c.bf16 %v2134, %v2134
    %v2146 = vsel %vm105, %v2144, 0
    %2148 = vmatpush.bf16.msra.mxu0 0
    %2149 = vmatpush.bf16.msra.mxu0 0
    %2150 = vmatpush.bf16.msra.mxu0 0
    %2151 = vmatpush.bf16.msra.mxu0 0
    %2152 = vmatpush.bf16.msra.mxu0 0
    %2153 = vmatpush.bf16.msra.mxu0 0
    %2154 = vmatpush.bf16.msra.mxu0 %v1834
    %2155 = vmatpush.bf16.msra.mxu0 %v1827
    %2156 = vmatmul.bf16.gmra.mxu0 %v2146
    %v2157 = vpop.f32.mrf.mxu0
    %v2158 = vadd.f32 0.0, %v2157
    %v2159 = vpop.f32.mrf.mxu0
    %2160 = vdwg.mxu0
    %v2161 = vadd.f32 %v1815, %v2158
    %v2162 = vxor.u32 %v2161, 2147483648
    %v2163 = vmul.f32 %v2162, 1.442695
    %v2164 = vpow.pop %v2163
    %v2165 = vadd.f32 %v2164, 1.0
    %v2166 = vrcp.pop %v2165
    %v2167 = vmul.f32 %v2165, %v2166
    %v2168 = vsub.f32 1.0, %v2167
    %v2169 = vmul.f32 %v2166, %v2168
    %v2170 = vadd.f32 %v2166, %v2169
    %vm2171 = vweird.f32 %v2165
    %vm2172 = vweird.f32 %v2166
    %vm2173 = vmor %vm2171, %vm2172
    %v2174 = vsel %vm2173, %v2166, %v2170
    %v2175 = vand.u32 2147483647, %v2165
    %vm2176 = vcmp.eq.f32.partialorder %v2175, 8.507059e+37
    %v2177 = vand.u32 %v2165, 2147483648
    %v2178 = vor.u32 1.1754944e-38, %v2177
    %v2179 = vsel %vm2176, %v2178, %v2174
    %v2180 = vmul.f32 1.0, %v2179
    %v2181 = vtanh.pop %v2161
    %2183 = vrot.lane.b32.xlu0 %v2143, 32
    %v2184 = vpop.permute.xlu0 %2183
    %v2186 = vmul.f32 %v2180, %v2184
    %2188 = vrot.lane.b32.xlu0 %v2181, 64
    %v2189 = vpop.permute.xlu0 %2188
    %v2191 = vmul.f32 %v2180, %v2189
    %2193 = vrot.lane.b32.xlu0 %v2191, 32
    %v2194 = vpop.permute.xlu0 %2193
    %v2196 = vadd.f32 %v2186, %v2194
    %v2197 = vtanh.pop %v2196
    %2199 = vrot.lane.b32.xlu0 %v2197, 64
    %v2200 = vpop.permute.xlu0 %2199
    %v2202 = vmul.f32 %v2180, %v2200
    %vm2203 = vcmp.gt.s32.totalorder %v1667, 4
    %v2204 = vsel %vm2203, 1, 0
    %2205 = vset.pattern.permute.xlu0 0
    %2206 = vperm.xlu0 %2205, %v2204
    %v2207 = vpop.permute.xlu0 %2206
    %vm2208 = vcmp.eq.s32.totalorder %v2207, 1
    %2210 = vrot.lane.b32.xlu0 %v2134, 96
    %v2211 = vpop.permute.xlu0 %2210
    %v2213 = vsel %vm2208, %v2202, %v2211
    %v2214 = vsel %vm2208, %v2196, %v2184
    %v2215 = vpack.c.bf16 %v2213, %v2213
    %2217 = vrot.lane.b32.xlu0 %v2215, 32
    %v2218 = vpop.permute.xlu0 %2217
    %v2220 = vsel %vm105, %v2218, 0
    %2222 = vmatpush.bf16.msra.mxu0 0
    %2223 = vmatpush.bf16.msra.mxu0 0
    %2224 = vmatpush.bf16.msra.mxu0 0
    %2225 = vmatpush.bf16.msra.mxu0 0
    %2226 = vmatpush.bf16.msra.mxu0 0
    %2227 = vmatpush.bf16.msra.mxu0 0
    %2228 = vmatpush.bf16.msra.mxu0 %v1834
    %2229 = vmatpush.bf16.msra.mxu0 %v1827
    %2230 = vmatmul.bf16.gmra.mxu0 %v2220
    %v2231 = vpop.f32.mrf.mxu0
    %v2232 = vadd.f32 0.0, %v2231
    %v2233 = vpop.f32.mrf.mxu0
    %2234 = vdwg.mxu0
    %v2236 = vrot.slane %v2232, 4
    %v2238 = vadd.f32 %v1815, %v2236
    %v2239 = vxor.u32 %v2238, 2147483648
    %v2240 = vmul.f32 %v2239, 1.442695
    %v2241 = vpow.pop %v2240
    %v2242 = vadd.f32 %v2241, 1.0
    %v2243 = vrcp.pop %v2242
    %v2244 = vmul.f32 %v2242, %v2243
    %v2245 = vsub.f32 1.0, %v2244
    %v2246 = vmul.f32 %v2243, %v2245
    %v2247 = vadd.f32 %v2243, %v2246
    %vm2248 = vweird.f32 %v2242
    %vm2249 = vweird.f32 %v2243
    %vm2250 = vmor %vm2248, %vm2249
    %v2251 = vsel %vm2250, %v2243, %v2247
    %v2252 = vand.u32 2147483647, %v2242
    %vm2253 = vcmp.eq.f32.partialorder %v2252, 8.507059e+37
    %v2254 = vand.u32 %v2242, 2147483648
    %v2255 = vor.u32 1.1754944e-38, %v2254
    %v2256 = vsel %vm2253, %v2255, %v2251
    %v2257 = vmul.f32 1.0, %v2256
    %v2258 = vtanh.pop %v2238
    %v2260 = vrot.slane %v2214, 4
    %v2262 = vmul.f32 %v2257, %v2260
    %2264 = vrot.lane.b32.xlu0 %v2258, 64
    %v2265 = vpop.permute.xlu0 %2264
    %v2267 = vmul.f32 %v2257, %v2265
    %2269 = vrot.lane.b32.xlu0 %v2267, 32
    %v2270 = vpop.permute.xlu0 %2269
    %v2272 = vadd.f32 %v2262, %v2270
    %v2273 = vtanh.pop %v2272
    %2275 = vrot.lane.b32.xlu0 %v2273, 64
    %v2276 = vpop.permute.xlu0 %2275
    %v2278 = vmul.f32 %v2257, %v2276
    %vm2279 = vcmp.gt.s32.totalorder %v1667, 5
    %v2280 = vsel %vm2279, 1, 0
    %2281 = vset.pattern.permute.xlu0 0
    %2282 = vperm.xlu0 %2281, %v2280
    %v2283 = vpop.permute.xlu0 %2282
    %vm2284 = vcmp.eq.s32.totalorder %v2283, 1
    %v2286 = vrot.slane %v2278, 4
    %2287 = vrot.lane.b32.xlu0 %v2286, 32
    %v2288 = vpop.permute.xlu0 %2287
    %2291 = vrot.lane.b32.xlu0 %v2213, 32
    %v2292 = vpop.permute.xlu0 %2291
    %v2294 = vsel %vm2284, %v2288, %v2292
    %v2296 = vrot.slane %v2272, 4
    %2297 = vrot.lane.b32.xlu0 %v2296, 96
    %v2298 = vpop.permute.xlu0 %2297
    %2300 = vrot.lane.b32.xlu0 %v2214, 96
    %v2301 = vpop.permute.xlu0 %2300
    %v2303 = vsel %vm2284, %v2298, %v2301
    %v2304 = vpack.c.bf16 %v2294, %v2294
    %v2306 = vsel %vm105, %v2304, 0
    %2308 = vmatpush.bf16.msra.mxu0 0
    %2309 = vmatpush.bf16.msra.mxu0 0
    %2310 = vmatpush.bf16.msra.mxu0 0
    %2311 = vmatpush.bf16.msra.mxu0 0
    %2312 = vmatpush.bf16.msra.mxu0 0
    %2313 = vmatpush.bf16.msra.mxu0 0
    %2314 = vmatpush.bf16.msra.mxu0 %v1834
    %2315 = vmatpush.bf16.msra.mxu0 %v1827
    %2316 = vmatmul.bf16.gmra.mxu0 %v2306
    %v2317 = vpop.f32.mrf.mxu0
    %v2318 = vadd.f32 0.0, %v2317
    %v2319 = vpop.f32.mrf.mxu0
    %2320 = vdwg.mxu0
    %v2321 = vadd.f32 %v1817, %v2318
    %v2322 = vxor.u32 %v2321, 2147483648
    %v2323 = vmul.f32 %v2322, 1.442695
    %v2324 = vpow.pop %v2323
    %v2325 = vadd.f32 %v2324, 1.0
    %v2326 = vrcp.pop %v2325
    %v2327 = vmul.f32 %v2325, %v2326
    %v2328 = vsub.f32 1.0, %v2327
    %v2329 = vmul.f32 %v2326, %v2328
    %v2330 = vadd.f32 %v2326, %v2329
    %vm2331 = vweird.f32 %v2325
    %vm2332 = vweird.f32 %v2326
    %vm2333 = vmor %vm2331, %vm2332
    %v2334 = vsel %vm2333, %v2326, %v2330
    %v2335 = vand.u32 2147483647, %v2325
    %vm2336 = vcmp.eq.f32.partialorder %v2335, 8.507059e+37
    %v2337 = vand.u32 %v2325, 2147483648
    %v2338 = vor.u32 1.1754944e-38, %v2337
    %v2339 = vsel %vm2336, %v2338, %v2334
    %v2340 = vmul.f32 1.0, %v2339
    %v2341 = vtanh.pop %v2321
    %2343 = vrot.lane.b32.xlu0 %v2303, 32
    %v2344 = vpop.permute.xlu0 %2343
    %v2346 = vmul.f32 %v2340, %v2344
    %2348 = vrot.lane.b32.xlu0 %v2341, 64
    %v2349 = vpop.permute.xlu0 %2348
    %v2351 = vmul.f32 %v2340, %v2349
    %2353 = vrot.lane.b32.xlu0 %v2351, 32
    %v2354 = vpop.permute.xlu0 %2353
    %v2356 = vadd.f32 %v2346, %v2354
    %v2357 = vtanh.pop %v2356
    %2359 = vrot.lane.b32.xlu0 %v2357, 64
    %v2360 = vpop.permute.xlu0 %2359
    %v2362 = vmul.f32 %v2340, %v2360
    %vm2363 = vcmp.gt.s32.totalorder %v1667, 6
    %v2364 = vsel %vm2363, 1, 0
    %2365 = vset.pattern.permute.xlu0 0
    %2366 = vperm.xlu0 %2365, %v2364
    %v2367 = vpop.permute.xlu0 %2366
    %vm2368 = vcmp.eq.s32.totalorder %v2367, 1
    %2370 = vrot.lane.b32.xlu0 %v2294, 96
    %v2371 = vpop.permute.xlu0 %2370
    %v2373 = vsel %vm2368, %v2362, %v2371
    %v2374 = vsel %vm2368, %v2356, %v2344
    %v2375 = vpack.c.bf16 %v2373, %v2373
    %2377 = vrot.lane.b32.xlu0 %v2375, 32
    %v2378 = vpop.permute.xlu0 %2377
    %v2380 = vsel %vm105, %v2378, 0
    %2382 = vmatpush.bf16.msra.mxu0 0
    %2383 = vmatpush.bf16.msra.mxu0 0
    %2384 = vmatpush.bf16.msra.mxu0 0
    %2385 = vmatpush.bf16.msra.mxu0 0
    %2386 = vmatpush.bf16.msra.mxu0 0
    %2387 = vmatpush.bf16.msra.mxu0 0
    %2388 = vmatpush.bf16.msra.mxu0 %v1834
    %2389 = vmatpush.bf16.msra.mxu0 %v1827
    %2390 = vmatmul.bf16.gmra.mxu0 %v2380
    %v2391 = vpop.f32.mrf.mxu0
    %v2392 = vadd.f32 0.0, %v2391
    %v2393 = vpop.f32.mrf.mxu0
    %2394 = vdwg.mxu0
    %v2396 = vrot.slane %v2392, 4
    %v2398 = vadd.f32 %v1817, %v2396
    %v2399 = vxor.u32 %v2398, 2147483648
    %v2400 = vmul.f32 %v2399, 1.442695
    %v2401 = vpow.pop %v2400
    %v2402 = vadd.f32 %v2401, 1.0
    %v2403 = vrcp.pop %v2402
    %v2404 = vmul.f32 %v2402, %v2403
    %v2405 = vsub.f32 1.0, %v2404
    %v2406 = vmul.f32 %v2403, %v2405
    %v2407 = vadd.f32 %v2403, %v2406
    %vm2408 = vweird.f32 %v2402
    %vm2409 = vweird.f32 %v2403
    %vm2410 = vmor %vm2408, %vm2409
    %v2411 = vsel %vm2410, %v2403, %v2407
    %v2412 = vand.u32 2147483647, %v2402
    %vm2413 = vcmp.eq.f32.partialorder %v2412, 8.507059e+37
    %v2414 = vand.u32 %v2402, 2147483648
    %v2415 = vor.u32 1.1754944e-38, %v2414
    %v2416 = vsel %vm2413, %v2415, %v2411
    %v2417 = vmul.f32 1.0, %v2416
    %v2418 = vtanh.pop %v2398
    %v2420 = vrot.slane %v2374, 4
    %v2422 = vmul.f32 %v2417, %v2420
    %2424 = vrot.lane.b32.xlu0 %v2418, 64
    %v2425 = vpop.permute.xlu0 %2424
    %v2427 = vmul.f32 %v2417, %v2425
    %2429 = vrot.lane.b32.xlu0 %v2427, 32
    %v2430 = vpop.permute.xlu0 %2429
    %v2432 = vadd.f32 %v2422, %v2430
    %v2433 = vtanh.pop %v2432
    %2435 = vrot.lane.b32.xlu0 %v2433, 64
    %v2436 = vpop.permute.xlu0 %2435
    %v2438 = vmul.f32 %v2417, %v2436
    %vm2439 = vcmp.gt.s32.totalorder %v1667, 7
    %v2440 = vsel %vm2439, 1, 0
    %2441 = vset.pattern.permute.xlu0 0
    %2442 = vperm.xlu0 %2441, %v2440
    %v2443 = vpop.permute.xlu0 %2442
    %vm2444 = vcmp.eq.s32.totalorder %v2443, 1
    %v2446 = vrot.slane %v2438, 4
    %2447 = vrot.lane.b32.xlu0 %v2446, 32
    %v2448 = vpop.permute.xlu0 %2447
    %2451 = vrot.lane.b32.xlu0 %v2373, 32
    %v2452 = vpop.permute.xlu0 %2451
    %v2454 = vsel %vm2444, %v2448, %v2452
    %v2455 = vpack.c.bf16 %v2454, %v2454
    %v2456 = vpack.c.bf16 %v1761, %v1761
    %v2461 = vunpack.c.l.b16 %v77
    %v2462 = vunpack.c.l.b16 %v78
    %v2463 = vunpack.c.l.b16 %v79
    %v2464 = vunpack.c.l.b16 %v80
    %v2465 = vpack.c.b16 %v2462, %v2461
    %v2466 = vpack.c.b16 %v2464, %v2463
    %2467 = vrot.lane.b32.xlu0 %v2465, 96
    %v2468 = vpop.permute.xlu0 %2467
    %2469 = vrot.lane.b32.xlu0 %v2466, 96
    %v2470 = vpop.permute.xlu0 %2469
    %v2473 = vsel %vm105, %v2456, 0
    %v2476 = vsel %vm118, %v2470, 0
    %2478 = vmatpush.bf16.msra.mxu0 0
    %2479 = vmatpush.bf16.msra.mxu0 0
    %2480 = vmatpush.bf16.msra.mxu0 0
    %2481 = vmatpush.bf16.msra.mxu0 0
    %2482 = vmatpush.bf16.msra.mxu0 0
    %2483 = vmatpush.bf16.msra.mxu0 0
    %2484 = vmatpush.bf16.msra.mxu0 %v2476
    %2485 = vmatpush.bf16.msra.mxu0 %v2468
    %2486 = vmatmul.bf16.gmra.mxu0 %v2473
    %v2487 = vpop.f32.mrf.mxu0
    %v2488 = vadd.f32 0.0, %v2487
    %v2489 = vpop.f32.mrf.mxu0
    %2490 = vdwg.mxu0
    %v2493 = vsel %vm105, %v2455, 0
    %v2496 = vsel %vm118, %v2466, 0
    %2498 = vmatpush.bf16.msra.mxu0 0
    %2499 = vmatpush.bf16.msra.mxu0 0
    %2500 = vmatpush.bf16.msra.mxu0 0
    %2501 = vmatpush.bf16.msra.mxu0 0
    %2502 = vmatpush.bf16.msra.mxu0 0
    %2503 = vmatpush.bf16.msra.mxu0 0
    %2504 = vmatpush.bf16.msra.mxu0 %v2496
    %2505 = vmatpush.bf16.msra.mxu0 %v2465
    %2506 = vmatmul.bf16.gmra.mxu0 %v2493
    %v2507 = vpop.f32.mrf.mxu0
    %v2508 = vadd.f32 %v2488, %v2507
    %v2509 = vpop.f32.mrf.mxu0
    %2510 = vdwg.mxu0
    %v2511 = vperm.slane %v53, 0
    %v2512 = vadd.f32 %v2508, %v2511
    %v2513 = vmax.f32 %v2512, 0.0
    %v2514 = vpack.c.bf16 %v2513, %v2513
    %v2515 = vpack.c.bf16 %v1774, %v1774
    %v2520 = vunpack.c.l.b16 %v82
    %v2521 = vunpack.c.l.b16 %v83
    %v2522 = vunpack.c.l.b16 %v84
    %v2523 = vunpack.c.l.b16 %v85
    %v2524 = vpack.c.b16 %v2521, %v2520
    %v2525 = vpack.c.b16 %v2523, %v2522
    %2526 = vrot.lane.b32.xlu0 %v2524, 96
    %v2527 = vpop.permute.xlu0 %2526
    %2528 = vrot.lane.b32.xlu0 %v2525, 96
    %v2529 = vpop.permute.xlu0 %2528
    %v2532 = vsel %vm105, %v2515, 0
    %v2535 = vsel %vm118, %v2529, 0
    %2537 = vmatpush.bf16.msra.mxu0 0
    %2538 = vmatpush.bf16.msra.mxu0 0
    %2539 = vmatpush.bf16.msra.mxu0 0
    %2540 = vmatpush.bf16.msra.mxu0 0
    %2541 = vmatpush.bf16.msra.mxu0 0
    %2542 = vmatpush.bf16.msra.mxu0 0
    %2543 = vmatpush.bf16.msra.mxu0 %v2535
    %2544 = vmatpush.bf16.msra.mxu0 %v2527
    %2545 = vmatmul.bf16.gmra.mxu0 %v2532
    %v2546 = vpop.f32.mrf.mxu0
    %v2547 = vadd.f32 0.0, %v2546
    %v2548 = vpop.f32.mrf.mxu0
    %2549 = vdwg.mxu0
    %v2552 = vsel %vm105, %v2514, 0
    %v2555 = vsel %vm118, %v2525, 0
    %2557 = vmatpush.bf16.msra.mxu0 0
    %2558 = vmatpush.bf16.msra.mxu0 0
    %2559 = vmatpush.bf16.msra.mxu0 0
    %2560 = vmatpush.bf16.msra.mxu0 0
    %2561 = vmatpush.bf16.msra.mxu0 0
    %2562 = vmatpush.bf16.msra.mxu0 0
    %2563 = vmatpush.bf16.msra.mxu0 %v2555
    %2564 = vmatpush.bf16.msra.mxu0 %v2524
    %2565 = vmatmul.bf16.gmra.mxu0 %v2552
    %v2566 = vpop.f32.mrf.mxu0
    %v2567 = vadd.f32 %v2547, %v2566
    %v2568 = vpop.f32.mrf.mxu0
    %2569 = vdwg.mxu0
    %v2570 = vperm.slane %v54, 0
    %v2571 = vadd.f32 %v2567, %v2570
    %v2572 = vmax.f32 %v2571, 0.0
    %v2573 = vpack.c.bf16 %v2572, %v2572
    %v2574 = vperm.slane %v55, 0
    %2575 = vrot.lane.b32.xlu0 %v2524, 64
    %v2576 = vpop.permute.xlu0 %2575
    %2577 = vrot.lane.b32.xlu0 %v2525, 64
    %v2578 = vpop.permute.xlu0 %2577
    %v2581 = vsel %vm105, %v2573, 0
    %v2584 = vsel %vm118, %v2578, 0
    %2586 = vmatpush.bf16.msra.mxu0 0
    %2587 = vmatpush.bf16.msra.mxu0 0
    %2588 = vmatpush.bf16.msra.mxu0 0
    %2589 = vmatpush.bf16.msra.mxu0 0
    %2590 = vmatpush.bf16.msra.mxu0 0
    %2591 = vmatpush.bf16.msra.mxu0 0
    %2592 = vmatpush.bf16.msra.mxu0 %v2584
    %2593 = vmatpush.bf16.msra.mxu0 %v2576
    %2594 = vmatmul.bf16.gmra.mxu0 %v2581
    %v2595 = vpop.f32.mrf.mxu0
    %v2596 = vadd.f32 %v2574, %v2595
    %v2597 = vpop.f32.mrf.mxu0
    %2598 = vdwg.mxu0
    %vm2599 = vcmask 35840
    %v2600 = vsel %vm2599, %v2596, -inf
    %2601 = vmax.xlane.f32.xlu0 %v2600
    %v2602 = vpop.xlane.xlu0 %2601
    %v2603 = vsub.f32 %v2596, %v2602
    %v2604 = vmul.f32 %v2603, 1.442695
    %v2605 = vpow.pop %v2604
    %v2606 = vsel %vm2599, %v2605, 0.0
    %2607 = vadd.xlane.f32.xlu0 %v2606
    %v2608 = vpop.xlane.xlu0 %2607
    %v2609 = vlog2.pop %v2608
    %v2610 = vmul.f32 %v2609, 0.6931472
    %v2611 = vsub.f32 %v2603, %v2610
    %2612 = vst.msk [vmem:[#allocation5] sm:$0xf] %vm2599, %v2611
    // Predicated region
    $region22: #{net_forward.1} parent=1 // pred_check
      _
    $region23: #{net_forward.1} parent=1 // pred_check_branch
      %2614 = sbr.rel (0) target = $region25
    $region24: #{net_forward.1} parent=1 // pred_region
      %2616 = vsyncadd [#allocation4], 0
      %s2618 = sshll.u32 [#allocation5], 4
      %s2619 = int_to_ptr.vmem [resolvable:$true] %s2618
      %s2620 = sshll.u32 %s4, 4
      %s2621 = int_to_ptr.hbm [resolvable:$true] %s2620
      %2623 = dma.vmem_to_hbm [thread:$0]  %s2619, 64, %s2621, [#allocation4]
    $region25: #{net_forward.1} parent=1 // pred_fallthru
      _
    // Predicated region
    $region26: #{net_forward.1} parent=1 // pred_check
      _
    $region27: #{net_forward.1} parent=1 // pred_check_branch
      %2625 = sbr.rel (0) target = $region29
    $region28: #{net_forward.1} parent=1 // pred_region
      %2627 = dma.done [#allocation4], 64
    $region29: #{net_forward.1} parent=1 // pred_fallthru
      _
    %2628 = vsyncpa [#allocation3], 1
    %2629 = vsyncpa [#allocation4], 1

</llo_original>
